<compile_context>
chip_gen: v7x
topology: tpu7x:2x2x1
jax: 0.10.0
libtpu: 0.0.40
codegen_flags: <defaults>
</compile_context>

<pallas_src>
import functools

import jax
import jax.numpy as jnp
from jax.experimental import pallas as pl
from jax.experimental.pallas import tpu as pltpu

NUM_HEADS = 8
NEG_SLOPE = 0.2


# ----------------------------------------------------------------------------
# Fused GATConv layer kernel (projection + attention + softmax + aggregation
# + activation / head-mean + log_softmax), fully VMEM resident.
# ----------------------------------------------------------------------------
def _gat_layer_kernel(h_ref, wsrc_ref, wdst_ref, al_ref, ar_ref, adj_ref, o_ref,
                      *, n_dst, n_heads, out_f, last_layer):
    """
    h_ref    : (N_src, D_in)   f32   input node features
    wsrc_ref : (D_in, H*F)     bf16  fc_src weight
    wdst_ref : (D_in, H*F)     bf16  fc_dst weight
    al_ref   : (H, H*F)        bf16  attn_l, block-row layout
    ar_ref   : (H*F, H)        bf16  attn_r, block-diagonal layout
    adj_ref  : (N_dst, N_src)  f32   dense block adjacency mask
    o_ref    : (N_dst, H*F) hidden layers / (N_dst, C) last layer
    """
    hb = h_ref[...].astype(jnp.bfloat16)

    # fc_src / fc_dst projections: bf16 MXU inputs, f32 accumulation.
    # h_dst is a prefix of h (DGL MFG convention) so it is already resident.
    fs = jnp.dot(hb, wsrc_ref[...], preferred_element_type=jnp.float32)          # (N_src, H*F)
    fd = jnp.dot(hb[:n_dst], wdst_ref[...], preferred_element_type=jnp.float32)  # (N_dst, H*F)
    fs_b = fs.astype(jnp.bfloat16)
    fd_b = fd.astype(jnp.bfloat16)

    # Attention logits for ALL heads with single K = H*F contractions:
    #   el[h, s] = <feat_src[s, h, :], attn_l[h, :]>   -> (H, N_src)
    #   er[d, h] = <feat_dst[d, h, :], attn_r[h, :]>   -> (N_dst, H)
    el = jax.lax.dot_general(al_ref[...], fs_b, (((1,), (1,)), ((), ())),
                             preferred_element_type=jnp.float32)                 # (H, N_src)
    er = jnp.dot(fd_b, ar_ref[...], preferred_element_type=jnp.float32)          # (N_dst, H)

    adj = adj_ref[...]
    edge = adj > 0.0

    head_outs = []
    acc = None
    for hh in range(n_heads):
        # e[d, s] = LeakyReLU(el[h, s] + er[d, h], 0.2), masked softmax over s.
        e = er[:, hh:hh + 1] + el[hh:hh + 1, :]                    # (N_dst, N_src)
        e = jnp.where(e > 0, e, NEG_SLOPE * e)
        e = jnp.where(edge, e, -1e30)                              # mask in f32
        m = jnp.max(e, axis=-1, keepdims=True)
        p = jnp.where(edge, jnp.exp(e - m), 0.0)
        s = jnp.sum(p, axis=-1, keepdims=True)
        # guard dst nodes with no incident edge; EUP reciprocal (off the VALU)
        a = p * pl.reciprocal(jnp.maximum(s, 1e-30), approx=True)

        out_h = jnp.dot(a.astype(jnp.bfloat16),
                        fs_b[:, hh * out_f:(hh + 1) * out_f],
                        preferred_element_type=jnp.float32)        # (N_dst, F)
        if last_layer:
            acc = out_h if acc is None else acc + out_h
        else:
            head_outs.append(out_h)

    if last_layer:
        # fused `h.mean(1).log_softmax(-1)` epilogue
        mean = acc * (1.0 / n_heads)
        mx = jnp.max(mean, axis=-1, keepdims=True)
        lse = jnp.log(jnp.sum(jnp.exp(mean - mx), axis=-1, keepdims=True)) + mx
        o_ref[...] = mean - lse
    else:
        # .flatten(1): heads packed along the lane axis -> (N_dst, H*F), one
        # lane-dense store instead of per-head masked stores.
        out = jnp.concatenate(head_outs, axis=-1)
        # TODO(synk): activation is ReLU as in the reference script; DGL GATConv
        #             bias / residual / feat_drop / attn_drop left off (0 / False).
        o_ref[...] = jnp.maximum(out, 0.0)


def pallas_gat_layer(h, w_src, w_dst, attn_l, attn_r, adj, *, out_f, n_heads, last_layer):
    n_dst = adj.shape[0]
    hF = n_heads * out_f

    # Pack per-head attention vectors into block-structured matrices so the
    # logits are single MXU contractions over K = H*F (not 8 tiny K=F dots).
    eye = jnp.eye(n_heads, dtype=jnp.float32)
    al_rows = jnp.einsum("hg,hf->hgf", eye, attn_l).reshape(n_heads, hF).astype(jnp.bfloat16)
    ar_cols = jnp.einsum("hf,hg->hfg", attn_r, eye).reshape(hF, n_heads).astype(jnp.bfloat16)

    out_cols = out_f if last_layer else hF
    kernel = functools.partial(_gat_layer_kernel, n_dst=n_dst, n_heads=n_heads,
                               out_f=out_f, last_layer=last_layer)
    vmem = pl.BlockSpec(memory_space=pltpu.MemorySpace.VMEM)
    # TODO(synk): for production sampled-block sizes, add a 'parallel' grid axis
    #             over dst-row tiles (v7x dual TC) and pad N_src/N_dst to 128/8
    #             with scalar-prefetched true sizes; everything fits VMEM here.
    return pl.pallas_call(
        kernel,
        out_shape=jax.ShapeDtypeStruct((n_dst, out_cols), jnp.float32),
        in_specs=[vmem] * 6,
        out_specs=vmem,
    )(h.astype(jnp.float32), w_src.astype(jnp.bfloat16), w_dst.astype(jnp.bfloat16),
      al_rows, ar_cols, adj.astype(jnp.float32))


# ----------------------------------------------------------------------------
# Model glue: GAT forward (matches the PyTorch/DGL GAT.forward)
# ----------------------------------------------------------------------------
def gat_forward(params, adjs, x, n_hidden, n_classes):
    n_layers = len(params)
    h = x
    for l in range(n_layers):
        last = l == n_layers - 1
        p = params[l]
        h = pallas_gat_layer(
            h, p["w_src"], p["w_dst"], p["attn_l"], p["attn_r"], adjs[l],
            out_f=n_classes if last else n_hidden,
            n_heads=NUM_HEADS, last_layer=last)
    return h   # last layer already returns mean-over-heads log_softmax


# ----------------------------------------------------------------------------
# Deterministic parameter / input construction
# ----------------------------------------------------------------------------
def init_gatconv(key, in_f, out_f, heads):
    k1, k2, k3, k4 = jax.random.split(key, 4)
    w_scale = jnp.sqrt(2.0 / (in_f + out_f * heads))
    a_scale = jnp.sqrt(2.0 / (out_f + 1))
    return dict(
        w_src=(w_scale * jax.random.normal(k1, (in_f, heads * out_f))).astype(jnp.float32),
        w_dst=(w_scale * jax.random.normal(k2, (in_f, heads * out_f))).astype(jnp.float32),
        attn_l=(a_scale * jax.random.normal(k3, (heads, out_f))).astype(jnp.float32),
        attn_r=(a_scale * jax.random.normal(k4, (heads, out_f))).astype(jnp.float32),
    )


def make_block_adj(key, n_dst, n_src, p=0.3):
    rnd = jax.random.bernoulli(key, p, (n_dst, n_src)).astype(jnp.float32)
    self_loop = jnp.concatenate(
        [jnp.eye(n_dst, dtype=jnp.float32),
         jnp.zeros((n_dst, n_src - n_dst), jnp.float32)], axis=1)
    return jnp.maximum(rnd, self_loop)             # every dst has >= 1 incoming edge


if __name__ == "__main__":
    in_feats, n_hidden, n_classes, n_layers = 32, 16, 8, 2
    n_src0, n_dst0, n_dst1 = 64, 32, 16            # sampled block sizes

    key = jax.random.PRNGKey(0)
    kx, ka0, ka1, kp0, kp1 = jax.random.split(key, 5)

    x = jax.random.normal(kx, (n_src0, in_feats), jnp.float32)
    adjs = [
        make_block_adj(ka0, n_dst0, n_src0),        # block 0: 64 src -> 32 dst
        make_block_adj(ka1, n_dst1, n_dst0),        # block 1: 32 src -> 16 dst
    ]
    params = [
        init_gatconv(kp0, in_feats, n_hidden, NUM_HEADS),
        init_gatconv(kp1, n_hidden * NUM_HEADS, n_classes, NUM_HEADS),
    ]

    fwd = jax.jit(lambda p, a, xx: gat_forward(p, a, xx, n_hidden, n_classes))
    out = jax.block_until_ready(fwd(params, adjs, x))

    assert out.shape == (n_dst1, n_classes), out.shape
    assert bool(jnp.all(jnp.isfinite(out)))
    # log_softmax rows should (log-)sum to ~0
    assert bool(jnp.allclose(jnp.sum(jnp.exp(out), axis=-1), 1.0, atol=1e-4))
    print("KERNEL_OK")
</pallas_src>

<mosaic_0001>
module attributes {stable_mosaic.version = 11 : i64} {
  func.func @_gat_layer_kernel(%arg0: memref<64x32xf32, #tpu.memory_space<vmem>>, %arg1: memref<32x128xbf16, #tpu.memory_space<vmem>>, %arg2: memref<32x128xbf16, #tpu.memory_space<vmem>>, %arg3: memref<8x128xbf16, #tpu.memory_space<vmem>>, %arg4: memref<128x8xbf16, #tpu.memory_space<vmem>>, %arg5: memref<32x64xf32, #tpu.memory_space<vmem>>, %arg6: memref<32x128xf32, #tpu.memory_space<vmem>>) attributes {dimension_semantics = [], scalar_prefetch = 0 : i64, scratch_operands = 0 : i64, tpu.core_type = #tpu.core_type<tc>} {
    %c0 = arith.constant 0 : index
    %c0_0 = arith.constant 0 : index
    %0 = vector.load %arg0[%c0, %c0_0] : memref<64x32xf32, #tpu.memory_space<vmem>>, vector<64x32xf32>
    %1 = arith.truncf %0 : vector<64x32xf32> to vector<64x32xbf16>
    %c0_1 = arith.constant 0 : index
    %c0_2 = arith.constant 0 : index
    %2 = vector.load %arg1[%c0_1, %c0_2] : memref<32x128xbf16, #tpu.memory_space<vmem>>, vector<32x128xbf16>
    %cst = arith.constant dense<0.000000e+00> : vector<64x128xf32>
    %3 = tpu.matmul %1, %2, %cst {dimension_numbers = #tpu.dot_dimension_numbers<[1], [0], [0], [1], [0, 0, 1, 1], [], []>} : vector<64x32xbf16>, vector<32x128xbf16>, vector<64x128xf32> -> vector<64x128xf32>
    %4 = vector.extract_strided_slice %1 {offsets = [0, 0], sizes = [32, 32], strides = [1, 1]} : vector<64x32xbf16> to vector<32x32xbf16>
    %c0_3 = arith.constant 0 : index
    %c0_4 = arith.constant 0 : index
    %5 = vector.load %arg2[%c0_3, %c0_4] : memref<32x128xbf16, #tpu.memory_space<vmem>>, vector<32x128xbf16>
    %cst_5 = arith.constant dense<0.000000e+00> : vector<32x128xf32>
    %6 = tpu.matmul %4, %5, %cst_5 {dimension_numbers = #tpu.dot_dimension_numbers<[1], [0], [0], [1], [0, 0, 1, 1], [], []>} : vector<32x32xbf16>, vector<32x128xbf16>, vector<32x128xf32> -> vector<32x128xf32>
    %7 = arith.truncf %3 : vector<64x128xf32> to vector<64x128xbf16>
    %8 = arith.truncf %6 : vector<32x128xf32> to vector<32x128xbf16>
    %c0_6 = arith.constant 0 : index
    %c0_7 = arith.constant 0 : index
    %9 = vector.load %arg3[%c0_6, %c0_7] : memref<8x128xbf16, #tpu.memory_space<vmem>>, vector<8x128xbf16>
    %cst_8 = arith.constant dense<0.000000e+00> : vector<8x64xf32>
    %10 = tpu.matmul %9, %7, %cst_8 {dimension_numbers = #tpu.dot_dimension_numbers<[1], [1], [0], [0], [0, 0, 1, 0], [], []>} : vector<8x128xbf16>, vector<64x128xbf16>, vector<8x64xf32> -> vector<8x64xf32>
    %c0_9 = arith.constant 0 : index
    %c0_10 = arith.constant 0 : index
    %11 = vector.load %arg4[%c0_9, %c0_10] : memref<128x8xbf16, #tpu.memory_space<vmem>>, vector<128x8xbf16>
    %cst_11 = arith.constant dense<0.000000e+00> : vector<32x8xf32>
    %12 = tpu.matmul %8, %11, %cst_11 {dimension_numbers = #tpu.dot_dimension_numbers<[1], [0], [0], [1], [0, 0, 1, 1], [], []>} : vector<32x128xbf16>, vector<128x8xbf16>, vector<32x8xf32> -> vector<32x8xf32>
    %c0_12 = arith.constant 0 : index
    %c0_13 = arith.constant 0 : index
    %13 = vector.load %arg5[%c0_12, %c0_13] : memref<32x64xf32, #tpu.memory_space<vmem>>, vector<32x64xf32>
    %cst_14 = arith.constant 0.000000e+00 : f32
    %14 = vector.broadcast %cst_14 : f32 to vector<32x64xf32>
    %15 = arith.cmpf ogt, %13, %14 : vector<32x64xf32>
    %16 = vector.extract_strided_slice %12 {offsets = [0, 0], sizes = [32, 1], strides = [1, 1]} : vector<32x8xf32> to vector<32x1xf32>
    %17 = vector.extract_strided_slice %10 {offsets = [0, 0], sizes = [1, 64], strides = [1, 1]} : vector<8x64xf32> to vector<1x64xf32>
    %18 = vector.broadcast %16 : vector<32x1xf32> to vector<32x64xf32>
    %19 = vector.broadcast %17 : vector<1x64xf32> to vector<32x64xf32>
    %20 = arith.addf %18, %19 : vector<32x64xf32>
    %cst_15 = arith.constant 0.000000e+00 : f32
    %21 = vector.broadcast %cst_15 : f32 to vector<32x64xf32>
    %22 = arith.cmpf ogt, %20, %21 : vector<32x64xf32>
    %cst_16 = arith.constant 2.000000e-01 : f32
    %23 = vector.broadcast %cst_16 : f32 to vector<32x64xf32>
    %24 = arith.mulf %23, %20 : vector<32x64xf32>
    %25 = arith.select %22, %20, %24 : vector<32x64xi1>, vector<32x64xf32>
    %cst_17 = arith.constant -1.000000e+30 : f32
    %26 = vector.broadcast %cst_17 : f32 to vector<32x64xf32>
    %27 = arith.select %15, %25, %26 : vector<32x64xi1>, vector<32x64xf32>
    %cst_18 = arith.constant dense<0xFF800000> : vector<32xf32>
    %28 = vector.multi_reduction <maximumf>, %27, %cst_18 [1] : vector<32x64xf32> to vector<32xf32>
    %29 = vector.shape_cast %28 : vector<32xf32> to vector<32x1xf32>
    %30 = vector.broadcast %29 : vector<32x1xf32> to vector<32x64xf32>
    %31 = arith.subf %27, %30 : vector<32x64xf32>
    %32 = math.exp %31 : vector<32x64xf32>
    %cst_19 = arith.constant 0.000000e+00 : f32
    %33 = vector.broadcast %cst_19 : f32 to vector<32x64xf32>
    %34 = arith.select %15, %32, %33 : vector<32x64xi1>, vector<32x64xf32>
    %cst_20 = arith.constant dense<0.000000e+00> : vector<32xf32>
    %35 = vector.multi_reduction <add>, %34, %cst_20 [1] : vector<32x64xf32> to vector<32xf32>
    %36 = vector.shape_cast %35 : vector<32xf32> to vector<32x1xf32>
    %cst_21 = arith.constant 1.000000e-30 : f32
    %37 = vector.broadcast %cst_21 : f32 to vector<32x1xf32>
    %38 = arith.maximumf %36, %37 : vector<32x1xf32>
    %39 = tpu.reciprocal %38 {approx = true} : vector<32x1xf32> -> vector<32x1xf32>
    %40 = vector.broadcast %39 : vector<32x1xf32> to vector<32x64xf32>
    %41 = arith.mulf %34, %40 : vector<32x64xf32>
    %42 = arith.truncf %41 : vector<32x64xf32> to vector<32x64xbf16>
    %43 = vector.extract_strided_slice %7 {offsets = [0, 0], sizes = [64, 16], strides = [1, 1]} : vector<64x128xbf16> to vector<64x16xbf16>
    %cst_22 = arith.constant dense<0.000000e+00> : vector<32x16xf32>
    %44 = tpu.matmul %42, %43, %cst_22 {dimension_numbers = #tpu.dot_dimension_numbers<[1], [0], [0], [1], [0, 0, 1, 1], [], []>} : vector<32x64xbf16>, vector<64x16xbf16>, vector<32x16xf32> -> vector<32x16xf32>
    %45 = vector.extract_strided_slice %12 {offsets = [0, 1], sizes = [32, 1], strides = [1, 1]} : vector<32x8xf32> to vector<32x1xf32>
    %46 = vector.extract_strided_slice %10 {offsets = [1, 0], sizes = [1, 64], strides = [1, 1]} : vector<8x64xf32> to vector<1x64xf32>
    %47 = vector.broadcast %45 : vector<32x1xf32> to vector<32x64xf32>
    %48 = vector.broadcast %46 : vector<1x64xf32> to vector<32x64xf32>
    %49 = arith.addf %47, %48 : vector<32x64xf32>
    %cst_23 = arith.constant 0.000000e+00 : f32
    %50 = vector.broadcast %cst_23 : f32 to vector<32x64xf32>
    %51 = arith.cmpf ogt, %49, %50 : vector<32x64xf32>
    %cst_24 = arith.constant 2.000000e-01 : f32
    %52 = vector.broadcast %cst_24 : f32 to vector<32x64xf32>
    %53 = arith.mulf %52, %49 : vector<32x64xf32>
    %54 = arith.select %51, %49, %53 : vector<32x64xi1>, vector<32x64xf32>
    %cst_25 = arith.constant -1.000000e+30 : f32
    %55 = vector.broadcast %cst_25 : f32 to vector<32x64xf32>
    %56 = arith.select %15, %54, %55 : vector<32x64xi1>, vector<32x64xf32>
    %cst_26 = arith.constant dense<0xFF800000> : vector<32xf32>
    %57 = vector.multi_reduction <maximumf>, %56, %cst_26 [1] : vector<32x64xf32> to vector<32xf32>
    %58 = vector.shape_cast %57 : vector<32xf32> to vector<32x1xf32>
    %59 = vector.broadcast %58 : vector<32x1xf32> to vector<32x64xf32>
    %60 = arith.subf %56, %59 : vector<32x64xf32>
    %61 = math.exp %60 : vector<32x64xf32>
    %cst_27 = arith.constant 0.000000e+00 : f32
    %62 = vector.broadcast %cst_27 : f32 to vector<32x64xf32>
    %63 = arith.select %15, %61, %62 : vector<32x64xi1>, vector<32x64xf32>
    %cst_28 = arith.constant dense<0.000000e+00> : vector<32xf32>
    %64 = vector.multi_reduction <add>, %63, %cst_28 [1] : vector<32x64xf32> to vector<32xf32>
    %65 = vector.shape_cast %64 : vector<32xf32> to vector<32x1xf32>
    %cst_29 = arith.constant 1.000000e-30 : f32
    %66 = vector.broadcast %cst_29 : f32 to vector<32x1xf32>
    %67 = arith.maximumf %65, %66 : vector<32x1xf32>
    %68 = tpu.reciprocal %67 {approx = true} : vector<32x1xf32> -> vector<32x1xf32>
    %69 = vector.broadcast %68 : vector<32x1xf32> to vector<32x64xf32>
    %70 = arith.mulf %63, %69 : vector<32x64xf32>
    %71 = arith.truncf %70 : vector<32x64xf32> to vector<32x64xbf16>
    %72 = vector.extract_strided_slice %7 {offsets = [0, 16], sizes = [64, 16], strides = [1, 1]} : vector<64x128xbf16> to vector<64x16xbf16>
    %cst_30 = arith.constant dense<0.000000e+00> : vector<32x16xf32>
    %73 = tpu.matmul %71, %72, %cst_30 {dimension_numbers = #tpu.dot_dimension_numbers<[1], [0], [0], [1], [0, 0, 1, 1], [], []>} : vector<32x64xbf16>, vector<64x16xbf16>, vector<32x16xf32> -> vector<32x16xf32>
    %74 = vector.extract_strided_slice %12 {offsets = [0, 2], sizes = [32, 1], strides = [1, 1]} : vector<32x8xf32> to vector<32x1xf32>
    %75 = vector.extract_strided_slice %10 {offsets = [2, 0], sizes = [1, 64], strides = [1, 1]} : vector<8x64xf32> to vector<1x64xf32>
    %76 = vector.broadcast %74 : vector<32x1xf32> to vector<32x64xf32>
    %77 = vector.broadcast %75 : vector<1x64xf32> to vector<32x64xf32>
    %78 = arith.addf %76, %77 : vector<32x64xf32>
    %cst_31 = arith.constant 0.000000e+00 : f32
    %79 = vector.broadcast %cst_31 : f32 to vector<32x64xf32>
    %80 = arith.cmpf ogt, %78, %79 : vector<32x64xf32>
    %cst_32 = arith.constant 2.000000e-01 : f32
    %81 = vector.broadcast %cst_32 : f32 to vector<32x64xf32>
    %82 = arith.mulf %81, %78 : vector<32x64xf32>
    %83 = arith.select %80, %78, %82 : vector<32x64xi1>, vector<32x64xf32>
    %cst_33 = arith.constant -1.000000e+30 : f32
    %84 = vector.broadcast %cst_33 : f32 to vector<32x64xf32>
    %85 = arith.select %15, %83, %84 : vector<32x64xi1>, vector<32x64xf32>
    %cst_34 = arith.constant dense<0xFF800000> : vector<32xf32>
    %86 = vector.multi_reduction <maximumf>, %85, %cst_34 [1] : vector<32x64xf32> to vector<32xf32>
    %87 = vector.shape_cast %86 : vector<32xf32> to vector<32x1xf32>
    %88 = vector.broadcast %87 : vector<32x1xf32> to vector<32x64xf32>
    %89 = arith.subf %85, %88 : vector<32x64xf32>
    %90 = math.exp %89 : vector<32x64xf32>
    %cst_35 = arith.constant 0.000000e+00 : f32
    %91 = vector.broadcast %cst_35 : f32 to vector<32x64xf32>
    %92 = arith.select %15, %90, %91 : vector<32x64xi1>, vector<32x64xf32>
    %cst_36 = arith.constant dense<0.000000e+00> : vector<32xf32>
    %93 = vector.multi_reduction <add>, %92, %cst_36 [1] : vector<32x64xf32> to vector<32xf32>
    %94 = vector.shape_cast %93 : vector<32xf32> to vector<32x1xf32>
    %cst_37 = arith.constant 1.000000e-30 : f32
    %95 = vector.broadcast %cst_37 : f32 to vector<32x1xf32>
    %96 = arith.maximumf %94, %95 : vector<32x1xf32>
    %97 = tpu.reciprocal %96 {approx = true} : vector<32x1xf32> -> vector<32x1xf32>
    %98 = vector.broadcast %97 : vector<32x1xf32> to vector<32x64xf32>
    %99 = arith.mulf %92, %98 : vector<32x64xf32>
    %100 = arith.truncf %99 : vector<32x64xf32> to vector<32x64xbf16>
    %101 = vector.extract_strided_slice %7 {offsets = [0, 32], sizes = [64, 16], strides = [1, 1]} : vector<64x128xbf16> to vector<64x16xbf16>
    %cst_38 = arith.constant dense<0.000000e+00> : vector<32x16xf32>
    %102 = tpu.matmul %100, %101, %cst_38 {dimension_numbers = #tpu.dot_dimension_numbers<[1], [0], [0], [1], [0, 0, 1, 1], [], []>} : vector<32x64xbf16>, vector<64x16xbf16>, vector<32x16xf32> -> vector<32x16xf32>
    %103 = vector.extract_strided_slice %12 {offsets = [0, 3], sizes = [32, 1], strides = [1, 1]} : vector<32x8xf32> to vector<32x1xf32>
    %104 = vector.extract_strided_slice %10 {offsets = [3, 0], sizes = [1, 64], strides = [1, 1]} : vector<8x64xf32> to vector<1x64xf32>
    %105 = vector.broadcast %103 : vector<32x1xf32> to vector<32x64xf32>
    %106 = vector.broadcast %104 : vector<1x64xf32> to vector<32x64xf32>
    %107 = arith.addf %105, %106 : vector<32x64xf32>
    %cst_39 = arith.constant 0.000000e+00 : f32
    %108 = vector.broadcast %cst_39 : f32 to vector<32x64xf32>
    %109 = arith.cmpf ogt, %107, %108 : vector<32x64xf32>
    %cst_40 = arith.constant 2.000000e-01 : f32
    %110 = vector.broadcast %cst_40 : f32 to vector<32x64xf32>
    %111 = arith.mulf %110, %107 : vector<32x64xf32>
    %112 = arith.select %109, %107, %111 : vector<32x64xi1>, vector<32x64xf32>
    %cst_41 = arith.constant -1.000000e+30 : f32
    %113 = vector.broadcast %cst_41 : f32 to vector<32x64xf32>
    %114 = arith.select %15, %112, %113 : vector<32x64xi1>, vector<32x64xf32>
    %cst_42 = arith.constant dense<0xFF800000> : vector<32xf32>
    %115 = vector.multi_reduction <maximumf>, %114, %cst_42 [1] : vector<32x64xf32> to vector<32xf32>
    %116 = vector.shape_cast %115 : vector<32xf32> to vector<32x1xf32>
    %117 = vector.broadcast %116 : vector<32x1xf32> to vector<32x64xf32>
    %118 = arith.subf %114, %117 : vector<32x64xf32>
    %119 = math.exp %118 : vector<32x64xf32>
    %cst_43 = arith.constant 0.000000e+00 : f32
    %120 = vector.broadcast %cst_43 : f32 to vector<32x64xf32>
    %121 = arith.select %15, %119, %120 : vector<32x64xi1>, vector<32x64xf32>
    %cst_44 = arith.constant dense<0.000000e+00> : vector<32xf32>
    %122 = vector.multi_reduction <add>, %121, %cst_44 [1] : vector<32x64xf32> to vector<32xf32>
    %123 = vector.shape_cast %122 : vector<32xf32> to vector<32x1xf32>
    %cst_45 = arith.constant 1.000000e-30 : f32
    %124 = vector.broadcast %cst_45 : f32 to vector<32x1xf32>
    %125 = arith.maximumf %123, %124 : vector<32x1xf32>
    %126 = tpu.reciprocal %125 {approx = true} : vector<32x1xf32> -> vector<32x1xf32>
    %127 = vector.broadcast %126 : vector<32x1xf32> to vector<32x64xf32>
    %128 = arith.mulf %121, %127 : vector<32x64xf32>
    %129 = arith.truncf %128 : vector<32x64xf32> to vector<32x64xbf16>
    %130 = vector.extract_strided_slice %7 {offsets = [0, 48], sizes = [64, 16], strides = [1, 1]} : vector<64x128xbf16> to vector<64x16xbf16>
    %cst_46 = arith.constant dense<0.000000e+00> : vector<32x16xf32>
    %131 = tpu.matmul %129, %130, %cst_46 {dimension_numbers = #tpu.dot_dimension_numbers<[1], [0], [0], [1], [0, 0, 1, 1], [], []>} : vector<32x64xbf16>, vector<64x16xbf16>, vector<32x16xf32> -> vector<32x16xf32>
    %132 = vector.extract_strided_slice %12 {offsets = [0, 4], sizes = [32, 1], strides = [1, 1]} : vector<32x8xf32> to vector<32x1xf32>
    %133 = vector.extract_strided_slice %10 {offsets = [4, 0], sizes = [1, 64], strides = [1, 1]} : vector<8x64xf32> to vector<1x64xf32>
    %134 = vector.broadcast %132 : vector<32x1xf32> to vector<32x64xf32>
    %135 = vector.broadcast %133 : vector<1x64xf32> to vector<32x64xf32>
    %136 = arith.addf %134, %135 : vector<32x64xf32>
    %cst_47 = arith.constant 0.000000e+00 : f32
    %137 = vector.broadcast %cst_47 : f32 to vector<32x64xf32>
    %138 = arith.cmpf ogt, %136, %137 : vector<32x64xf32>
    %cst_48 = arith.constant 2.000000e-01 : f32
    %139 = vector.broadcast %cst_48 : f32 to vector<32x64xf32>
    %140 = arith.mulf %139, %136 : vector<32x64xf32>
    %141 = arith.select %138, %136, %140 : vector<32x64xi1>, vector<32x64xf32>
    %cst_49 = arith.constant -1.000000e+30 : f32
    %142 = vector.broadcast %cst_49 : f32 to vector<32x64xf32>
    %143 = arith.select %15, %141, %142 : vector<32x64xi1>, vector<32x64xf32>
    %cst_50 = arith.constant dense<0xFF800000> : vector<32xf32>
    %144 = vector.multi_reduction <maximumf>, %143, %cst_50 [1] : vector<32x64xf32> to vector<32xf32>
    %145 = vector.shape_cast %144 : vector<32xf32> to vector<32x1xf32>
    %146 = vector.broadcast %145 : vector<32x1xf32> to vector<32x64xf32>
    %147 = arith.subf %143, %146 : vector<32x64xf32>
    %148 = math.exp %147 : vector<32x64xf32>
    %cst_51 = arith.constant 0.000000e+00 : f32
    %149 = vector.broadcast %cst_51 : f32 to vector<32x64xf32>
    %150 = arith.select %15, %148, %149 : vector<32x64xi1>, vector<32x64xf32>
    %cst_52 = arith.constant dense<0.000000e+00> : vector<32xf32>
    %151 = vector.multi_reduction <add>, %150, %cst_52 [1] : vector<32x64xf32> to vector<32xf32>
    %152 = vector.shape_cast %151 : vector<32xf32> to vector<32x1xf32>
    %cst_53 = arith.constant 1.000000e-30 : f32
    %153 = vector.broadcast %cst_53 : f32 to vector<32x1xf32>
    %154 = arith.maximumf %152, %153 : vector<32x1xf32>
    %155 = tpu.reciprocal %154 {approx = true} : vector<32x1xf32> -> vector<32x1xf32>
    %156 = vector.broadcast %155 : vector<32x1xf32> to vector<32x64xf32>
    %157 = arith.mulf %150, %156 : vector<32x64xf32>
    %158 = arith.truncf %157 : vector<32x64xf32> to vector<32x64xbf16>
    %159 = vector.extract_strided_slice %7 {offsets = [0, 64], sizes = [64, 16], strides = [1, 1]} : vector<64x128xbf16> to vector<64x16xbf16>
    %cst_54 = arith.constant dense<0.000000e+00> : vector<32x16xf32>
    %160 = tpu.matmul %158, %159, %cst_54 {dimension_numbers = #tpu.dot_dimension_numbers<[1], [0], [0], [1], [0, 0, 1, 1], [], []>} : vector<32x64xbf16>, vector<64x16xbf16>, vector<32x16xf32> -> vector<32x16xf32>
    %161 = vector.extract_strided_slice %12 {offsets = [0, 5], sizes = [32, 1], strides = [1, 1]} : vector<32x8xf32> to vector<32x1xf32>
    %162 = vector.extract_strided_slice %10 {offsets = [5, 0], sizes = [1, 64], strides = [1, 1]} : vector<8x64xf32> to vector<1x64xf32>
    %163 = vector.broadcast %161 : vector<32x1xf32> to vector<32x64xf32>
    %164 = vector.broadcast %162 : vector<1x64xf32> to vector<32x64xf32>
    %165 = arith.addf %163, %164 : vector<32x64xf32>
    %cst_55 = arith.constant 0.000000e+00 : f32
    %166 = vector.broadcast %cst_55 : f32 to vector<32x64xf32>
    %167 = arith.cmpf ogt, %165, %166 : vector<32x64xf32>
    %cst_56 = arith.constant 2.000000e-01 : f32
    %168 = vector.broadcast %cst_56 : f32 to vector<32x64xf32>
    %169 = arith.mulf %168, %165 : vector<32x64xf32>
    %170 = arith.select %167, %165, %169 : vector<32x64xi1>, vector<32x64xf32>
    %cst_57 = arith.constant -1.000000e+30 : f32
    %171 = vector.broadcast %cst_57 : f32 to vector<32x64xf32>
    %172 = arith.select %15, %170, %171 : vector<32x64xi1>, vector<32x64xf32>
    %cst_58 = arith.constant dense<0xFF800000> : vector<32xf32>
    %173 = vector.multi_reduction <maximumf>, %172, %cst_58 [1] : vector<32x64xf32> to vector<32xf32>
    %174 = vector.shape_cast %173 : vector<32xf32> to vector<32x1xf32>
    %175 = vector.broadcast %174 : vector<32x1xf32> to vector<32x64xf32>
    %176 = arith.subf %172, %175 : vector<32x64xf32>
    %177 = math.exp %176 : vector<32x64xf32>
    %cst_59 = arith.constant 0.000000e+00 : f32
    %178 = vector.broadcast %cst_59 : f32 to vector<32x64xf32>
    %179 = arith.select %15, %177, %178 : vector<32x64xi1>, vector<32x64xf32>
    %cst_60 = arith.constant dense<0.000000e+00> : vector<32xf32>
    %180 = vector.multi_reduction <add>, %179, %cst_60 [1] : vector<32x64xf32> to vector<32xf32>
    %181 = vector.shape_cast %180 : vector<32xf32> to vector<32x1xf32>
    %cst_61 = arith.constant 1.000000e-30 : f32
    %182 = vector.broadcast %cst_61 : f32 to vector<32x1xf32>
    %183 = arith.maximumf %181, %182 : vector<32x1xf32>
    %184 = tpu.reciprocal %183 {approx = true} : vector<32x1xf32> -> vector<32x1xf32>
    %185 = vector.broadcast %184 : vector<32x1xf32> to vector<32x64xf32>
    %186 = arith.mulf %179, %185 : vector<32x64xf32>
    %187 = arith.truncf %186 : vector<32x64xf32> to vector<32x64xbf16>
    %188 = vector.extract_strided_slice %7 {offsets = [0, 80], sizes = [64, 16], strides = [1, 1]} : vector<64x128xbf16> to vector<64x16xbf16>
    %cst_62 = arith.constant dense<0.000000e+00> : vector<32x16xf32>
    %189 = tpu.matmul %187, %188, %cst_62 {dimension_numbers = #tpu.dot_dimension_numbers<[1], [0], [0], [1], [0, 0, 1, 1], [], []>} : vector<32x64xbf16>, vector<64x16xbf16>, vector<32x16xf32> -> vector<32x16xf32>
    %190 = vector.extract_strided_slice %12 {offsets = [0, 6], sizes = [32, 1], strides = [1, 1]} : vector<32x8xf32> to vector<32x1xf32>
    %191 = vector.extract_strided_slice %10 {offsets = [6, 0], sizes = [1, 64], strides = [1, 1]} : vector<8x64xf32> to vector<1x64xf32>
    %192 = vector.broadcast %190 : vector<32x1xf32> to vector<32x64xf32>
    %193 = vector.broadcast %191 : vector<1x64xf32> to vector<32x64xf32>
    %194 = arith.addf %192, %193 : vector<32x64xf32>
    %cst_63 = arith.constant 0.000000e+00 : f32
    %195 = vector.broadcast %cst_63 : f32 to vector<32x64xf32>
    %196 = arith.cmpf ogt, %194, %195 : vector<32x64xf32>
    %cst_64 = arith.constant 2.000000e-01 : f32
    %197 = vector.broadcast %cst_64 : f32 to vector<32x64xf32>
    %198 = arith.mulf %197, %194 : vector<32x64xf32>
    %199 = arith.select %196, %194, %198 : vector<32x64xi1>, vector<32x64xf32>
    %cst_65 = arith.constant -1.000000e+30 : f32
    %200 = vector.broadcast %cst_65 : f32 to vector<32x64xf32>
    %201 = arith.select %15, %199, %200 : vector<32x64xi1>, vector<32x64xf32>
    %cst_66 = arith.constant dense<0xFF800000> : vector<32xf32>
    %202 = vector.multi_reduction <maximumf>, %201, %cst_66 [1] : vector<32x64xf32> to vector<32xf32>
    %203 = vector.shape_cast %202 : vector<32xf32> to vector<32x1xf32>
    %204 = vector.broadcast %203 : vector<32x1xf32> to vector<32x64xf32>
    %205 = arith.subf %201, %204 : vector<32x64xf32>
    %206 = math.exp %205 : vector<32x64xf32>
    %cst_67 = arith.constant 0.000000e+00 : f32
    %207 = vector.broadcast %cst_67 : f32 to vector<32x64xf32>
    %208 = arith.select %15, %206, %207 : vector<32x64xi1>, vector<32x64xf32>
    %cst_68 = arith.constant dense<0.000000e+00> : vector<32xf32>
    %209 = vector.multi_reduction <add>, %208, %cst_68 [1] : vector<32x64xf32> to vector<32xf32>
    %210 = vector.shape_cast %209 : vector<32xf32> to vector<32x1xf32>
    %cst_69 = arith.constant 1.000000e-30 : f32
    %211 = vector.broadcast %cst_69 : f32 to vector<32x1xf32>
    %212 = arith.maximumf %210, %211 : vector<32x1xf32>
    %213 = tpu.reciprocal %212 {approx = true} : vector<32x1xf32> -> vector<32x1xf32>
    %214 = vector.broadcast %213 : vector<32x1xf32> to vector<32x64xf32>
    %215 = arith.mulf %208, %214 : vector<32x64xf32>
    %216 = arith.truncf %215 : vector<32x64xf32> to vector<32x64xbf16>
    %217 = vector.extract_strided_slice %7 {offsets = [0, 96], sizes = [64, 16], strides = [1, 1]} : vector<64x128xbf16> to vector<64x16xbf16>
    %cst_70 = arith.constant dense<0.000000e+00> : vector<32x16xf32>
    %218 = tpu.matmul %216, %217, %cst_70 {dimension_numbers = #tpu.dot_dimension_numbers<[1], [0], [0], [1], [0, 0, 1, 1], [], []>} : vector<32x64xbf16>, vector<64x16xbf16>, vector<32x16xf32> -> vector<32x16xf32>
    %219 = vector.extract_strided_slice %12 {offsets = [0, 7], sizes = [32, 1], strides = [1, 1]} : vector<32x8xf32> to vector<32x1xf32>
    %220 = vector.extract_strided_slice %10 {offsets = [7, 0], sizes = [1, 64], strides = [1, 1]} : vector<8x64xf32> to vector<1x64xf32>
    %221 = vector.broadcast %219 : vector<32x1xf32> to vector<32x64xf32>
    %222 = vector.broadcast %220 : vector<1x64xf32> to vector<32x64xf32>
    %223 = arith.addf %221, %222 : vector<32x64xf32>
    %cst_71 = arith.constant 0.000000e+00 : f32
    %224 = vector.broadcast %cst_71 : f32 to vector<32x64xf32>
    %225 = arith.cmpf ogt, %223, %224 : vector<32x64xf32>
    %cst_72 = arith.constant 2.000000e-01 : f32
    %226 = vector.broadcast %cst_72 : f32 to vector<32x64xf32>
    %227 = arith.mulf %226, %223 : vector<32x64xf32>
    %228 = arith.select %225, %223, %227 : vector<32x64xi1>, vector<32x64xf32>
    %cst_73 = arith.constant -1.000000e+30 : f32
    %229 = vector.broadcast %cst_73 : f32 to vector<32x64xf32>
    %230 = arith.select %15, %228, %229 : vector<32x64xi1>, vector<32x64xf32>
    %cst_74 = arith.constant dense<0xFF800000> : vector<32xf32>
    %231 = vector.multi_reduction <maximumf>, %230, %cst_74 [1] : vector<32x64xf32> to vector<32xf32>
    %232 = vector.shape_cast %231 : vector<32xf32> to vector<32x1xf32>
    %233 = vector.broadcast %232 : vector<32x1xf32> to vector<32x64xf32>
    %234 = arith.subf %230, %233 : vector<32x64xf32>
    %235 = math.exp %234 : vector<32x64xf32>
    %cst_75 = arith.constant 0.000000e+00 : f32
    %236 = vector.broadcast %cst_75 : f32 to vector<32x64xf32>
    %237 = arith.select %15, %235, %236 : vector<32x64xi1>, vector<32x64xf32>
    %cst_76 = arith.constant dense<0.000000e+00> : vector<32xf32>
    %238 = vector.multi_reduction <add>, %237, %cst_76 [1] : vector<32x64xf32> to vector<32xf32>
    %239 = vector.shape_cast %238 : vector<32xf32> to vector<32x1xf32>
    %cst_77 = arith.constant 1.000000e-30 : f32
    %240 = vector.broadcast %cst_77 : f32 to vector<32x1xf32>
    %241 = arith.maximumf %239, %240 : vector<32x1xf32>
    %242 = tpu.reciprocal %241 {approx = true} : vector<32x1xf32> -> vector<32x1xf32>
    %243 = vector.broadcast %242 : vector<32x1xf32> to vector<32x64xf32>
    %244 = arith.mulf %237, %243 : vector<32x64xf32>
    %245 = arith.truncf %244 : vector<32x64xf32> to vector<32x64xbf16>
    %246 = vector.extract_strided_slice %7 {offsets = [0, 112], sizes = [64, 16], strides = [1, 1]} : vector<64x128xbf16> to vector<64x16xbf16>
    %cst_78 = arith.constant dense<0.000000e+00> : vector<32x16xf32>
    %247 = tpu.matmul %245, %246, %cst_78 {dimension_numbers = #tpu.dot_dimension_numbers<[1], [0], [0], [1], [0, 0, 1, 1], [], []>} : vector<32x64xbf16>, vector<64x16xbf16>, vector<32x16xf32> -> vector<32x16xf32>
    %248 = tpu.concatenate %44, %73, %102, %131, %160, %189, %218, %247 in 1 : vector<32x16xf32>, vector<32x16xf32>, vector<32x16xf32>, vector<32x16xf32>, vector<32x16xf32>, vector<32x16xf32>, vector<32x16xf32>, vector<32x16xf32> -> vector<32x128xf32>
    %cst_79 = arith.constant 0.000000e+00 : f32
    %249 = vector.broadcast %cst_79 : f32 to vector<32x128xf32>
    %250 = arith.maximumf %248, %249 : vector<32x128xf32>
    %c0_80 = arith.constant 0 : index
    %c0_81 = arith.constant 0 : index
    %251 = vector.load %arg6[%c0_80, %c0_81] : memref<32x128xf32, #tpu.memory_space<vmem>>, vector<32x128xf32>
    tpu.vector_store %arg6[%c0_80, %c0_81], %250 {strides = array<i32>} : memref<32x128xf32, #tpu.memory_space<vmem>>, vector<32x128xf32>,
    return
  }
}

module attributes {stable_mosaic.version = 11 : i64} {
  func.func @_gat_layer_kernel(%arg0: memref<32x128xf32, #tpu.memory_space<vmem>>, %arg1: memref<128x64xbf16, #tpu.memory_space<vmem>>, %arg2: memref<128x64xbf16, #tpu.memory_space<vmem>>, %arg3: memref<8x64xbf16, #tpu.memory_space<vmem>>, %arg4: memref<64x8xbf16, #tpu.memory_space<vmem>>, %arg5: memref<16x32xf32, #tpu.memory_space<vmem>>, %arg6: memref<16x8xf32, #tpu.memory_space<vmem>>) attributes {dimension_semantics = [], scalar_prefetch = 0 : i64, scratch_operands = 0 : i64, tpu.core_type = #tpu.core_type<tc>} {
    %c0 = arith.constant 0 : index
    %c0_0 = arith.constant 0 : index
    %0 = vector.load %arg0[%c0, %c0_0] : memref<32x128xf32, #tpu.memory_space<vmem>>, vector<32x128xf32>
    %1 = arith.truncf %0 : vector<32x128xf32> to vector<32x128xbf16>
    %c0_1 = arith.constant 0 : index
    %c0_2 = arith.constant 0 : index
    %2 = vector.load %arg1[%c0_1, %c0_2] : memref<128x64xbf16, #tpu.memory_space<vmem>>, vector<128x64xbf16>
    %cst = arith.constant dense<0.000000e+00> : vector<32x64xf32>
    %3 = tpu.matmul %1, %2, %cst {dimension_numbers = #tpu.dot_dimension_numbers<[1], [0], [0], [1], [0, 0, 1, 1], [], []>} : vector<32x128xbf16>, vector<128x64xbf16>, vector<32x64xf32> -> vector<32x64xf32>
    %4 = vector.extract_strided_slice %1 {offsets = [0, 0], sizes = [16, 128], strides = [1, 1]} : vector<32x128xbf16> to vector<16x128xbf16>
    %c0_3 = arith.constant 0 : index
    %c0_4 = arith.constant 0 : index
    %5 = vector.load %arg2[%c0_3, %c0_4] : memref<128x64xbf16, #tpu.memory_space<vmem>>, vector<128x64xbf16>
    %cst_5 = arith.constant dense<0.000000e+00> : vector<16x64xf32>
    %6 = tpu.matmul %4, %5, %cst_5 {dimension_numbers = #tpu.dot_dimension_numbers<[1], [0], [0], [1], [0, 0, 1, 1], [], []>} : vector<16x128xbf16>, vector<128x64xbf16>, vector<16x64xf32> -> vector<16x64xf32>
    %7 = arith.truncf %3 : vector<32x64xf32> to vector<32x64xbf16>
    %8 = arith.truncf %6 : vector<16x64xf32> to vector<16x64xbf16>
    %c0_6 = arith.constant 0 : index
    %c0_7 = arith.constant 0 : index
    %9 = vector.load %arg3[%c0_6, %c0_7] : memref<8x64xbf16, #tpu.memory_space<vmem>>, vector<8x64xbf16>
    %cst_8 = arith.constant dense<0.000000e+00> : vector<8x32xf32>
    %10 = tpu.matmul %9, %7, %cst_8 {dimension_numbers = #tpu.dot_dimension_numbers<[1], [1], [0], [0], [0, 0, 1, 0], [], []>} : vector<8x64xbf16>, vector<32x64xbf16>, vector<8x32xf32> -> vector<8x32xf32>
    %c0_9 = arith.constant 0 : index
    %c0_10 = arith.constant 0 : index
    %11 = vector.load %arg4[%c0_9, %c0_10] : memref<64x8xbf16, #tpu.memory_space<vmem>>, vector<64x8xbf16>
    %cst_11 = arith.constant dense<0.000000e+00> : vector<16x8xf32>
    %12 = tpu.matmul %8, %11, %cst_11 {dimension_numbers = #tpu.dot_dimension_numbers<[1], [0], [0], [1], [0, 0, 1, 1], [], []>} : vector<16x64xbf16>, vector<64x8xbf16>, vector<16x8xf32> -> vector<16x8xf32>
    %c0_12 = arith.constant 0 : index
    %c0_13 = arith.constant 0 : index
    %13 = vector.load %arg5[%c0_12, %c0_13] : memref<16x32xf32, #tpu.memory_space<vmem>>, vector<16x32xf32>
    %cst_14 = arith.constant 0.000000e+00 : f32
    %14 = vector.broadcast %cst_14 : f32 to vector<16x32xf32>
    %15 = arith.cmpf ogt, %13, %14 : vector<16x32xf32>
    %16 = vector.extract_strided_slice %12 {offsets = [0, 0], sizes = [16, 1], strides = [1, 1]} : vector<16x8xf32> to vector<16x1xf32>
    %17 = vector.extract_strided_slice %10 {offsets = [0, 0], sizes = [1, 32], strides = [1, 1]} : vector<8x32xf32> to vector<1x32xf32>
    %18 = vector.broadcast %16 : vector<16x1xf32> to vector<16x32xf32>
    %19 = vector.broadcast %17 : vector<1x32xf32> to vector<16x32xf32>
    %20 = arith.addf %18, %19 : vector<16x32xf32>
    %cst_15 = arith.constant 0.000000e+00 : f32
    %21 = vector.broadcast %cst_15 : f32 to vector<16x32xf32>
    %22 = arith.cmpf ogt, %20, %21 : vector<16x32xf32>
    %cst_16 = arith.constant 2.000000e-01 : f32
    %23 = vector.broadcast %cst_16 : f32 to vector<16x32xf32>
    %24 = arith.mulf %23, %20 : vector<16x32xf32>
    %25 = arith.select %22, %20, %24 : vector<16x32xi1>, vector<16x32xf32>
    %cst_17 = arith.constant -1.000000e+30 : f32
    %26 = vector.broadcast %cst_17 : f32 to vector<16x32xf32>
    %27 = arith.select %15, %25, %26 : vector<16x32xi1>, vector<16x32xf32>
    %cst_18 = arith.constant dense<0xFF800000> : vector<16xf32>
    %28 = vector.multi_reduction <maximumf>, %27, %cst_18 [1] : vector<16x32xf32> to vector<16xf32>
    %29 = vector.shape_cast %28 : vector<16xf32> to vector<16x1xf32>
    %30 = vector.broadcast %29 : vector<16x1xf32> to vector<16x32xf32>
    %31 = arith.subf %27, %30 : vector<16x32xf32>
    %32 = math.exp %31 : vector<16x32xf32>
    %cst_19 = arith.constant 0.000000e+00 : f32
    %33 = vector.broadcast %cst_19 : f32 to vector<16x32xf32>
    %34 = arith.select %15, %32, %33 : vector<16x32xi1>, vector<16x32xf32>
    %cst_20 = arith.constant dense<0.000000e+00> : vector<16xf32>
    %35 = vector.multi_reduction <add>, %34, %cst_20 [1] : vector<16x32xf32> to vector<16xf32>
    %36 = vector.shape_cast %35 : vector<16xf32> to vector<16x1xf32>
    %cst_21 = arith.constant 1.000000e-30 : f32
    %37 = vector.broadcast %cst_21 : f32 to vector<16x1xf32>
    %38 = arith.maximumf %36, %37 : vector<16x1xf32>
    %39 = tpu.reciprocal %38 {approx = true} : vector<16x1xf32> -> vector<16x1xf32>
    %40 = vector.broadcast %39 : vector<16x1xf32> to vector<16x32xf32>
    %41 = arith.mulf %34, %40 : vector<16x32xf32>
    %42 = arith.truncf %41 : vector<16x32xf32> to vector<16x32xbf16>
    %43 = vector.extract_strided_slice %7 {offsets = [0, 0], sizes = [32, 8], strides = [1, 1]} : vector<32x64xbf16> to vector<32x8xbf16>
    %cst_22 = arith.constant dense<0.000000e+00> : vector<16x8xf32>
    %44 = tpu.matmul %42, %43, %cst_22 {dimension_numbers = #tpu.dot_dimension_numbers<[1], [0], [0], [1], [0, 0, 1, 1], [], []>} : vector<16x32xbf16>, vector<32x8xbf16>, vector<16x8xf32> -> vector<16x8xf32>
    %45 = vector.extract_strided_slice %12 {offsets = [0, 1], sizes = [16, 1], strides = [1, 1]} : vector<16x8xf32> to vector<16x1xf32>
    %46 = vector.extract_strided_slice %10 {offsets = [1, 0], sizes = [1, 32], strides = [1, 1]} : vector<8x32xf32> to vector<1x32xf32>
    %47 = vector.broadcast %45 : vector<16x1xf32> to vector<16x32xf32>
    %48 = vector.broadcast %46 : vector<1x32xf32> to vector<16x32xf32>
    %49 = arith.addf %47, %48 : vector<16x32xf32>
    %cst_23 = arith.constant 0.000000e+00 : f32
    %50 = vector.broadcast %cst_23 : f32 to vector<16x32xf32>
    %51 = arith.cmpf ogt, %49, %50 : vector<16x32xf32>
    %cst_24 = arith.constant 2.000000e-01 : f32
    %52 = vector.broadcast %cst_24 : f32 to vector<16x32xf32>
    %53 = arith.mulf %52, %49 : vector<16x32xf32>
    %54 = arith.select %51, %49, %53 : vector<16x32xi1>, vector<16x32xf32>
    %cst_25 = arith.constant -1.000000e+30 : f32
    %55 = vector.broadcast %cst_25 : f32 to vector<16x32xf32>
    %56 = arith.select %15, %54, %55 : vector<16x32xi1>, vector<16x32xf32>
    %cst_26 = arith.constant dense<0xFF800000> : vector<16xf32>
    %57 = vector.multi_reduction <maximumf>, %56, %cst_26 [1] : vector<16x32xf32> to vector<16xf32>
    %58 = vector.shape_cast %57 : vector<16xf32> to vector<16x1xf32>
    %59 = vector.broadcast %58 : vector<16x1xf32> to vector<16x32xf32>
    %60 = arith.subf %56, %59 : vector<16x32xf32>
    %61 = math.exp %60 : vector<16x32xf32>
    %cst_27 = arith.constant 0.000000e+00 : f32
    %62 = vector.broadcast %cst_27 : f32 to vector<16x32xf32>
    %63 = arith.select %15, %61, %62 : vector<16x32xi1>, vector<16x32xf32>
    %cst_28 = arith.constant dense<0.000000e+00> : vector<16xf32>
    %64 = vector.multi_reduction <add>, %63, %cst_28 [1] : vector<16x32xf32> to vector<16xf32>
    %65 = vector.shape_cast %64 : vector<16xf32> to vector<16x1xf32>
    %cst_29 = arith.constant 1.000000e-30 : f32
    %66 = vector.broadcast %cst_29 : f32 to vector<16x1xf32>
    %67 = arith.maximumf %65, %66 : vector<16x1xf32>
    %68 = tpu.reciprocal %67 {approx = true} : vector<16x1xf32> -> vector<16x1xf32>
    %69 = vector.broadcast %68 : vector<16x1xf32> to vector<16x32xf32>
    %70 = arith.mulf %63, %69 : vector<16x32xf32>
    %71 = arith.truncf %70 : vector<16x32xf32> to vector<16x32xbf16>
    %72 = vector.extract_strided_slice %7 {offsets = [0, 8], sizes = [32, 8], strides = [1, 1]} : vector<32x64xbf16> to vector<32x8xbf16>
    %cst_30 = arith.constant dense<0.000000e+00> : vector<16x8xf32>
    %73 = tpu.matmul %71, %72, %cst_30 {dimension_numbers = #tpu.dot_dimension_numbers<[1], [0], [0], [1], [0, 0, 1, 1], [], []>} : vector<16x32xbf16>, vector<32x8xbf16>, vector<16x8xf32> -> vector<16x8xf32>
    %74 = arith.addf %44, %73 : vector<16x8xf32>
    %75 = vector.extract_strided_slice %12 {offsets = [0, 2], sizes = [16, 1], strides = [1, 1]} : vector<16x8xf32> to vector<16x1xf32>
    %76 = vector.extract_strided_slice %10 {offsets = [2, 0], sizes = [1, 32], strides = [1, 1]} : vector<8x32xf32> to vector<1x32xf32>
    %77 = vector.broadcast %75 : vector<16x1xf32> to vector<16x32xf32>
    %78 = vector.broadcast %76 : vector<1x32xf32> to vector<16x32xf32>
    %79 = arith.addf %77, %78 : vector<16x32xf32>
    %cst_31 = arith.constant 0.000000e+00 : f32
    %80 = vector.broadcast %cst_31 : f32 to vector<16x32xf32>
    %81 = arith.cmpf ogt, %79, %80 : vector<16x32xf32>
    %cst_32 = arith.constant 2.000000e-01 : f32
    %82 = vector.broadcast %cst_32 : f32 to vector<16x32xf32>
    %83 = arith.mulf %82, %79 : vector<16x32xf32>
    %84 = arith.select %81, %79, %83 : vector<16x32xi1>, vector<16x32xf32>
    %cst_33 = arith.constant -1.000000e+30 : f32
    %85 = vector.broadcast %cst_33 : f32 to vector<16x32xf32>
    %86 = arith.select %15, %84, %85 : vector<16x32xi1>, vector<16x32xf32>
    %cst_34 = arith.constant dense<0xFF800000> : vector<16xf32>
    %87 = vector.multi_reduction <maximumf>, %86, %cst_34 [1] : vector<16x32xf32> to vector<16xf32>
    %88 = vector.shape_cast %87 : vector<16xf32> to vector<16x1xf32>
    %89 = vector.broadcast %88 : vector<16x1xf32> to vector<16x32xf32>
    %90 = arith.subf %86, %89 : vector<16x32xf32>
    %91 = math.exp %90 : vector<16x32xf32>
    %cst_35 = arith.constant 0.000000e+00 : f32
    %92 = vector.broadcast %cst_35 : f32 to vector<16x32xf32>
    %93 = arith.select %15, %91, %92 : vector<16x32xi1>, vector<16x32xf32>
    %cst_36 = arith.constant dense<0.000000e+00> : vector<16xf32>
    %94 = vector.multi_reduction <add>, %93, %cst_36 [1] : vector<16x32xf32> to vector<16xf32>
    %95 = vector.shape_cast %94 : vector<16xf32> to vector<16x1xf32>
    %cst_37 = arith.constant 1.000000e-30 : f32
    %96 = vector.broadcast %cst_37 : f32 to vector<16x1xf32>
    %97 = arith.maximumf %95, %96 : vector<16x1xf32>
    %98 = tpu.reciprocal %97 {approx = true} : vector<16x1xf32> -> vector<16x1xf32>
    %99 = vector.broadcast %98 : vector<16x1xf32> to vector<16x32xf32>
    %100 = arith.mulf %93, %99 : vector<16x32xf32>
    %101 = arith.truncf %100 : vector<16x32xf32> to vector<16x32xbf16>
    %102 = vector.extract_strided_slice %7 {offsets = [0, 16], sizes = [32, 8], strides = [1, 1]} : vector<32x64xbf16> to vector<32x8xbf16>
    %cst_38 = arith.constant dense<0.000000e+00> : vector<16x8xf32>
    %103 = tpu.matmul %101, %102, %cst_38 {dimension_numbers = #tpu.dot_dimension_numbers<[1], [0], [0], [1], [0, 0, 1, 1], [], []>} : vector<16x32xbf16>, vector<32x8xbf16>, vector<16x8xf32> -> vector<16x8xf32>
    %104 = arith.addf %74, %103 : vector<16x8xf32>
    %105 = vector.extract_strided_slice %12 {offsets = [0, 3], sizes = [16, 1], strides = [1, 1]} : vector<16x8xf32> to vector<16x1xf32>
    %106 = vector.extract_strided_slice %10 {offsets = [3, 0], sizes = [1, 32], strides = [1, 1]} : vector<8x32xf32> to vector<1x32xf32>
    %107 = vector.broadcast %105 : vector<16x1xf32> to vector<16x32xf32>
    %108 = vector.broadcast %106 : vector<1x32xf32> to vector<16x32xf32>
    %109 = arith.addf %107, %108 : vector<16x32xf32>
    %cst_39 = arith.constant 0.000000e+00 : f32
    %110 = vector.broadcast %cst_39 : f32 to vector<16x32xf32>
    %111 = arith.cmpf ogt, %109, %110 : vector<16x32xf32>
    %cst_40 = arith.constant 2.000000e-01 : f32
    %112 = vector.broadcast %cst_40 : f32 to vector<16x32xf32>
    %113 = arith.mulf %112, %109 : vector<16x32xf32>
    %114 = arith.select %111, %109, %113 : vector<16x32xi1>, vector<16x32xf32>
    %cst_41 = arith.constant -1.000000e+30 : f32
    %115 = vector.broadcast %cst_41 : f32 to vector<16x32xf32>
    %116 = arith.select %15, %114, %115 : vector<16x32xi1>, vector<16x32xf32>
    %cst_42 = arith.constant dense<0xFF800000> : vector<16xf32>
    %117 = vector.multi_reduction <maximumf>, %116, %cst_42 [1] : vector<16x32xf32> to vector<16xf32>
    %118 = vector.shape_cast %117 : vector<16xf32> to vector<16x1xf32>
    %119 = vector.broadcast %118 : vector<16x1xf32> to vector<16x32xf32>
    %120 = arith.subf %116, %119 : vector<16x32xf32>
    %121 = math.exp %120 : vector<16x32xf32>
    %cst_43 = arith.constant 0.000000e+00 : f32
    %122 = vector.broadcast %cst_43 : f32 to vector<16x32xf32>
    %123 = arith.select %15, %121, %122 : vector<16x32xi1>, vector<16x32xf32>
    %cst_44 = arith.constant dense<0.000000e+00> : vector<16xf32>
    %124 = vector.multi_reduction <add>, %123, %cst_44 [1] : vector<16x32xf32> to vector<16xf32>
    %125 = vector.shape_cast %124 : vector<16xf32> to vector<16x1xf32>
    %cst_45 = arith.constant 1.000000e-30 : f32
    %126 = vector.broadcast %cst_45 : f32 to vector<16x1xf32>
    %127 = arith.maximumf %125, %126 : vector<16x1xf32>
    %128 = tpu.reciprocal %127 {approx = true} : vector<16x1xf32> -> vector<16x1xf32>
    %129 = vector.broadcast %128 : vector<16x1xf32> to vector<16x32xf32>
    %130 = arith.mulf %123, %129 : vector<16x32xf32>
    %131 = arith.truncf %130 : vector<16x32xf32> to vector<16x32xbf16>
    %132 = vector.extract_strided_slice %7 {offsets = [0, 24], sizes = [32, 8], strides = [1, 1]} : vector<32x64xbf16> to vector<32x8xbf16>
    %cst_46 = arith.constant dense<0.000000e+00> : vector<16x8xf32>
    %133 = tpu.matmul %131, %132, %cst_46 {dimension_numbers = #tpu.dot_dimension_numbers<[1], [0], [0], [1], [0, 0, 1, 1], [], []>} : vector<16x32xbf16>, vector<32x8xbf16>, vector<16x8xf32> -> vector<16x8xf32>
    %134 = arith.addf %104, %133 : vector<16x8xf32>
    %135 = vector.extract_strided_slice %12 {offsets = [0, 4], sizes = [16, 1], strides = [1, 1]} : vector<16x8xf32> to vector<16x1xf32>
    %136 = vector.extract_strided_slice %10 {offsets = [4, 0], sizes = [1, 32], strides = [1, 1]} : vector<8x32xf32> to vector<1x32xf32>
    %137 = vector.broadcast %135 : vector<16x1xf32> to vector<16x32xf32>
    %138 = vector.broadcast %136 : vector<1x32xf32> to vector<16x32xf32>
    %139 = arith.addf %137, %138 : vector<16x32xf32>
    %cst_47 = arith.constant 0.000000e+00 : f32
    %140 = vector.broadcast %cst_47 : f32 to vector<16x32xf32>
    %141 = arith.cmpf ogt, %139, %140 : vector<16x32xf32>
    %cst_48 = arith.constant 2.000000e-01 : f32
    %142 = vector.broadcast %cst_48 : f32 to vector<16x32xf32>
    %143 = arith.mulf %142, %139 : vector<16x32xf32>
    %144 = arith.select %141, %139, %143 : vector<16x32xi1>, vector<16x32xf32>
    %cst_49 = arith.constant -1.000000e+30 : f32
    %145 = vector.broadcast %cst_49 : f32 to vector<16x32xf32>
    %146 = arith.select %15, %144, %145 : vector<16x32xi1>, vector<16x32xf32>
    %cst_50 = arith.constant dense<0xFF800000> : vector<16xf32>
    %147 = vector.multi_reduction <maximumf>, %146, %cst_50 [1] : vector<16x32xf32> to vector<16xf32>
    %148 = vector.shape_cast %147 : vector<16xf32> to vector<16x1xf32>
    %149 = vector.broadcast %148 : vector<16x1xf32> to vector<16x32xf32>
    %150 = arith.subf %146, %149 : vector<16x32xf32>
    %151 = math.exp %150 : vector<16x32xf32>
    %cst_51 = arith.constant 0.000000e+00 : f32
    %152 = vector.broadcast %cst_51 : f32 to vector<16x32xf32>
    %153 = arith.select %15, %151, %152 : vector<16x32xi1>, vector<16x32xf32>
    %cst_52 = arith.constant dense<0.000000e+00> : vector<16xf32>
    %154 = vector.multi_reduction <add>, %153, %cst_52 [1] : vector<16x32xf32> to vector<16xf32>
    %155 = vector.shape_cast %154 : vector<16xf32> to vector<16x1xf32>
    %cst_53 = arith.constant 1.000000e-30 : f32
    %156 = vector.broadcast %cst_53 : f32 to vector<16x1xf32>
    %157 = arith.maximumf %155, %156 : vector<16x1xf32>
    %158 = tpu.reciprocal %157 {approx = true} : vector<16x1xf32> -> vector<16x1xf32>
    %159 = vector.broadcast %158 : vector<16x1xf32> to vector<16x32xf32>
    %160 = arith.mulf %153, %159 : vector<16x32xf32>
    %161 = arith.truncf %160 : vector<16x32xf32> to vector<16x32xbf16>
    %162 = vector.extract_strided_slice %7 {offsets = [0, 32], sizes = [32, 8], strides = [1, 1]} : vector<32x64xbf16> to vector<32x8xbf16>
    %cst_54 = arith.constant dense<0.000000e+00> : vector<16x8xf32>
    %163 = tpu.matmul %161, %162, %cst_54 {dimension_numbers = #tpu.dot_dimension_numbers<[1], [0], [0], [1], [0, 0, 1, 1], [], []>} : vector<16x32xbf16>, vector<32x8xbf16>, vector<16x8xf32> -> vector<16x8xf32>
    %164 = arith.addf %134, %163 : vector<16x8xf32>
    %165 = vector.extract_strided_slice %12 {offsets = [0, 5], sizes = [16, 1], strides = [1, 1]} : vector<16x8xf32> to vector<16x1xf32>
    %166 = vector.extract_strided_slice %10 {offsets = [5, 0], sizes = [1, 32], strides = [1, 1]} : vector<8x32xf32> to vector<1x32xf32>
    %167 = vector.broadcast %165 : vector<16x1xf32> to vector<16x32xf32>
    %168 = vector.broadcast %166 : vector<1x32xf32> to vector<16x32xf32>
    %169 = arith.addf %167, %168 : vector<16x32xf32>
    %cst_55 = arith.constant 0.000000e+00 : f32
    %170 = vector.broadcast %cst_55 : f32 to vector<16x32xf32>
    %171 = arith.cmpf ogt, %169, %170 : vector<16x32xf32>
    %cst_56 = arith.constant 2.000000e-01 : f32
    %172 = vector.broadcast %cst_56 : f32 to vector<16x32xf32>
    %173 = arith.mulf %172, %169 : vector<16x32xf32>
    %174 = arith.select %171, %169, %173 : vector<16x32xi1>, vector<16x32xf32>
    %cst_57 = arith.constant -1.000000e+30 : f32
    %175 = vector.broadcast %cst_57 : f32 to vector<16x32xf32>
    %176 = arith.select %15, %174, %175 : vector<16x32xi1>, vector<16x32xf32>
    %cst_58 = arith.constant dense<0xFF800000> : vector<16xf32>
    %177 = vector.multi_reduction <maximumf>, %176, %cst_58 [1] : vector<16x32xf32> to vector<16xf32>
    %178 = vector.shape_cast %177 : vector<16xf32> to vector<16x1xf32>
    %179 = vector.broadcast %178 : vector<16x1xf32> to vector<16x32xf32>
    %180 = arith.subf %176, %179 : vector<16x32xf32>
    %181 = math.exp %180 : vector<16x32xf32>
    %cst_59 = arith.constant 0.000000e+00 : f32
    %182 = vector.broadcast %cst_59 : f32 to vector<16x32xf32>
    %183 = arith.select %15, %181, %182 : vector<16x32xi1>, vector<16x32xf32>
    %cst_60 = arith.constant dense<0.000000e+00> : vector<16xf32>
    %184 = vector.multi_reduction <add>, %183, %cst_60 [1] : vector<16x32xf32> to vector<16xf32>
    %185 = vector.shape_cast %184 : vector<16xf32> to vector<16x1xf32>
    %cst_61 = arith.constant 1.000000e-30 : f32
    %186 = vector.broadcast %cst_61 : f32 to vector<16x1xf32>
    %187 = arith.maximumf %185, %186 : vector<16x1xf32>
    %188 = tpu.reciprocal %187 {approx = true} : vector<16x1xf32> -> vector<16x1xf32>
    %189 = vector.broadcast %188 : vector<16x1xf32> to vector<16x32xf32>
    %190 = arith.mulf %183, %189 : vector<16x32xf32>
    %191 = arith.truncf %190 : vector<16x32xf32> to vector<16x32xbf16>
    %192 = vector.extract_strided_slice %7 {offsets = [0, 40], sizes = [32, 8], strides = [1, 1]} : vector<32x64xbf16> to vector<32x8xbf16>
    %cst_62 = arith.constant dense<0.000000e+00> : vector<16x8xf32>
    %193 = tpu.matmul %191, %192, %cst_62 {dimension_numbers = #tpu.dot_dimension_numbers<[1], [0], [0], [1], [0, 0, 1, 1], [], []>} : vector<16x32xbf16>, vector<32x8xbf16>, vector<16x8xf32> -> vector<16x8xf32>
    %194 = arith.addf %164, %193 : vector<16x8xf32>
    %195 = vector.extract_strided_slice %12 {offsets = [0, 6], sizes = [16, 1], strides = [1, 1]} : vector<16x8xf32> to vector<16x1xf32>
    %196 = vector.extract_strided_slice %10 {offsets = [6, 0], sizes = [1, 32], strides = [1, 1]} : vector<8x32xf32> to vector<1x32xf32>
    %197 = vector.broadcast %195 : vector<16x1xf32> to vector<16x32xf32>
    %198 = vector.broadcast %196 : vector<1x32xf32> to vector<16x32xf32>
    %199 = arith.addf %197, %198 : vector<16x32xf32>
    %cst_63 = arith.constant 0.000000e+00 : f32
    %200 = vector.broadcast %cst_63 : f32 to vector<16x32xf32>
    %201 = arith.cmpf ogt, %199, %200 : vector<16x32xf32>
    %cst_64 = arith.constant 2.000000e-01 : f32
    %202 = vector.broadcast %cst_64 : f32 to vector<16x32xf32>
    %203 = arith.mulf %202, %199 : vector<16x32xf32>
    %204 = arith.select %201, %199, %203 : vector<16x32xi1>, vector<16x32xf32>
    %cst_65 = arith.constant -1.000000e+30 : f32
    %205 = vector.broadcast %cst_65 : f32 to vector<16x32xf32>
    %206 = arith.select %15, %204, %205 : vector<16x32xi1>, vector<16x32xf32>
    %cst_66 = arith.constant dense<0xFF800000> : vector<16xf32>
    %207 = vector.multi_reduction <maximumf>, %206, %cst_66 [1] : vector<16x32xf32> to vector<16xf32>
    %208 = vector.shape_cast %207 : vector<16xf32> to vector<16x1xf32>
    %209 = vector.broadcast %208 : vector<16x1xf32> to vector<16x32xf32>
    %210 = arith.subf %206, %209 : vector<16x32xf32>
    %211 = math.exp %210 : vector<16x32xf32>
    %cst_67 = arith.constant 0.000000e+00 : f32
    %212 = vector.broadcast %cst_67 : f32 to vector<16x32xf32>
    %213 = arith.select %15, %211, %212 : vector<16x32xi1>, vector<16x32xf32>
    %cst_68 = arith.constant dense<0.000000e+00> : vector<16xf32>
    %214 = vector.multi_reduction <add>, %213, %cst_68 [1] : vector<16x32xf32> to vector<16xf32>
    %215 = vector.shape_cast %214 : vector<16xf32> to vector<16x1xf32>
    %cst_69 = arith.constant 1.000000e-30 : f32
    %216 = vector.broadcast %cst_69 : f32 to vector<16x1xf32>
    %217 = arith.maximumf %215, %216 : vector<16x1xf32>
    %218 = tpu.reciprocal %217 {approx = true} : vector<16x1xf32> -> vector<16x1xf32>
    %219 = vector.broadcast %218 : vector<16x1xf32> to vector<16x32xf32>
    %220 = arith.mulf %213, %219 : vector<16x32xf32>
    %221 = arith.truncf %220 : vector<16x32xf32> to vector<16x32xbf16>
    %222 = vector.extract_strided_slice %7 {offsets = [0, 48], sizes = [32, 8], strides = [1, 1]} : vector<32x64xbf16> to vector<32x8xbf16>
    %cst_70 = arith.constant dense<0.000000e+00> : vector<16x8xf32>
    %223 = tpu.matmul %221, %222, %cst_70 {dimension_numbers = #tpu.dot_dimension_numbers<[1], [0], [0], [1], [0, 0, 1, 1], [], []>} : vector<16x32xbf16>, vector<32x8xbf16>, vector<16x8xf32> -> vector<16x8xf32>
    %224 = arith.addf %194, %223 : vector<16x8xf32>
    %225 = vector.extract_strided_slice %12 {offsets = [0, 7], sizes = [16, 1], strides = [1, 1]} : vector<16x8xf32> to vector<16x1xf32>
    %226 = vector.extract_strided_slice %10 {offsets = [7, 0], sizes = [1, 32], strides = [1, 1]} : vector<8x32xf32> to vector<1x32xf32>
    %227 = vector.broadcast %225 : vector<16x1xf32> to vector<16x32xf32>
    %228 = vector.broadcast %226 : vector<1x32xf32> to vector<16x32xf32>
    %229 = arith.addf %227, %228 : vector<16x32xf32>
    %cst_71 = arith.constant 0.000000e+00 : f32
    %230 = vector.broadcast %cst_71 : f32 to vector<16x32xf32>
    %231 = arith.cmpf ogt, %229, %230 : vector<16x32xf32>
    %cst_72 = arith.constant 2.000000e-01 : f32
    %232 = vector.broadcast %cst_72 : f32 to vector<16x32xf32>
    %233 = arith.mulf %232, %229 : vector<16x32xf32>
    %234 = arith.select %231, %229, %233 : vector<16x32xi1>, vector<16x32xf32>
    %cst_73 = arith.constant -1.000000e+30 : f32
    %235 = vector.broadcast %cst_73 : f32 to vector<16x32xf32>
    %236 = arith.select %15, %234, %235 : vector<16x32xi1>, vector<16x32xf32>
    %cst_74 = arith.constant dense<0xFF800000> : vector<16xf32>
    %237 = vector.multi_reduction <maximumf>, %236, %cst_74 [1] : vector<16x32xf32> to vector<16xf32>
    %238 = vector.shape_cast %237 : vector<16xf32> to vector<16x1xf32>
    %239 = vector.broadcast %238 : vector<16x1xf32> to vector<16x32xf32>
    %240 = arith.subf %236, %239 : vector<16x32xf32>
    %241 = math.exp %240 : vector<16x32xf32>
    %cst_75 = arith.constant 0.000000e+00 : f32
    %242 = vector.broadcast %cst_75 : f32 to vector<16x32xf32>
    %243 = arith.select %15, %241, %242 : vector<16x32xi1>, vector<16x32xf32>
    %cst_76 = arith.constant dense<0.000000e+00> : vector<16xf32>
    %244 = vector.multi_reduction <add>, %243, %cst_76 [1] : vector<16x32xf32> to vector<16xf32>
    %245 = vector.shape_cast %244 : vector<16xf32> to vector<16x1xf32>
    %cst_77 = arith.constant 1.000000e-30 : f32
    %246 = vector.broadcast %cst_77 : f32 to vector<16x1xf32>
    %247 = arith.maximumf %245, %246 : vector<16x1xf32>
    %248 = tpu.reciprocal %247 {approx = true} : vector<16x1xf32> -> vector<16x1xf32>
    %249 = vector.broadcast %248 : vector<16x1xf32> to vector<16x32xf32>
    %250 = arith.mulf %243, %249 : vector<16x32xf32>
    %251 = arith.truncf %250 : vector<16x32xf32> to vector<16x32xbf16>
    %252 = vector.extract_strided_slice %7 {offsets = [0, 56], sizes = [32, 8], strides = [1, 1]} : vector<32x64xbf16> to vector<32x8xbf16>
    %cst_78 = arith.constant dense<0.000000e+00> : vector<16x8xf32>
    %253 = tpu.matmul %251, %252, %cst_78 {dimension_numbers = #tpu.dot_dimension_numbers<[1], [0], [0], [1], [0, 0, 1, 1], [], []>} : vector<16x32xbf16>, vector<32x8xbf16>, vector<16x8xf32> -> vector<16x8xf32>
    %254 = arith.addf %224, %253 : vector<16x8xf32>
    %cst_79 = arith.constant 1.250000e-01 : f32
    %255 = vector.broadcast %cst_79 : f32 to vector<16x8xf32>
    %256 = arith.mulf %254, %255 : vector<16x8xf32>
    %cst_80 = arith.constant dense<0xFF800000> : vector<16xf32>
    %257 = vector.multi_reduction <maximumf>, %256, %cst_80 [1] : vector<16x8xf32> to vector<16xf32>
    %258 = vector.shape_cast %257 : vector<16xf32> to vector<16x1xf32>
    %259 = vector.broadcast %258 : vector<16x1xf32> to vector<16x8xf32>
    %260 = arith.subf %256, %259 : vector<16x8xf32>
    %261 = math.exp %260 : vector<16x8xf32>
    %cst_81 = arith.constant dense<0.000000e+00> : vector<16xf32>
    %262 = vector.multi_reduction <add>, %261, %cst_81 [1] : vector<16x8xf32> to vector<16xf32>
    %263 = vector.shape_cast %262 : vector<16xf32> to vector<16x1xf32>
    %264 = math.log %263 : vector<16x1xf32>
    %265 = arith.addf %264, %258 : vector<16x1xf32>
    %266 = vector.broadcast %265 : vector<16x1xf32> to vector<16x8xf32>
    %267 = arith.subf %256, %266 : vector<16x8xf32>
    %c0_82 = arith.constant 0 : index
    %c0_83 = arith.constant 0 : index
    %268 = vector.load %arg6[%c0_82, %c0_83] : memref<16x8xf32, #tpu.memory_space<vmem>>, vector<16x8xf32>
    tpu.vector_store %arg6[%c0_82, %c0_83], %267 {strides = array<i32>} : memref<16x8xf32, #tpu.memory_space<vmem>>, vector<16x8xf32>,
    return
  }
}

</mosaic_0001>

<llo_original>
// kernel: _lambda_.2
$region0: #{_lambda_.2}
  #allocation0 [shape = 'u32[]', space=smem, size = 0x4, offset = 0x4, fixed_abs, tag = 'smem constant byte address 0x4 - core index']
  #allocation1 [shape = 'u32[144,128]{1,0:T(1,128)}', space=vmem, size = 0x12000, scoped, tag = 'internal scratch']
  %s0 = inlined_call_operand.vmem [shape: f32[64,32], index: 0, kind: input, shape index: {}]
  %s1 = inlined_call_operand.vmem [shape: bf16[32,128], index: 1, kind: input, shape index: {}]
  %s2 = inlined_call_operand.vmem [shape: bf16[32,128], index: 2, kind: input, shape index: {}]
  %s3 = inlined_call_operand.vmem [shape: bf16[8,128], index: 3, kind: input, shape index: {}]
  %s4 = inlined_call_operand.vmem [shape: bf16[128,8], index: 4, kind: input, shape index: {}]
  %s5 = inlined_call_operand.vmem [shape: f32[32,64], index: 5, kind: input, shape index: {}]
  %s6 = inlined_call_operand.vmem [shape: f32[32,128], index: 6, kind: output, shape index: {}]
  %s7 = sld [smem:[#allocation0]]
  $region34: #{_lambda_.2} parent=0
    _
  %s9 = ssub.s32 1, %s7
  %s10 = scalar_select 0, %s9, %s7
  // Predicated region
  $region2: #{_lambda_.2} parent=0 // pred_check
    _
  $region3: #{_lambda_.2} parent=0 // pred_check_branch
    %12 = sbr.rel (0) target = $region5
  $region4: #{_lambda_.2} parent=0 // pred_region
    _
  $region5: #{_lambda_.2} parent=0 // pred_fallthru
    _
  // Predicated region
  $region6: #{_lambda_.2} parent=0 // pred_check
    _
  $region7: #{_lambda_.2} parent=0 // pred_check_branch
    %14 = sbr.rel (0) target = $region9
  $region8: #{_lambda_.2} parent=0 // pred_region
    _
  $region9: #{_lambda_.2} parent=0 // pred_fallthru
    _
  // Predicated region
  $region10: #{_lambda_.2} parent=0 // pred_check
    _
  $region11: #{_lambda_.2} parent=0 // pred_check_branch
    %16 = sbr.rel (0) target = $region13
  $region12: #{_lambda_.2} parent=0 // pred_region
    _
  $region13: #{_lambda_.2} parent=0 // pred_fallthru
    _
  // Predicated region
  $region14: #{_lambda_.2} parent=0 // pred_check
    _
  $region15: #{_lambda_.2} parent=0 // pred_check_branch
    %18 = sbr.rel (0) target = $region17
  $region16: #{_lambda_.2} parent=0 // pred_region
    _
  $region17: #{_lambda_.2} parent=0 // pred_fallthru
    _
  // Predicated region
  $region18: #{_lambda_.2} parent=0 // pred_check
    _
  $region19: #{_lambda_.2} parent=0 // pred_check_branch
    %20 = sbr.rel (0) target = $region21
  $region20: #{_lambda_.2} parent=0 // pred_region
    _
  $region21: #{_lambda_.2} parent=0 // pred_fallthru
    _
  // Predicated region
  $region22: #{_lambda_.2} parent=0 // pred_check
    _
  $region23: #{_lambda_.2} parent=0 // pred_check_branch
    %22 = sbr.rel (0) target = $region25
  $region24: #{_lambda_.2} parent=0 // pred_region
    _
  $region25: #{_lambda_.2} parent=0 // pred_fallthru
    _
  %v24 = vld [vmem:[%s0] sm:$0xff]
  %v25 = vld [vmem:[%s0 + $0x8] sm:$0xff]
  %v26 = vld [vmem:[%s0 + $0x10] sm:$0xff]
  %v27 = vld [vmem:[%s0 + $0x18] sm:$0xff]
  %v28 = vld [vmem:[%s0 + $0x20] sm:$0xff]
  %v29 = vld [vmem:[%s0 + $0x28] sm:$0xff]
  %v30 = vld [vmem:[%s0 + $0x30] sm:$0xff]
  %v31 = vld [vmem:[%s0 + $0x38] sm:$0xff]
  %v32 = vpack.c.bf16 %v25, %v24
  %v33 = vpack.c.bf16 %v27, %v26
  %v34 = vpack.c.bf16 %v29, %v28
  %v35 = vpack.c.bf16 %v31, %v30
  %v36 = vld [vmem:[%s1] sm:$0xf]
  %v37 = vld [vmem:[%s1 + $0x4] sm:$0xf]
  %v38 = vld [vmem:[%s1 + $0x8] sm:$0xf]
  %v39 = vld [vmem:[%s1 + $0xc] sm:$0xf]
  %v44 = vunpack.c.l.b16 %v36
  %v45 = vunpack.c.l.b16 %v37
  %v46 = vunpack.c.l.b16 %v38
  %v47 = vunpack.c.l.b16 %v39
  %v48 = vpack.c.b16 %v45, %v44
  %v49 = vpack.c.b16 %v47, %v46
  %vm52 = vcmask 261120
  %v54 = vsel %vm52, %v32, 0
  %v57 = vsel %vm52, %v33, 0
  %v60 = vsel %vm52, %v34, 0
  %v63 = vsel %vm52, %v35, 0
  %65 = vmatprep.subr.bf16.mxu0 0
  %66 = vmatpush1.bf16.msra.mxu0 %v48
  %67 = vmatprep.subr.bf16.mxu0 0
  %68 = vmatpush1.bf16.msra.mxu0 %v49
  %69 = vmatprep.subr.bf16.mxu0 0
  %70 = vmatpush1.bf16.msra.mxu0 0
  %71 = vmatprep.subr.bf16.mxu0 0
  %72 = vmatpush1.bf16.msra.mxu0 0
  %73 = vmatprep.subr.bf16.mxu0 0
  %74 = vmatpush1.bf16.msra.mxu0 0
  %75 = vmatprep.subr.bf16.mxu0 0
  %76 = vmatpush1.bf16.msra.mxu0 0
  %77 = vmatprep.subr.bf16.mxu0 0
  %78 = vmatpush1.bf16.msra.mxu0 0
  %79 = vmatprep.subr.bf16.mxu0 0
  %80 = vmatpush1.bf16.msra.mxu0 0
  %81 = vmatprep.subr.bf16.mxu0 0
  %82 = vmatpush1.bf16.msra.mxu0 0
  %83 = vmatprep.subr.bf16.mxu0 0
  %84 = vmatpush1.bf16.msra.mxu0 0
  %85 = vmatprep.subr.bf16.mxu0 0
  %86 = vmatpush1.bf16.msra.mxu0 0
  %87 = vmatprep.subr.bf16.mxu0 0
  %88 = vmatpush1.bf16.msra.mxu0 0
  %89 = vmatprep.subr.bf16.mxu0 0
  %90 = vmatpush1.bf16.msra.mxu0 0
  %91 = vmatprep.subr.bf16.mxu0 0
  %92 = vmatpush1.bf16.msra.mxu0 0
  %93 = vmatprep.subr.bf16.mxu0 0
  %94 = vmatpush1.bf16.msra.mxu0 0
  %95 = vmatprep.subr.bf16.mxu0 0
  %96 = vmatpush1.bf16.msra.mxu0 0
  %97 = vmatprep.mubr.bf16.mxu0 0
  %98 = vmatmul.mubr.bf16.gmra.mrb[0].mxu0 %v54
  %v99 = vpop.f32.mrb[0].mxu0
  %v100 = vadd.f32 0.0, %v99
  %v101 = vpop.f32.mrb[0].mxu0
  %v102 = vpop.f32.mrb[0].mxu0
  %v103 = vadd.f32 0.0, %v102
  %v104 = vpop.f32.mrb[0].mxu0
  %105 = vmatprep.mubr.bf16.mxu0 0
  %106 = vmatmul.mubr.bf16.gmra.mrb[0].mxu0 %v57
  %v107 = vpop.f32.mrb[0].mxu0
  %v108 = vadd.f32 0.0, %v107
  %v109 = vpop.f32.mrb[0].mxu0
  %v110 = vpop.f32.mrb[0].mxu0
  %v111 = vadd.f32 0.0, %v110
  %v112 = vpop.f32.mrb[0].mxu0
  %113 = vmatprep.mubr.bf16.mxu0 0
  %114 = vmatmul.mubr.bf16.gmra.mrb[0].mxu0 %v60
  %v115 = vpop.f32.mrb[0].mxu0
  %v116 = vadd.f32 0.0, %v115
  %v117 = vpop.f32.mrb[0].mxu0
  %v118 = vpop.f32.mrb[0].mxu0
  %v119 = vadd.f32 0.0, %v118
  %v120 = vpop.f32.mrb[0].mxu0
  %121 = vmatprep.mubr.bf16.mxu0 0
  %122 = vmatmul.mubr.bf16.gmra.mrb[0].mxu0 %v63
  %v123 = vpop.f32.mrb[0].mxu0
  %v124 = vadd.f32 0.0, %v123
  %v125 = vpop.f32.mrb[0].mxu0
  %v126 = vpop.f32.mrb[0].mxu0
  %v127 = vadd.f32 0.0, %v126
  %v128 = vpop.f32.mrb[0].mxu0
  %129 = vdwg.mxu0
  %v130 = vld [vmem:[%s2] sm:$0xf]
  %v131 = vld [vmem:[%s2 + $0x4] sm:$0xf]
  %v132 = vld [vmem:[%s2 + $0x8] sm:$0xf]
  %v133 = vld [vmem:[%s2 + $0xc] sm:$0xf]
  %v138 = vunpack.c.l.b16 %v130
  %v139 = vunpack.c.l.b16 %v131
  %v140 = vunpack.c.l.b16 %v132
  %v141 = vunpack.c.l.b16 %v133
  %v142 = vpack.c.b16 %v139, %v138
  %v143 = vpack.c.b16 %v141, %v140
  %146 = vmatprep.subr.bf16.mxu0 0
  %147 = vmatpush1.bf16.msra.mxu0 %v142
  %148 = vmatprep.subr.bf16.mxu0 0
  %149 = vmatpush1.bf16.msra.mxu0 %v143
  %150 = vmatprep.subr.bf16.mxu0 0
  %151 = vmatpush1.bf16.msra.mxu0 0
  %152 = vmatprep.subr.bf16.mxu0 0
  %153 = vmatpush1.bf16.msra.mxu0 0
  %154 = vmatprep.subr.bf16.mxu0 0
  %155 = vmatpush1.bf16.msra.mxu0 0
  %156 = vmatprep.subr.bf16.mxu0 0
  %157 = vmatpush1.bf16.msra.mxu0 0
  %158 = vmatprep.subr.bf16.mxu0 0
  %159 = vmatpush1.bf16.msra.mxu0 0
  %160 = vmatprep.subr.bf16.mxu0 0
  %161 = vmatpush1.bf16.msra.mxu0 0
  %162 = vmatprep.subr.bf16.mxu0 0
  %163 = vmatpush1.bf16.msra.mxu0 0
  %164 = vmatprep.subr.bf16.mxu0 0
  %165 = vmatpush1.bf16.msra.mxu0 0
  %166 = vmatprep.subr.bf16.mxu0 0
  %167 = vmatpush1.bf16.msra.mxu0 0
  %168 = vmatprep.subr.bf16.mxu0 0
  %169 = vmatpush1.bf16.msra.mxu0 0
  %170 = vmatprep.subr.bf16.mxu0 0
  %171 = vmatpush1.bf16.msra.mxu0 0
  %172 = vmatprep.subr.bf16.mxu0 0
  %173 = vmatpush1.bf16.msra.mxu0 0
  %174 = vmatprep.subr.bf16.mxu0 0
  %175 = vmatpush1.bf16.msra.mxu0 0
  %176 = vmatprep.subr.bf16.mxu0 0
  %177 = vmatpush1.bf16.msra.mxu0 0
  %178 = vmatprep.mubr.bf16.mxu0 0
  %179 = vmatmul.mubr.bf16.gmra.mrb[0].mxu0 %v54
  %v180 = vpop.f32.mrb[0].mxu0
  %v181 = vadd.f32 0.0, %v180
  %v182 = vpop.f32.mrb[0].mxu0
  %v183 = vpop.f32.mrb[0].mxu0
  %v184 = vadd.f32 0.0, %v183
  %v185 = vpop.f32.mrb[0].mxu0
  %186 = vmatprep.mubr.bf16.mxu0 0
  %187 = vmatmul.mubr.bf16.gmra.mrb[0].mxu0 %v57
  %v188 = vpop.f32.mrb[0].mxu0
  %v189 = vadd.f32 0.0, %v188
  %v190 = vpop.f32.mrb[0].mxu0
  %v191 = vpop.f32.mrb[0].mxu0
  %v192 = vadd.f32 0.0, %v191
  %v193 = vpop.f32.mrb[0].mxu0
  %194 = vdwg.mxu0
  %v195 = vpack.c.bf16 %v103, %v100
  %v196 = vpack.c.bf16 %v111, %v108
  %v197 = vpack.c.bf16 %v119, %v116
  %v198 = vpack.c.bf16 %v127, %v124
  %v199 = vpack.c.bf16 %v184, %v181
  %v200 = vpack.c.bf16 %v192, %v189
  %v201 = vld [vmem:[%s3] sm:$0xf]
  %202 = vmatprep.subr.bf16.mxu0 0
  %203 = vmatpush1.bf16.xpose.msra.mxu0 %v195
  %204 = vmatprep.subr.bf16.mxu0 0
  %205 = vmatpush1.bf16.xpose.msra.mxu0 %v196
  %206 = vmatprep.subr.bf16.mxu0 0
  %207 = vmatpush1.bf16.xpose.msra.mxu0 %v197
  %208 = vmatprep.subr.bf16.mxu0 0
  %209 = vmatpush1.bf16.xpose.msra.mxu0 %v198
  %210 = vmatprep.subr.bf16.mxu0 0
  %211 = vmatpush1.bf16.xpose.msra.mxu0 0
  %212 = vmatprep.subr.bf16.mxu0 0
  %213 = vmatpush1.bf16.xpose.msra.mxu0 0
  %214 = vmatprep.subr.bf16.mxu0 0
  %215 = vmatpush1.bf16.xpose.msra.mxu0 0
  %216 = vmatprep.subr.bf16.mxu0 0
  %217 = vmatpush1.bf16.xpose.msra.mxu0 0
  %218 = vmatprep.subr.bf16.mxu0 0
  %219 = vmatpush1.bf16.xpose.msra.mxu0 0
  %220 = vmatprep.subr.bf16.mxu0 0
  %221 = vmatpush1.bf16.xpose.msra.mxu0 0
  %222 = vmatprep.subr.bf16.mxu0 0
  %223 = vmatpush1.bf16.xpose.msra.mxu0 0
  %224 = vmatprep.subr.bf16.mxu0 0
  %225 = vmatpush1.bf16.xpose.msra.mxu0 0
  %226 = vmatprep.subr.bf16.mxu0 0
  %227 = vmatpush1.bf16.xpose.msra.mxu0 0
  %228 = vmatprep.subr.bf16.mxu0 0
  %229 = vmatpush1.bf16.xpose.msra.mxu0 0
  %230 = vmatprep.subr.bf16.mxu0 0
  %231 = vmatpush1.bf16.xpose.msra.mxu0 0
  %232 = vmatprep.subr.bf16.mxu0 0
  %233 = vmatpush1.bf16.xpose.msra.mxu0 0
  %234 = vmatprep.mubr.bf16.mxu0 0
  %235 = vmatmul.mubr.bf16.gmra.mrb[0].mxu0 %v201
  %v236 = vpop.f32.mrb[0].mxu0
  %v237 = vadd.f32 0.0, %v236
  %v238 = vpop.f32.mrb[0].mxu0
  %v239 = vpop.f32.mrb[0].mxu0
  %v240 = vpop.f32.mrb[0].mxu0
  %241 = vdwg.mxu0
  %v242 = vld [vmem:[%s4] sm:$0xf]
  %v243 = vld [vmem:[%s4 + $0x4] sm:$0xf]
  %v244 = vld [vmem:[%s4 + $0x8] sm:$0xf]
  %v245 = vld [vmem:[%s4 + $0xc] sm:$0xf]
  %v246 = vld [vmem:[%s4 + $0x10] sm:$0xf]
  %v247 = vld [vmem:[%s4 + $0x14] sm:$0xf]
  %v248 = vld [vmem:[%s4 + $0x18] sm:$0xf]
  %v249 = vld [vmem:[%s4 + $0x1c] sm:$0xf]
  %v250 = vld [vmem:[%s4 + $0x20] sm:$0xf]
  %v251 = vld [vmem:[%s4 + $0x24] sm:$0xf]
  %v252 = vld [vmem:[%s4 + $0x28] sm:$0xf]
  %v253 = vld [vmem:[%s4 + $0x2c] sm:$0xf]
  %v254 = vld [vmem:[%s4 + $0x30] sm:$0xf]
  %v255 = vld [vmem:[%s4 + $0x34] sm:$0xf]
  %v256 = vld [vmem:[%s4 + $0x38] sm:$0xf]
  %v257 = vld [vmem:[%s4 + $0x3c] sm:$0xf]
  %v274 = vunpack.c.l.b16 %v242
  %v275 = vunpack.c.l.b16 %v243
  %v276 = vunpack.c.l.b16 %v244
  %v277 = vunpack.c.l.b16 %v245
  %v278 = vunpack.c.l.b16 %v246
  %v279 = vunpack.c.l.b16 %v247
  %v280 = vunpack.c.l.b16 %v248
  %v281 = vunpack.c.l.b16 %v249
  %v282 = vunpack.c.l.b16 %v250
  %v283 = vunpack.c.l.b16 %v251
  %v284 = vunpack.c.l.b16 %v252
  %v285 = vunpack.c.l.b16 %v253
  %v286 = vunpack.c.l.b16 %v254
  %v287 = vunpack.c.l.b16 %v255
  %v288 = vunpack.c.l.b16 %v256
  %v289 = vunpack.c.l.b16 %v257
  %v290 = vpack.c.b16 %v275, %v274
  %v291 = vpack.c.b16 %v277, %v276
  %v292 = vpack.c.b16 %v279, %v278
  %v293 = vpack.c.b16 %v281, %v280
  %v294 = vpack.c.b16 %v283, %v282
  %v295 = vpack.c.b16 %v285, %v284
  %v296 = vpack.c.b16 %v287, %v286
  %v297 = vpack.c.b16 %v289, %v288
  %306 = vmatprep.subr.bf16.mxu0 0
  %307 = vmatpush1.bf16.msra.mxu0 %v290
  %308 = vmatprep.subr.bf16.mxu0 0
  %309 = vmatpush1.bf16.msra.mxu0 %v291
  %310 = vmatprep.subr.bf16.mxu0 0
  %311 = vmatpush1.bf16.msra.mxu0 %v292
  %312 = vmatprep.subr.bf16.mxu0 0
  %313 = vmatpush1.bf16.msra.mxu0 %v293
  %314 = vmatprep.subr.bf16.mxu0 0
  %315 = vmatpush1.bf16.msra.mxu0 %v294
  %316 = vmatprep.subr.bf16.mxu0 0
  %317 = vmatpush1.bf16.msra.mxu0 %v295
  %318 = vmatprep.subr.bf16.mxu0 0
  %319 = vmatpush1.bf16.msra.mxu0 %v296
  %320 = vmatprep.subr.bf16.mxu0 0
  %321 = vmatpush1.bf16.msra.mxu0 %v297
  %322 = vmatprep.subr.bf16.mxu0 0
  %323 = vmatpush1.bf16.msra.mxu0 0
  %324 = vmatprep.subr.bf16.mxu0 0
  %325 = vmatpush1.bf16.msra.mxu0 0
  %326 = vmatprep.subr.bf16.mxu0 0
  %327 = vmatpush1.bf16.msra.mxu0 0
  %328 = vmatprep.subr.bf16.mxu0 0
  %329 = vmatpush1.bf16.msra.mxu0 0
  %330 = vmatprep.subr.bf16.mxu0 0
  %331 = vmatpush1.bf16.msra.mxu0 0
  %332 = vmatprep.subr.bf16.mxu0 0
  %333 = vmatpush1.bf16.msra.mxu0 0
  %334 = vmatprep.subr.bf16.mxu0 0
  %335 = vmatpush1.bf16.msra.mxu0 0
  %336 = vmatprep.subr.bf16.mxu0 0
  %337 = vmatpush1.bf16.msra.mxu0 0
  %338 = vmatprep.mubr.bf16.mxu0 0
  %339 = vmatmul.mubr.bf16.gmra.mrb[0].mxu0 %v199
  %v340 = vpop.f32.mrb[0].mxu0
  %v341 = vadd.f32 0.0, %v340
  %v342 = vpop.f32.mrb[0].mxu0
  %v343 = vpop.f32.mrb[0].mxu0
  %v344 = vadd.f32 0.0, %v343
  %v345 = vpop.f32.mrb[0].mxu0
  %346 = vmatprep.mubr.bf16.mxu0 0
  %347 = vmatmul.mubr.bf16.gmra.mrb[0].mxu0 %v200
  %v348 = vpop.f32.mrb[0].mxu0
  %v349 = vadd.f32 0.0, %v348
  %v350 = vpop.f32.mrb[0].mxu0
  %v351 = vpop.f32.mrb[0].mxu0
  %v352 = vadd.f32 0.0, %v351
  %v353 = vpop.f32.mrb[0].mxu0
  %354 = vdwg.mxu0
  %v355 = vld [vmem:[%s5] sm:$0xff]
  %v356 = vld [vmem:[%s5 + $0x8] sm:$0xff]
  %v357 = vld [vmem:[%s5 + $0x10] sm:$0xff]
  %v358 = vld [vmem:[%s5 + $0x18] sm:$0xff]
  %vm359 = vcmp.gt.f32.partialorder %v355, 0.0
  %vm360 = vcmp.gt.f32.partialorder %v356, 0.0
  %vm361 = vcmp.gt.f32.partialorder %v357, 0.0
  %vm362 = vcmp.gt.f32.partialorder %v358, 0.0
  %364 = vset.pattern.permute.xlu0 0
  %365 = vperm.xlu0 %364, %v341
  %v366 = vpop.permute.xlu0 %365
  %369 = vset.pattern.permute.xlu0 0
  %370 = vperm.xlu0 %369, %v344
  %v371 = vpop.permute.xlu0 %370
  %374 = vset.pattern.permute.xlu0 0
  %375 = vperm.xlu0 %374, %v349
  %v376 = vpop.permute.xlu0 %375
  %379 = vset.pattern.permute.xlu0 0
  %380 = vperm.xlu0 %379, %v352
  %v381 = vpop.permute.xlu0 %380
  %v383 = vlaneseq
  %v384 = vshrl.u32 %v383, 7
  %v385 = vsub.s32 0, %v384
  %v386 = vrot.slane %v237, %v385
  %v387 = vadd.f32 %v366, %v386
  %v388 = vadd.f32 %v371, %v386
  %v389 = vadd.f32 %v376, %v386
  %v390 = vadd.f32 %v381, %v386
  %vm391 = vcmp.gt.f32.partialorder %v387, 0.0
  %vm392 = vcmp.gt.f32.partialorder %v388, 0.0
  %vm393 = vcmp.gt.f32.partialorder %v389, 0.0
  %vm394 = vcmp.gt.f32.partialorder %v390, 0.0
  %v395 = vmul.f32 %v387, 0.2
  %v396 = vmul.f32 %v388, 0.2
  %v397 = vmul.f32 %v389, 0.2
  %v398 = vmul.f32 %v390, 0.2
  %v399 = vsel %vm391, %v387, %v395
  %v400 = vsel %vm392, %v388, %v396
  %v401 = vsel %vm393, %v389, %v397
  %v402 = vsel %vm394, %v390, %v398
  %v403 = vsel %vm359, %v399, -1e+30
  %v404 = vsel %vm360, %v400, -1e+30
  %v405 = vsel %vm361, %v401, -1e+30
  %v406 = vsel %vm362, %v402, -1e+30
  %vm407 = vcmask 523264
  %v408 = vsel %vm407, %v403, -inf
  %409 = vmax.xlane.f32.xlu0 %v408
  %v410 = vpop.xlane.xlu0 %409
  %v411 = vsel %vm407, %v404, -inf
  %412 = vmax.xlane.f32.xlu0 %v411
  %v413 = vpop.xlane.xlu0 %412
  %v414 = vsel %vm407, %v405, -inf
  %415 = vmax.xlane.f32.xlu0 %v414
  %v416 = vpop.xlane.xlu0 %415
  %v417 = vsel %vm407, %v406, -inf
  %418 = vmax.xlane.f32.xlu0 %v417
  %v419 = vpop.xlane.xlu0 %418
  %v420 = vsub.f32 %v403, %v410
  %v421 = vsub.f32 %v404, %v413
  %v422 = vsub.f32 %v405, %v416
  %v423 = vsub.f32 %v406, %v419
  %v424 = vmul.f32 %v420, 1.442695
  %v425 = vpow.pop %v424
  %v426 = vmul.f32 %v421, 1.442695
  %v427 = vpow.pop %v426
  %v428 = vmul.f32 %v422, 1.442695
  %v429 = vpow.pop %v428
  %v430 = vmul.f32 %v423, 1.442695
  %v431 = vpow.pop %v430
  %v432 = vsel %vm359, %v425, 0.0
  %v433 = vsel %vm360, %v427, 0.0
  %v434 = vsel %vm361, %v429, 0.0
  %v435 = vsel %vm362, %v431, 0.0
  %v436 = vsel %vm407, %v432, 0.0
  %437 = vadd.xlane.f32.xlu0 %v436
  %v438 = vpop.xlane.xlu0 %437
  %v439 = vsel %vm407, %v433, 0.0
  %440 = vadd.xlane.f32.xlu0 %v439
  %v441 = vpop.xlane.xlu0 %440
  %v442 = vsel %vm407, %v434, 0.0
  %443 = vadd.xlane.f32.xlu0 %v442
  %v444 = vpop.xlane.xlu0 %443
  %v445 = vsel %vm407, %v435, 0.0
  %446 = vadd.xlane.f32.xlu0 %v445
  %v447 = vpop.xlane.xlu0 %446
  %v448 = vmax.f32 %v438, 1e-30
  %v449 = vmax.f32 %v441, 1e-30
  %v450 = vmax.f32 %v444, 1e-30
  %v451 = vmax.f32 %v447, 1e-30
  %v452 = vrcp.pop %v448
  %v453 = vrcp.pop %v449
  %v454 = vrcp.pop %v450
  %v455 = vrcp.pop %v451
  %v456 = vmul.f32 %v432, %v452
  %v457 = vmul.f32 %v433, %v453
  %v458 = vmul.f32 %v434, %v454
  %v459 = vmul.f32 %v435, %v455
  %v460 = vpack.c.bf16 %v457, %v456
  %v461 = vpack.c.bf16 %v459, %v458
  %v463 = vsel %vm407, %v460, 0
  %v466 = vsel %vm407, %v461, 0
  %468 = vmatprep.subr.bf16.mxu0 0
  %469 = vmatpush1.bf16.msra.mxu0 %v195
  %470 = vmatprep.subr.bf16.mxu0 0
  %471 = vmatpush1.bf16.msra.mxu0 %v196
  %472 = vmatprep.subr.bf16.mxu0 0
  %473 = vmatpush1.bf16.msra.mxu0 %v197
  %474 = vmatprep.subr.bf16.mxu0 0
  %475 = vmatpush1.bf16.msra.mxu0 %v198
  %476 = vmatprep.subr.bf16.mxu0 0
  %477 = vmatpush1.bf16.msra.mxu0 0
  %478 = vmatprep.subr.bf16.mxu0 0
  %479 = vmatpush1.bf16.msra.mxu0 0
  %480 = vmatprep.subr.bf16.mxu0 0
  %481 = vmatpush1.bf16.msra.mxu0 0
  %482 = vmatprep.subr.bf16.mxu0 0
  %483 = vmatpush1.bf16.msra.mxu0 0
  %484 = vmatprep.subr.bf16.mxu0 0
  %485 = vmatpush1.bf16.msra.mxu0 0
  %486 = vmatprep.subr.bf16.mxu0 0
  %487 = vmatpush1.bf16.msra.mxu0 0
  %488 = vmatprep.subr.bf16.mxu0 0
  %489 = vmatpush1.bf16.msra.mxu0 0
  %490 = vmatprep.subr.bf16.mxu0 0
  %491 = vmatpush1.bf16.msra.mxu0 0
  %492 = vmatprep.subr.bf16.mxu0 0
  %493 = vmatpush1.bf16.msra.mxu0 0
  %494 = vmatprep.subr.bf16.mxu0 0
  %495 = vmatpush1.bf16.msra.mxu0 0
  %496 = vmatprep.subr.bf16.mxu0 0
  %497 = vmatpush1.bf16.msra.mxu0 0
  %498 = vmatprep.subr.bf16.mxu0 0
  %499 = vmatpush1.bf16.msra.mxu0 0
  %500 = vmatprep.mubr.bf16.mxu0 0
  %501 = vmatmul.mubr.bf16.gmra.mrb[0].mxu0 %v463
  %v502 = vpop.f32.mrb[0].mxu0
  %v503 = vadd.f32 0.0, %v502
  %v504 = vpop.f32.mrb[0].mxu0
  %v505 = vpop.f32.mrb[0].mxu0
  %v506 = vadd.f32 0.0, %v505
  %v507 = vpop.f32.mrb[0].mxu0
  %508 = vmatprep.mubr.bf16.mxu0 0
  %509 = vmatmul.mubr.bf16.gmra.mrb[0].mxu0 %v466
  %v510 = vpop.f32.mrb[0].mxu0
  %v511 = vadd.f32 0.0, %v510
  %v512 = vpop.f32.mrb[0].mxu0
  %v513 = vpop.f32.mrb[0].mxu0
  %v514 = vadd.f32 0.0, %v513
  %v515 = vpop.f32.mrb[0].mxu0
  %516 = vdwg.mxu0
  %517 = vset.pattern.permute.xlu0 1
  %518 = vperm.xlu0 %517, %v341
  %v519 = vpop.permute.xlu0 %518
  %521 = vset.pattern.permute.xlu0 1
  %522 = vperm.xlu0 %521, %v344
  %v523 = vpop.permute.xlu0 %522
  %525 = vset.pattern.permute.xlu0 1
  %526 = vperm.xlu0 %525, %v349
  %v527 = vpop.permute.xlu0 %526
  %529 = vset.pattern.permute.xlu0 1
  %530 = vperm.xlu0 %529, %v352
  %v531 = vpop.permute.xlu0 %530
  %v533 = vlaneseq
  %v534 = vshrl.u32 %v533, 7
  %v535 = vsub.s32 1, %v534
  %v536 = vrot.slane %v237, %v535
  %v537 = vadd.f32 %v519, %v536
  %v538 = vadd.f32 %v523, %v536
  %v539 = vadd.f32 %v527, %v536
  %v540 = vadd.f32 %v531, %v536
  %vm541 = vcmp.gt.f32.partialorder %v537, 0.0
  %vm542 = vcmp.gt.f32.partialorder %v538, 0.0
  %vm543 = vcmp.gt.f32.partialorder %v539, 0.0
  %vm544 = vcmp.gt.f32.partialorder %v540, 0.0
  %v545 = vmul.f32 %v537, 0.2
  %v546 = vmul.f32 %v538, 0.2
  %v547 = vmul.f32 %v539, 0.2
  %v548 = vmul.f32 %v540, 0.2
  %v549 = vsel %vm541, %v537, %v545
  %v550 = vsel %vm542, %v538, %v546
  %v551 = vsel %vm543, %v539, %v547
  %v552 = vsel %vm544, %v540, %v548
  %v553 = vsel %vm359, %v549, -1e+30
  %v554 = vsel %vm360, %v550, -1e+30
  %v555 = vsel %vm361, %v551, -1e+30
  %v556 = vsel %vm362, %v552, -1e+30
  %v557 = vsel %vm407, %v553, -inf
  %558 = vmax.xlane.f32.xlu0 %v557
  %v559 = vpop.xlane.xlu0 %558
  %v560 = vsel %vm407, %v554, -inf
  %561 = vmax.xlane.f32.xlu0 %v560
  %v562 = vpop.xlane.xlu0 %561
  %v563 = vsel %vm407, %v555, -inf
  %564 = vmax.xlane.f32.xlu0 %v563
  %v565 = vpop.xlane.xlu0 %564
  %v566 = vsel %vm407, %v556, -inf
  %567 = vmax.xlane.f32.xlu0 %v566
  %v568 = vpop.xlane.xlu0 %567
  %v569 = vsub.f32 %v553, %v559
  %v570 = vsub.f32 %v554, %v562
  %v571 = vsub.f32 %v555, %v565
  %v572 = vsub.f32 %v556, %v568
  %v573 = vmul.f32 %v569, 1.442695
  %v574 = vpow.pop %v573
  %v575 = vmul.f32 %v570, 1.442695
  %v576 = vpow.pop %v575
  %v577 = vmul.f32 %v571, 1.442695
  %v578 = vpow.pop %v577
  %v579 = vmul.f32 %v572, 1.442695
  %v580 = vpow.pop %v579
  %v581 = vsel %vm359, %v574, 0.0
  %v582 = vsel %vm360, %v576, 0.0
  %v583 = vsel %vm361, %v578, 0.0
  %v584 = vsel %vm362, %v580, 0.0
  %v585 = vsel %vm407, %v581, 0.0
  %586 = vadd.xlane.f32.xlu0 %v585
  %v587 = vpop.xlane.xlu0 %586
  %v588 = vsel %vm407, %v582, 0.0
  %589 = vadd.xlane.f32.xlu0 %v588
  %v590 = vpop.xlane.xlu0 %589
  %v591 = vsel %vm407, %v583, 0.0
  %592 = vadd.xlane.f32.xlu0 %v591
  %v593 = vpop.xlane.xlu0 %592
  %v594 = vsel %vm407, %v584, 0.0
  %595 = vadd.xlane.f32.xlu0 %v594
  %v596 = vpop.xlane.xlu0 %595
  %v597 = vmax.f32 %v587, 1e-30
  %v598 = vmax.f32 %v590, 1e-30
  %v599 = vmax.f32 %v593, 1e-30
  %v600 = vmax.f32 %v596, 1e-30
  %v601 = vrcp.pop %v597
  %v602 = vrcp.pop %v598
  %v603 = vrcp.pop %v599
  %v604 = vrcp.pop %v600
  %v605 = vmul.f32 %v581, %v601
  %v606 = vmul.f32 %v582, %v602
  %v607 = vmul.f32 %v583, %v603
  %v608 = vmul.f32 %v584, %v604
  %v609 = vpack.c.bf16 %v606, %v605
  %v610 = vpack.c.bf16 %v608, %v607
  %615 = vrot.lane.b32.xlu0 %v195, 112
  %v616 = vpop.permute.xlu0 %615
  %617 = vrot.lane.b32.xlu0 %v196, 112
  %v618 = vpop.permute.xlu0 %617
  %619 = vrot.lane.b32.xlu0 %v197, 112
  %v620 = vpop.permute.xlu0 %619
  %621 = vrot.lane.b32.xlu0 %v198, 112
  %v622 = vpop.permute.xlu0 %621
  %v628 = vsel %vm407, %v609, 0
  %v631 = vsel %vm407, %v610, 0
  %633 = vmatprep.subr.bf16.mxu0 0
  %634 = vmatpush1.bf16.msra.mxu0 %v616
  %635 = vmatprep.subr.bf16.mxu0 0
  %636 = vmatpush1.bf16.msra.mxu0 %v618
  %637 = vmatprep.subr.bf16.mxu0 0
  %638 = vmatpush1.bf16.msra.mxu0 %v620
  %639 = vmatprep.subr.bf16.mxu0 0
  %640 = vmatpush1.bf16.msra.mxu0 %v622
  %641 = vmatprep.subr.bf16.mxu0 0
  %642 = vmatpush1.bf16.msra.mxu0 0
  %643 = vmatprep.subr.bf16.mxu0 0
  %644 = vmatpush1.bf16.msra.mxu0 0
  %645 = vmatprep.subr.bf16.mxu0 0
  %646 = vmatpush1.bf16.msra.mxu0 0
  %647 = vmatprep.subr.bf16.mxu0 0
  %648 = vmatpush1.bf16.msra.mxu0 0
  %649 = vmatprep.subr.bf16.mxu0 0
  %650 = vmatpush1.bf16.msra.mxu0 0
  %651 = vmatprep.subr.bf16.mxu0 0
  %652 = vmatpush1.bf16.msra.mxu0 0
  %653 = vmatprep.subr.bf16.mxu0 0
  %654 = vmatpush1.bf16.msra.mxu0 0
  %655 = vmatprep.subr.bf16.mxu0 0
  %656 = vmatpush1.bf16.msra.mxu0 0
  %657 = vmatprep.subr.bf16.mxu0 0
  %658 = vmatpush1.bf16.msra.mxu0 0
  %659 = vmatprep.subr.bf16.mxu0 0
  %660 = vmatpush1.bf16.msra.mxu0 0
  %661 = vmatprep.subr.bf16.mxu0 0
  %662 = vmatpush1.bf16.msra.mxu0 0
  %663 = vmatprep.subr.bf16.mxu0 0
  %664 = vmatpush1.bf16.msra.mxu0 0
  %665 = vmatprep.mubr.bf16.mxu0 0
  %666 = vmatmul.mubr.bf16.gmra.mrb[0].mxu0 %v628
  %v667 = vpop.f32.mrb[0].mxu0
  %v668 = vadd.f32 0.0, %v667
  %v669 = vpop.f32.mrb[0].mxu0
  %v670 = vpop.f32.mrb[0].mxu0
  %v671 = vadd.f32 0.0, %v670
  %v672 = vpop.f32.mrb[0].mxu0
  %673 = vmatprep.mubr.bf16.mxu0 0
  %674 = vmatmul.mubr.bf16.gmra.mrb[0].mxu0 %v631
  %v675 = vpop.f32.mrb[0].mxu0
  %v676 = vadd.f32 0.0, %v675
  %v677 = vpop.f32.mrb[0].mxu0
  %v678 = vpop.f32.mrb[0].mxu0
  %v679 = vadd.f32 0.0, %v678
  %v680 = vpop.f32.mrb[0].mxu0
  %681 = vdwg.mxu0
  %682 = vset.pattern.permute.xlu0 2
  %683 = vperm.xlu0 %682, %v341
  %v684 = vpop.permute.xlu0 %683
  %686 = vset.pattern.permute.xlu0 2
  %687 = vperm.xlu0 %686, %v344
  %v688 = vpop.permute.xlu0 %687
  %690 = vset.pattern.permute.xlu0 2
  %691 = vperm.xlu0 %690, %v349
  %v692 = vpop.permute.xlu0 %691
  %694 = vset.pattern.permute.xlu0 2
  %695 = vperm.xlu0 %694, %v352
  %v696 = vpop.permute.xlu0 %695
  %v698 = vlaneseq
  %v699 = vshrl.u32 %v698, 7
  %v700 = vsub.s32 2, %v699
  %v701 = vrot.slane %v237, %v700
  %v702 = vadd.f32 %v684, %v701
  %v703 = vadd.f32 %v688, %v701
  %v704 = vadd.f32 %v692, %v701
  %v705 = vadd.f32 %v696, %v701
  %vm706 = vcmp.gt.f32.partialorder %v702, 0.0
  %vm707 = vcmp.gt.f32.partialorder %v703, 0.0
  %vm708 = vcmp.gt.f32.partialorder %v704, 0.0
  %vm709 = vcmp.gt.f32.partialorder %v705, 0.0
  %v710 = vmul.f32 %v702, 0.2
  %v711 = vmul.f32 %v703, 0.2
  %v712 = vmul.f32 %v704, 0.2
  %v713 = vmul.f32 %v705, 0.2
  %v714 = vsel %vm706, %v702, %v710
  %v715 = vsel %vm707, %v703, %v711
  %v716 = vsel %vm708, %v704, %v712
  %v717 = vsel %vm709, %v705, %v713
  %v718 = vsel %vm359, %v714, -1e+30
  %v719 = vsel %vm360, %v715, -1e+30
  %v720 = vsel %vm361, %v716, -1e+30
  %v721 = vsel %vm362, %v717, -1e+30
  %v722 = vsel %vm407, %v718, -inf
  %723 = vmax.xlane.f32.xlu0 %v722
  %v724 = vpop.xlane.xlu0 %723
  %v725 = vsel %vm407, %v719, -inf
  %726 = vmax.xlane.f32.xlu0 %v725
  %v727 = vpop.xlane.xlu0 %726
  %v728 = vsel %vm407, %v720, -inf
  %729 = vmax.xlane.f32.xlu0 %v728
  %v730 = vpop.xlane.xlu0 %729
  %v731 = vsel %vm407, %v721, -inf
  %732 = vmax.xlane.f32.xlu0 %v731
  %v733 = vpop.xlane.xlu0 %732
  %v734 = vsub.f32 %v718, %v724
  %v735 = vsub.f32 %v719, %v727
  %v736 = vsub.f32 %v720, %v730
  %v737 = vsub.f32 %v721, %v733
  %v738 = vmul.f32 %v734, 1.442695
  %v739 = vpow.pop %v738
  %v740 = vmul.f32 %v735, 1.442695
  %v741 = vpow.pop %v740
  %v742 = vmul.f32 %v736, 1.442695
  %v743 = vpow.pop %v742
  %v744 = vmul.f32 %v737, 1.442695
  %v745 = vpow.pop %v744
  %v746 = vsel %vm359, %v739, 0.0
  %v747 = vsel %vm360, %v741, 0.0
  %v748 = vsel %vm361, %v743, 0.0
  %v749 = vsel %vm362, %v745, 0.0
  %v750 = vsel %vm407, %v746, 0.0
  %751 = vadd.xlane.f32.xlu0 %v750
  %v752 = vpop.xlane.xlu0 %751
  %v753 = vsel %vm407, %v747, 0.0
  %754 = vadd.xlane.f32.xlu0 %v753
  %v755 = vpop.xlane.xlu0 %754
  %v756 = vsel %vm407, %v748, 0.0
  %757 = vadd.xlane.f32.xlu0 %v756
  %v758 = vpop.xlane.xlu0 %757
  %v759 = vsel %vm407, %v749, 0.0
  %760 = vadd.xlane.f32.xlu0 %v759
  %v761 = vpop.xlane.xlu0 %760
  %v762 = vmax.f32 %v752, 1e-30
  %v763 = vmax.f32 %v755, 1e-30
  %v764 = vmax.f32 %v758, 1e-30
  %v765 = vmax.f32 %v761, 1e-30
  %v766 = vrcp.pop %v762
  %v767 = vrcp.pop %v763
  %v768 = vrcp.pop %v764
  %v769 = vrcp.pop %v765
  %v770 = vmul.f32 %v746, %v766
  %v771 = vmul.f32 %v747, %v767
  %v772 = vmul.f32 %v748, %v768
  %v773 = vmul.f32 %v749, %v769
  %v774 = vpack.c.bf16 %v771, %v770
  %v775 = vpack.c.bf16 %v773, %v772
  %776 = vrot.lane.b32.xlu0 %v195, 96
  %v777 = vpop.permute.xlu0 %776
  %778 = vrot.lane.b32.xlu0 %v196, 96
  %v779 = vpop.permute.xlu0 %778
  %780 = vrot.lane.b32.xlu0 %v197, 96
  %v781 = vpop.permute.xlu0 %780
  %782 = vrot.lane.b32.xlu0 %v198, 96
  %v783 = vpop.permute.xlu0 %782
  %v789 = vsel %vm407, %v774, 0
  %v792 = vsel %vm407, %v775, 0
  %794 = vmatprep.subr.bf16.mxu0 0
  %795 = vmatpush1.bf16.msra.mxu0 %v777
  %796 = vmatprep.subr.bf16.mxu0 0
  %797 = vmatpush1.bf16.msra.mxu0 %v779
  %798 = vmatprep.subr.bf16.mxu0 0
  %799 = vmatpush1.bf16.msra.mxu0 %v781
  %800 = vmatprep.subr.bf16.mxu0 0
  %801 = vmatpush1.bf16.msra.mxu0 %v783
  %802 = vmatprep.subr.bf16.mxu0 0
  %803 = vmatpush1.bf16.msra.mxu0 0
  %804 = vmatprep.subr.bf16.mxu0 0
  %805 = vmatpush1.bf16.msra.mxu0 0
  %806 = vmatprep.subr.bf16.mxu0 0
  %807 = vmatpush1.bf16.msra.mxu0 0
  %808 = vmatprep.subr.bf16.mxu0 0
  %809 = vmatpush1.bf16.msra.mxu0 0
  %810 = vmatprep.subr.bf16.mxu0 0
  %811 = vmatpush1.bf16.msra.mxu0 0
  %812 = vmatprep.subr.bf16.mxu0 0
  %813 = vmatpush1.bf16.msra.mxu0 0
  %814 = vmatprep.subr.bf16.mxu0 0
  %815 = vmatpush1.bf16.msra.mxu0 0
  %816 = vmatprep.subr.bf16.mxu0 0
  %817 = vmatpush1.bf16.msra.mxu0 0
  %818 = vmatprep.subr.bf16.mxu0 0
  %819 = vmatpush1.bf16.msra.mxu0 0
  %820 = vmatprep.subr.bf16.mxu0 0
  %821 = vmatpush1.bf16.msra.mxu0 0
  %822 = vmatprep.subr.bf16.mxu0 0
  %823 = vmatpush1.bf16.msra.mxu0 0
  %824 = vmatprep.subr.bf16.mxu0 0
  %825 = vmatpush1.bf16.msra.mxu0 0
  %826 = vmatprep.mubr.bf16.mxu0 0
  %827 = vmatmul.mubr.bf16.gmra.mrb[0].mxu0 %v789
  %v828 = vpop.f32.mrb[0].mxu0
  %v829 = vadd.f32 0.0, %v828
  %v830 = vpop.f32.mrb[0].mxu0
  %v831 = vpop.f32.mrb[0].mxu0
  %v832 = vadd.f32 0.0, %v831
  %v833 = vpop.f32.mrb[0].mxu0
  %834 = vmatprep.mubr.bf16.mxu0 0
  %835 = vmatmul.mubr.bf16.gmra.mrb[0].mxu0 %v792
  %v836 = vpop.f32.mrb[0].mxu0
  %v837 = vadd.f32 0.0, %v836
  %v838 = vpop.f32.mrb[0].mxu0
  %v839 = vpop.f32.mrb[0].mxu0
  %v840 = vadd.f32 0.0, %v839
  %v841 = vpop.f32.mrb[0].mxu0
  %842 = vdwg.mxu0
  %843 = vset.pattern.permute.xlu0 3
  %844 = vperm.xlu0 %843, %v341
  %v845 = vpop.permute.xlu0 %844
  %847 = vset.pattern.permute.xlu0 3
  %848 = vperm.xlu0 %847, %v344
  %v849 = vpop.permute.xlu0 %848
  %851 = vset.pattern.permute.xlu0 3
  %852 = vperm.xlu0 %851, %v349
  %v853 = vpop.permute.xlu0 %852
  %855 = vset.pattern.permute.xlu0 3
  %856 = vperm.xlu0 %855, %v352
  %v857 = vpop.permute.xlu0 %856
  %v859 = vlaneseq
  %v860 = vshrl.u32 %v859, 7
  %v861 = vsub.s32 3, %v860
  %v862 = vrot.slane %v237, %v861
  %v863 = vadd.f32 %v845, %v862
  %v864 = vadd.f32 %v849, %v862
  %v865 = vadd.f32 %v853, %v862
  %v866 = vadd.f32 %v857, %v862
  %vm867 = vcmp.gt.f32.partialorder %v863, 0.0
  %vm868 = vcmp.gt.f32.partialorder %v864, 0.0
  %vm869 = vcmp.gt.f32.partialorder %v865, 0.0
  %vm870 = vcmp.gt.f32.partialorder %v866, 0.0
  %v871 = vmul.f32 %v863, 0.2
  %v872 = vmul.f32 %v864, 0.2
  %v873 = vmul.f32 %v865, 0.2
  %v874 = vmul.f32 %v866, 0.2
  %v875 = vsel %vm867, %v863, %v871
  %v876 = vsel %vm868, %v864, %v872
  %v877 = vsel %vm869, %v865, %v873
  %v878 = vsel %vm870, %v866, %v874
  %v879 = vsel %vm359, %v875, -1e+30
  %v880 = vsel %vm360, %v876, -1e+30
  %v881 = vsel %vm361, %v877, -1e+30
  %v882 = vsel %vm362, %v878, -1e+30
  %v883 = vsel %vm407, %v879, -inf
  %884 = vmax.xlane.f32.xlu0 %v883
  %v885 = vpop.xlane.xlu0 %884
  %v886 = vsel %vm407, %v880, -inf
  %887 = vmax.xlane.f32.xlu0 %v886
  %v888 = vpop.xlane.xlu0 %887
  %v889 = vsel %vm407, %v881, -inf
  %890 = vmax.xlane.f32.xlu0 %v889
  %v891 = vpop.xlane.xlu0 %890
  %v892 = vsel %vm407, %v882, -inf
  %893 = vmax.xlane.f32.xlu0 %v892
  %v894 = vpop.xlane.xlu0 %893
  %v895 = vsub.f32 %v879, %v885
  %v896 = vsub.f32 %v880, %v888
  %v897 = vsub.f32 %v881, %v891
  %v898 = vsub.f32 %v882, %v894
  %v899 = vmul.f32 %v895, 1.442695
  %v900 = vpow.pop %v899
  %v901 = vmul.f32 %v896, 1.442695
  %v902 = vpow.pop %v901
  %v903 = vmul.f32 %v897, 1.442695
  %v904 = vpow.pop %v903
  %v905 = vmul.f32 %v898, 1.442695
  %v906 = vpow.pop %v905
  %v907 = vsel %vm359, %v900, 0.0
  %v908 = vsel %vm360, %v902, 0.0
  %v909 = vsel %vm361, %v904, 0.0
  %v910 = vsel %vm362, %v906, 0.0
  %v911 = vsel %vm407, %v907, 0.0
  %912 = vadd.xlane.f32.xlu0 %v911
  %v913 = vpop.xlane.xlu0 %912
  %v914 = vsel %vm407, %v908, 0.0
  %915 = vadd.xlane.f32.xlu0 %v914
  %v916 = vpop.xlane.xlu0 %915
  %v917 = vsel %vm407, %v909, 0.0
  %918 = vadd.xlane.f32.xlu0 %v917
  %v919 = vpop.xlane.xlu0 %918
  %v920 = vsel %vm407, %v910, 0.0
  %921 = vadd.xlane.f32.xlu0 %v920
  %v922 = vpop.xlane.xlu0 %921
  %v923 = vmax.f32 %v913, 1e-30
  %v924 = vmax.f32 %v916, 1e-30
  %v925 = vmax.f32 %v919, 1e-30
  %v926 = vmax.f32 %v922, 1e-30
  %v927 = vrcp.pop %v923
  %v928 = vrcp.pop %v924
  %v929 = vrcp.pop %v925
  %v930 = vrcp.pop %v926
  %v931 = vmul.f32 %v907, %v927
  %v932 = vmul.f32 %v908, %v928
  %v933 = vmul.f32 %v909, %v929
  %v934 = vmul.f32 %v910, %v930
  %v935 = vpack.c.bf16 %v932, %v931
  %v936 = vpack.c.bf16 %v934, %v933
  %937 = vrot.lane.b32.xlu0 %v195, 80
  %v938 = vpop.permute.xlu0 %937
  %939 = vrot.lane.b32.xlu0 %v196, 80
  %v940 = vpop.permute.xlu0 %939
  %941 = vrot.lane.b32.xlu0 %v197, 80
  %v942 = vpop.permute.xlu0 %941
  %943 = vrot.lane.b32.xlu0 %v198, 80
  %v944 = vpop.permute.xlu0 %943
  %v950 = vsel %vm407, %v935, 0
  %v953 = vsel %vm407, %v936, 0
  %955 = vmatprep.subr.bf16.mxu0 0
  %956 = vmatpush1.bf16.msra.mxu0 %v938
  %957 = vmatprep.subr.bf16.mxu0 0
  %958 = vmatpush1.bf16.msra.mxu0 %v940
  %959 = vmatprep.subr.bf16.mxu0 0
  %960 = vmatpush1.bf16.msra.mxu0 %v942
  %961 = vmatprep.subr.bf16.mxu0 0
  %962 = vmatpush1.bf16.msra.mxu0 %v944
  %963 = vmatprep.subr.bf16.mxu0 0
  %964 = vmatpush1.bf16.msra.mxu0 0
  %965 = vmatprep.subr.bf16.mxu0 0
  %966 = vmatpush1.bf16.msra.mxu0 0
  %967 = vmatprep.subr.bf16.mxu0 0
  %968 = vmatpush1.bf16.msra.mxu0 0
  %969 = vmatprep.subr.bf16.mxu0 0
  %970 = vmatpush1.bf16.msra.mxu0 0
  %971 = vmatprep.subr.bf16.mxu0 0
  %972 = vmatpush1.bf16.msra.mxu0 0
  %973 = vmatprep.subr.bf16.mxu0 0
  %974 = vmatpush1.bf16.msra.mxu0 0
  %975 = vmatprep.subr.bf16.mxu0 0
  %976 = vmatpush1.bf16.msra.mxu0 0
  %977 = vmatprep.subr.bf16.mxu0 0
  %978 = vmatpush1.bf16.msra.mxu0 0
  %979 = vmatprep.subr.bf16.mxu0 0
  %980 = vmatpush1.bf16.msra.mxu0 0
  %981 = vmatprep.subr.bf16.mxu0 0
  %982 = vmatpush1.bf16.msra.mxu0 0
  %983 = vmatprep.subr.bf16.mxu0 0
  %984 = vmatpush1.bf16.msra.mxu0 0
  %985 = vmatprep.subr.bf16.mxu0 0
  %986 = vmatpush1.bf16.msra.mxu0 0
  %987 = vmatprep.mubr.bf16.mxu0 0
  %988 = vmatmul.mubr.bf16.gmra.mrb[0].mxu0 %v950
  %v989 = vpop.f32.mrb[0].mxu0
  %v990 = vadd.f32 0.0, %v989
  %v991 = vpop.f32.mrb[0].mxu0
  %v992 = vpop.f32.mrb[0].mxu0
  %v993 = vadd.f32 0.0, %v992
  %v994 = vpop.f32.mrb[0].mxu0
  %995 = vmatprep.mubr.bf16.mxu0 0
  %996 = vmatmul.mubr.bf16.gmra.mrb[0].mxu0 %v953
  %v997 = vpop.f32.mrb[0].mxu0
  %v998 = vadd.f32 0.0, %v997
  %v999 = vpop.f32.mrb[0].mxu0
  %v1000 = vpop.f32.mrb[0].mxu0
  %v1001 = vadd.f32 0.0, %v1000
  %v1002 = vpop.f32.mrb[0].mxu0
  %1003 = vdwg.mxu0
  %1004 = vset.pattern.permute.xlu0 4
  %1005 = vperm.xlu0 %1004, %v341
  %v1006 = vpop.permute.xlu0 %1005
  %1008 = vset.pattern.permute.xlu0 4
  %1009 = vperm.xlu0 %1008, %v344
  %v1010 = vpop.permute.xlu0 %1009
  %1012 = vset.pattern.permute.xlu0 4
  %1013 = vperm.xlu0 %1012, %v349
  %v1014 = vpop.permute.xlu0 %1013
  %1016 = vset.pattern.permute.xlu0 4
  %1017 = vperm.xlu0 %1016, %v352
  %v1018 = vpop.permute.xlu0 %1017
  %v1020 = vlaneseq
  %v1021 = vshrl.u32 %v1020, 7
  %v1022 = vsub.s32 4, %v1021
  %v1023 = vrot.slane %v237, %v1022
  %v1024 = vadd.f32 %v1006, %v1023
  %v1025 = vadd.f32 %v1010, %v1023
  %v1026 = vadd.f32 %v1014, %v1023
  %v1027 = vadd.f32 %v1018, %v1023
  %vm1028 = vcmp.gt.f32.partialorder %v1024, 0.0
  %vm1029 = vcmp.gt.f32.partialorder %v1025, 0.0
  %vm1030 = vcmp.gt.f32.partialorder %v1026, 0.0
  %vm1031 = vcmp.gt.f32.partialorder %v1027, 0.0
  %v1032 = vmul.f32 %v1024, 0.2
  %v1033 = vmul.f32 %v1025, 0.2
  %v1034 = vmul.f32 %v1026, 0.2
  %v1035 = vmul.f32 %v1027, 0.2
  %v1036 = vsel %vm1028, %v1024, %v1032
  %v1037 = vsel %vm1029, %v1025, %v1033
  %v1038 = vsel %vm1030, %v1026, %v1034
  %v1039 = vsel %vm1031, %v1027, %v1035
  %v1040 = vsel %vm359, %v1036, -1e+30
  %v1041 = vsel %vm360, %v1037, -1e+30
  %v1042 = vsel %vm361, %v1038, -1e+30
  %v1043 = vsel %vm362, %v1039, -1e+30
  %v1044 = vsel %vm407, %v1040, -inf
  %1045 = vmax.xlane.f32.xlu0 %v1044
  %v1046 = vpop.xlane.xlu0 %1045
  %v1047 = vsel %vm407, %v1041, -inf
  %1048 = vmax.xlane.f32.xlu0 %v1047
  %v1049 = vpop.xlane.xlu0 %1048
  %v1050 = vsel %vm407, %v1042, -inf
  %1051 = vmax.xlane.f32.xlu0 %v1050
  %v1052 = vpop.xlane.xlu0 %1051
  %v1053 = vsel %vm407, %v1043, -inf
  %1054 = vmax.xlane.f32.xlu0 %v1053
  %v1055 = vpop.xlane.xlu0 %1054
  %v1056 = vsub.f32 %v1040, %v1046
  %v1057 = vsub.f32 %v1041, %v1049
  %v1058 = vsub.f32 %v1042, %v1052
  %v1059 = vsub.f32 %v1043, %v1055
  %v1060 = vmul.f32 %v1056, 1.442695
  %v1061 = vpow.pop %v1060
  %v1062 = vmul.f32 %v1057, 1.442695
  %v1063 = vpow.pop %v1062
  %v1064 = vmul.f32 %v1058, 1.442695
  %v1065 = vpow.pop %v1064
  %v1066 = vmul.f32 %v1059, 1.442695
  %v1067 = vpow.pop %v1066
  %v1068 = vsel %vm359, %v1061, 0.0
  %v1069 = vsel %vm360, %v1063, 0.0
  %v1070 = vsel %vm361, %v1065, 0.0
  %v1071 = vsel %vm362, %v1067, 0.0
  %v1072 = vsel %vm407, %v1068, 0.0
  %1073 = vadd.xlane.f32.xlu0 %v1072
  %v1074 = vpop.xlane.xlu0 %1073
  %v1075 = vsel %vm407, %v1069, 0.0
  %1076 = vadd.xlane.f32.xlu0 %v1075
  %v1077 = vpop.xlane.xlu0 %1076
  %v1078 = vsel %vm407, %v1070, 0.0
  %1079 = vadd.xlane.f32.xlu0 %v1078
  %v1080 = vpop.xlane.xlu0 %1079
  %v1081 = vsel %vm407, %v1071, 0.0
  %1082 = vadd.xlane.f32.xlu0 %v1081
  %v1083 = vpop.xlane.xlu0 %1082
  %v1084 = vmax.f32 %v1074, 1e-30
  %v1085 = vmax.f32 %v1077, 1e-30
  %v1086 = vmax.f32 %v1080, 1e-30
  %v1087 = vmax.f32 %v1083, 1e-30
  %v1088 = vrcp.pop %v1084
  %v1089 = vrcp.pop %v1085
  %v1090 = vrcp.pop %v1086
  %v1091 = vrcp.pop %v1087
  %v1092 = vmul.f32 %v1068, %v1088
  %v1093 = vmul.f32 %v1069, %v1089
  %v1094 = vmul.f32 %v1070, %v1090
  %v1095 = vmul.f32 %v1071, %v1091
  %v1096 = vpack.c.bf16 %v1093, %v1092
  %v1097 = vpack.c.bf16 %v1095, %v1094
  %1098 = vrot.lane.b32.xlu0 %v195, 64
  %v1099 = vpop.permute.xlu0 %1098
  %1100 = vrot.lane.b32.xlu0 %v196, 64
  %v1101 = vpop.permute.xlu0 %1100
  %1102 = vrot.lane.b32.xlu0 %v197, 64
  %v1103 = vpop.permute.xlu0 %1102
  %1104 = vrot.lane.b32.xlu0 %v198, 64
  %v1105 = vpop.permute.xlu0 %1104
  %v1111 = vsel %vm407, %v1096, 0
  %v1114 = vsel %vm407, %v1097, 0
  %1116 = vmatprep.subr.bf16.mxu0 0
  %1117 = vmatpush1.bf16.msra.mxu0 %v1099
  %1118 = vmatprep.subr.bf16.mxu0 0
  %1119 = vmatpush1.bf16.msra.mxu0 %v1101
  %1120 = vmatprep.subr.bf16.mxu0 0
  %1121 = vmatpush1.bf16.msra.mxu0 %v1103
  %1122 = vmatprep.subr.bf16.mxu0 0
  %1123 = vmatpush1.bf16.msra.mxu0 %v1105
  %1124 = vmatprep.subr.bf16.mxu0 0
  %1125 = vmatpush1.bf16.msra.mxu0 0
  %1126 = vmatprep.subr.bf16.mxu0 0
  %1127 = vmatpush1.bf16.msra.mxu0 0
  %1128 = vmatprep.subr.bf16.mxu0 0
  %1129 = vmatpush1.bf16.msra.mxu0 0
  %1130 = vmatprep.subr.bf16.mxu0 0
  %1131 = vmatpush1.bf16.msra.mxu0 0
  %1132 = vmatprep.subr.bf16.mxu0 0
  %1133 = vmatpush1.bf16.msra.mxu0 0
  %1134 = vmatprep.subr.bf16.mxu0 0
  %1135 = vmatpush1.bf16.msra.mxu0 0
  %1136 = vmatprep.subr.bf16.mxu0 0
  %1137 = vmatpush1.bf16.msra.mxu0 0
  %1138 = vmatprep.subr.bf16.mxu0 0
  %1139 = vmatpush1.bf16.msra.mxu0 0
  %1140 = vmatprep.subr.bf16.mxu0 0
  %1141 = vmatpush1.bf16.msra.mxu0 0
  %1142 = vmatprep.subr.bf16.mxu0 0
  %1143 = vmatpush1.bf16.msra.mxu0 0
  %1144 = vmatprep.subr.bf16.mxu0 0
  %1145 = vmatpush1.bf16.msra.mxu0 0
  %1146 = vmatprep.subr.bf16.mxu0 0
  %1147 = vmatpush1.bf16.msra.mxu0 0
  %1148 = vmatprep.mubr.bf16.mxu0 0
  %1149 = vmatmul.mubr.bf16.gmra.mrb[0].mxu0 %v1111
  %v1150 = vpop.f32.mrb[0].mxu0
  %v1151 = vadd.f32 0.0, %v1150
  %v1152 = vpop.f32.mrb[0].mxu0
  %v1153 = vpop.f32.mrb[0].mxu0
  %v1154 = vadd.f32 0.0, %v1153
  %v1155 = vpop.f32.mrb[0].mxu0
  %1156 = vmatprep.mubr.bf16.mxu0 0
  %1157 = vmatmul.mubr.bf16.gmra.mrb[0].mxu0 %v1114
  %v1158 = vpop.f32.mrb[0].mxu0
  %v1159 = vadd.f32 0.0, %v1158
  %v1160 = vpop.f32.mrb[0].mxu0
  %v1161 = vpop.f32.mrb[0].mxu0
  %v1162 = vadd.f32 0.0, %v1161
  %v1163 = vpop.f32.mrb[0].mxu0
  %1164 = vdwg.mxu0
  %1165 = vset.pattern.permute.xlu0 5
  %1166 = vperm.xlu0 %1165, %v341
  %v1167 = vpop.permute.xlu0 %1166
  %1169 = vset.pattern.permute.xlu0 5
  %1170 = vperm.xlu0 %1169, %v344
  %v1171 = vpop.permute.xlu0 %1170
  %1173 = vset.pattern.permute.xlu0 5
  %1174 = vperm.xlu0 %1173, %v349
  %v1175 = vpop.permute.xlu0 %1174
  %1177 = vset.pattern.permute.xlu0 5
  %1178 = vperm.xlu0 %1177, %v352
  %v1179 = vpop.permute.xlu0 %1178
  %v1181 = vlaneseq
  %v1182 = vshrl.u32 %v1181, 7
  %v1183 = vsub.s32 5, %v1182
  %v1184 = vrot.slane %v237, %v1183
  %v1185 = vadd.f32 %v1167, %v1184
  %v1186 = vadd.f32 %v1171, %v1184
  %v1187 = vadd.f32 %v1175, %v1184
  %v1188 = vadd.f32 %v1179, %v1184
  %vm1189 = vcmp.gt.f32.partialorder %v1185, 0.0
  %vm1190 = vcmp.gt.f32.partialorder %v1186, 0.0
  %vm1191 = vcmp.gt.f32.partialorder %v1187, 0.0
  %vm1192 = vcmp.gt.f32.partialorder %v1188, 0.0
  %v1193 = vmul.f32 %v1185, 0.2
  %v1194 = vmul.f32 %v1186, 0.2
  %v1195 = vmul.f32 %v1187, 0.2
  %v1196 = vmul.f32 %v1188, 0.2
  %v1197 = vsel %vm1189, %v1185, %v1193
  %v1198 = vsel %vm1190, %v1186, %v1194
  %v1199 = vsel %vm1191, %v1187, %v1195
  %v1200 = vsel %vm1192, %v1188, %v1196
  %v1201 = vsel %vm359, %v1197, -1e+30
  %v1202 = vsel %vm360, %v1198, -1e+30
  %v1203 = vsel %vm361, %v1199, -1e+30
  %v1204 = vsel %vm362, %v1200, -1e+30
  %v1205 = vsel %vm407, %v1201, -inf
  %1206 = vmax.xlane.f32.xlu0 %v1205
  %v1207 = vpop.xlane.xlu0 %1206
  %v1208 = vsel %vm407, %v1202, -inf
  %1209 = vmax.xlane.f32.xlu0 %v1208
  %v1210 = vpop.xlane.xlu0 %1209
  %v1211 = vsel %vm407, %v1203, -inf
  %1212 = vmax.xlane.f32.xlu0 %v1211
  %v1213 = vpop.xlane.xlu0 %1212
  %v1214 = vsel %vm407, %v1204, -inf
  %1215 = vmax.xlane.f32.xlu0 %v1214
  %v1216 = vpop.xlane.xlu0 %1215
  %v1217 = vsub.f32 %v1201, %v1207
  %v1218 = vsub.f32 %v1202, %v1210
  %v1219 = vsub.f32 %v1203, %v1213
  %v1220 = vsub.f32 %v1204, %v1216
  %v1221 = vmul.f32 %v1217, 1.442695
  %v1222 = vpow.pop %v1221
  %v1223 = vmul.f32 %v1218, 1.442695
  %v1224 = vpow.pop %v1223
  %v1225 = vmul.f32 %v1219, 1.442695
  %v1226 = vpow.pop %v1225
  %v1227 = vmul.f32 %v1220, 1.442695
  %v1228 = vpow.pop %v1227
  %v1229 = vsel %vm359, %v1222, 0.0
  %v1230 = vsel %vm360, %v1224, 0.0
  %v1231 = vsel %vm361, %v1226, 0.0
  %v1232 = vsel %vm362, %v1228, 0.0
  %v1233 = vsel %vm407, %v1229, 0.0
  %1234 = vadd.xlane.f32.xlu0 %v1233
  %v1235 = vpop.xlane.xlu0 %1234
  %v1236 = vsel %vm407, %v1230, 0.0
  %1237 = vadd.xlane.f32.xlu0 %v1236
  %v1238 = vpop.xlane.xlu0 %1237
  %v1239 = vsel %vm407, %v1231, 0.0
  %1240 = vadd.xlane.f32.xlu0 %v1239
  %v1241 = vpop.xlane.xlu0 %1240
  %v1242 = vsel %vm407, %v1232, 0.0
  %1243 = vadd.xlane.f32.xlu0 %v1242
  %v1244 = vpop.xlane.xlu0 %1243
  %v1245 = vmax.f32 %v1235, 1e-30
  %v1246 = vmax.f32 %v1238, 1e-30
  %v1247 = vmax.f32 %v1241, 1e-30
  %v1248 = vmax.f32 %v1244, 1e-30
  %v1249 = vrcp.pop %v1245
  %v1250 = vrcp.pop %v1246
  %v1251 = vrcp.pop %v1247
  %v1252 = vrcp.pop %v1248
  %v1253 = vmul.f32 %v1229, %v1249
  %v1254 = vmul.f32 %v1230, %v1250
  %v1255 = vmul.f32 %v1231, %v1251
  %v1256 = vmul.f32 %v1232, %v1252
  %v1257 = vpack.c.bf16 %v1254, %v1253
  %v1258 = vpack.c.bf16 %v1256, %v1255
  %1259 = vrot.lane.b32.xlu0 %v195, 48
  %v1260 = vpop.permute.xlu0 %1259
  %1261 = vrot.lane.b32.xlu0 %v196, 48
  %v1262 = vpop.permute.xlu0 %1261
  %1263 = vrot.lane.b32.xlu0 %v197, 48
  %v1264 = vpop.permute.xlu0 %1263
  %1265 = vrot.lane.b32.xlu0 %v198, 48
  %v1266 = vpop.permute.xlu0 %1265
  %v1272 = vsel %vm407, %v1257, 0
  %v1275 = vsel %vm407, %v1258, 0
  %1277 = vmatprep.subr.bf16.mxu0 0
  %1278 = vmatpush1.bf16.msra.mxu0 %v1260
  %1279 = vmatprep.subr.bf16.mxu0 0
  %1280 = vmatpush1.bf16.msra.mxu0 %v1262
  %1281 = vmatprep.subr.bf16.mxu0 0
  %1282 = vmatpush1.bf16.msra.mxu0 %v1264
  %1283 = vmatprep.subr.bf16.mxu0 0
  %1284 = vmatpush1.bf16.msra.mxu0 %v1266
  %1285 = vmatprep.subr.bf16.mxu0 0
  %1286 = vmatpush1.bf16.msra.mxu0 0
  %1287 = vmatprep.subr.bf16.mxu0 0
  %1288 = vmatpush1.bf16.msra.mxu0 0
  %1289 = vmatprep.subr.bf16.mxu0 0
  %1290 = vmatpush1.bf16.msra.mxu0 0
  %1291 = vmatprep.subr.bf16.mxu0 0
  %1292 = vmatpush1.bf16.msra.mxu0 0
  %1293 = vmatprep.subr.bf16.mxu0 0
  %1294 = vmatpush1.bf16.msra.mxu0 0
  %1295 = vmatprep.subr.bf16.mxu0 0
  %1296 = vmatpush1.bf16.msra.mxu0 0
  %1297 = vmatprep.subr.bf16.mxu0 0
  %1298 = vmatpush1.bf16.msra.mxu0 0
  %1299 = vmatprep.subr.bf16.mxu0 0
  %1300 = vmatpush1.bf16.msra.mxu0 0
  %1301 = vmatprep.subr.bf16.mxu0 0
  %1302 = vmatpush1.bf16.msra.mxu0 0
  %1303 = vmatprep.subr.bf16.mxu0 0
  %1304 = vmatpush1.bf16.msra.mxu0 0
  %1305 = vmatprep.subr.bf16.mxu0 0
  %1306 = vmatpush1.bf16.msra.mxu0 0
  %1307 = vmatprep.subr.bf16.mxu0 0
  %1308 = vmatpush1.bf16.msra.mxu0 0
  %1309 = vmatprep.mubr.bf16.mxu0 0
  %1310 = vmatmul.mubr.bf16.gmra.mrb[0].mxu0 %v1272
  %v1311 = vpop.f32.mrb[0].mxu0
  %v1312 = vadd.f32 0.0, %v1311
  %v1313 = vpop.f32.mrb[0].mxu0
  %v1314 = vpop.f32.mrb[0].mxu0
  %v1315 = vadd.f32 0.0, %v1314
  %v1316 = vpop.f32.mrb[0].mxu0
  %1317 = vmatprep.mubr.bf16.mxu0 0
  %1318 = vmatmul.mubr.bf16.gmra.mrb[0].mxu0 %v1275
  %v1319 = vpop.f32.mrb[0].mxu0
  %v1320 = vadd.f32 0.0, %v1319
  %v1321 = vpop.f32.mrb[0].mxu0
  %v1322 = vpop.f32.mrb[0].mxu0
  %v1323 = vadd.f32 0.0, %v1322
  %v1324 = vpop.f32.mrb[0].mxu0
  %1325 = vdwg.mxu0
  %1326 = vset.pattern.permute.xlu0 6
  %1327 = vperm.xlu0 %1326, %v341
  %v1328 = vpop.permute.xlu0 %1327
  %1330 = vset.pattern.permute.xlu0 6
  %1331 = vperm.xlu0 %1330, %v344
  %v1332 = vpop.permute.xlu0 %1331
  %1334 = vset.pattern.permute.xlu0 6
  %1335 = vperm.xlu0 %1334, %v349
  %v1336 = vpop.permute.xlu0 %1335
  %1338 = vset.pattern.permute.xlu0 6
  %1339 = vperm.xlu0 %1338, %v352
  %v1340 = vpop.permute.xlu0 %1339
  %v1342 = vlaneseq
  %v1343 = vshrl.u32 %v1342, 7
  %v1344 = vsub.s32 6, %v1343
  %v1345 = vrot.slane %v237, %v1344
  %v1346 = vadd.f32 %v1328, %v1345
  %v1347 = vadd.f32 %v1332, %v1345
  %v1348 = vadd.f32 %v1336, %v1345
  %v1349 = vadd.f32 %v1340, %v1345
  %vm1350 = vcmp.gt.f32.partialorder %v1346, 0.0
  %vm1351 = vcmp.gt.f32.partialorder %v1347, 0.0
  %vm1352 = vcmp.gt.f32.partialorder %v1348, 0.0
  %vm1353 = vcmp.gt.f32.partialorder %v1349, 0.0
  %v1354 = vmul.f32 %v1346, 0.2
  %v1355 = vmul.f32 %v1347, 0.2
  %v1356 = vmul.f32 %v1348, 0.2
  %v1357 = vmul.f32 %v1349, 0.2
  %v1358 = vsel %vm1350, %v1346, %v1354
  %v1359 = vsel %vm1351, %v1347, %v1355
  %v1360 = vsel %vm1352, %v1348, %v1356
  %v1361 = vsel %vm1353, %v1349, %v1357
  %v1362 = vsel %vm359, %v1358, -1e+30
  %v1363 = vsel %vm360, %v1359, -1e+30
  %v1364 = vsel %vm361, %v1360, -1e+30
  %v1365 = vsel %vm362, %v1361, -1e+30
  %v1366 = vsel %vm407, %v1362, -inf
  %1367 = vmax.xlane.f32.xlu0 %v1366
  %v1368 = vpop.xlane.xlu0 %1367
  %v1369 = vsel %vm407, %v1363, -inf
  %1370 = vmax.xlane.f32.xlu0 %v1369
  %v1371 = vpop.xlane.xlu0 %1370
  %v1372 = vsel %vm407, %v1364, -inf
  %1373 = vmax.xlane.f32.xlu0 %v1372
  %v1374 = vpop.xlane.xlu0 %1373
  %v1375 = vsel %vm407, %v1365, -inf
  %1376 = vmax.xlane.f32.xlu0 %v1375
  %v1377 = vpop.xlane.xlu0 %1376
  %v1378 = vsub.f32 %v1362, %v1368
  %v1379 = vsub.f32 %v1363, %v1371
  %v1380 = vsub.f32 %v1364, %v1374
  %v1381 = vsub.f32 %v1365, %v1377
  %v1382 = vmul.f32 %v1378, 1.442695
  %v1383 = vpow.pop %v1382
  %v1384 = vmul.f32 %v1379, 1.442695
  %v1385 = vpow.pop %v1384
  %v1386 = vmul.f32 %v1380, 1.442695
  %v1387 = vpow.pop %v1386
  %v1388 = vmul.f32 %v1381, 1.442695
  %v1389 = vpow.pop %v1388
  %v1390 = vsel %vm359, %v1383, 0.0
  %v1391 = vsel %vm360, %v1385, 0.0
  %v1392 = vsel %vm361, %v1387, 0.0
  %v1393 = vsel %vm362, %v1389, 0.0
  %v1394 = vsel %vm407, %v1390, 0.0
  %1395 = vadd.xlane.f32.xlu0 %v1394
  %v1396 = vpop.xlane.xlu0 %1395
  %v1397 = vsel %vm407, %v1391, 0.0
  %1398 = vadd.xlane.f32.xlu0 %v1397
  %v1399 = vpop.xlane.xlu0 %1398
  %v1400 = vsel %vm407, %v1392, 0.0
  %1401 = vadd.xlane.f32.xlu0 %v1400
  %v1402 = vpop.xlane.xlu0 %1401
  %v1403 = vsel %vm407, %v1393, 0.0
  %1404 = vadd.xlane.f32.xlu0 %v1403
  %v1405 = vpop.xlane.xlu0 %1404
  %v1406 = vmax.f32 %v1396, 1e-30
  %v1407 = vmax.f32 %v1399, 1e-30
  %v1408 = vmax.f32 %v1402, 1e-30
  %v1409 = vmax.f32 %v1405, 1e-30
  %v1410 = vrcp.pop %v1406
  %v1411 = vrcp.pop %v1407
  %v1412 = vrcp.pop %v1408
  %v1413 = vrcp.pop %v1409
  %v1414 = vmul.f32 %v1390, %v1410
  %v1415 = vmul.f32 %v1391, %v1411
  %v1416 = vmul.f32 %v1392, %v1412
  %v1417 = vmul.f32 %v1393, %v1413
  %v1418 = vpack.c.bf16 %v1415, %v1414
  %v1419 = vpack.c.bf16 %v1417, %v1416
  %1420 = vrot.lane.b32.xlu0 %v195, 32
  %v1421 = vpop.permute.xlu0 %1420
  %1422 = vrot.lane.b32.xlu0 %v196, 32
  %v1423 = vpop.permute.xlu0 %1422
  %1424 = vrot.lane.b32.xlu0 %v197, 32
  %v1425 = vpop.permute.xlu0 %1424
  %1426 = vrot.lane.b32.xlu0 %v198, 32
  %v1427 = vpop.permute.xlu0 %1426
  %v1433 = vsel %vm407, %v1418, 0
  %v1436 = vsel %vm407, %v1419, 0
  %1438 = vmatprep.subr.bf16.mxu0 0
  %1439 = vmatpush1.bf16.msra.mxu0 %v1421
  %1440 = vmatprep.subr.bf16.mxu0 0
  %1441 = vmatpush1.bf16.msra.mxu0 %v1423
  %1442 = vmatprep.subr.bf16.mxu0 0
  %1443 = vmatpush1.bf16.msra.mxu0 %v1425
  %1444 = vmatprep.subr.bf16.mxu0 0
  %1445 = vmatpush1.bf16.msra.mxu0 %v1427
  %1446 = vmatprep.subr.bf16.mxu0 0
  %1447 = vmatpush1.bf16.msra.mxu0 0
  %1448 = vmatprep.subr.bf16.mxu0 0
  %1449 = vmatpush1.bf16.msra.mxu0 0
  %1450 = vmatprep.subr.bf16.mxu0 0
  %1451 = vmatpush1.bf16.msra.mxu0 0
  %1452 = vmatprep.subr.bf16.mxu0 0
  %1453 = vmatpush1.bf16.msra.mxu0 0
  %1454 = vmatprep.subr.bf16.mxu0 0
  %1455 = vmatpush1.bf16.msra.mxu0 0
  %1456 = vmatprep.subr.bf16.mxu0 0
  %1457 = vmatpush1.bf16.msra.mxu0 0
  %1458 = vmatprep.subr.bf16.mxu0 0
  %1459 = vmatpush1.bf16.msra.mxu0 0
  %1460 = vmatprep.subr.bf16.mxu0 0
  %1461 = vmatpush1.bf16.msra.mxu0 0
  %1462 = vmatprep.subr.bf16.mxu0 0
  %1463 = vmatpush1.bf16.msra.mxu0 0
  %1464 = vmatprep.subr.bf16.mxu0 0
  %1465 = vmatpush1.bf16.msra.mxu0 0
  %1466 = vmatprep.subr.bf16.mxu0 0
  %1467 = vmatpush1.bf16.msra.mxu0 0
  %1468 = vmatprep.subr.bf16.mxu0 0
  %1469 = vmatpush1.bf16.msra.mxu0 0
  %1470 = vmatprep.mubr.bf16.mxu0 0
  %1471 = vmatmul.mubr.bf16.gmra.mrb[0].mxu0 %v1433
  %v1472 = vpop.f32.mrb[0].mxu0
  %v1473 = vadd.f32 0.0, %v1472
  %v1474 = vpop.f32.mrb[0].mxu0
  %v1475 = vpop.f32.mrb[0].mxu0
  %v1476 = vadd.f32 0.0, %v1475
  %v1477 = vpop.f32.mrb[0].mxu0
  %1478 = vmatprep.mubr.bf16.mxu0 0
  %1479 = vmatmul.mubr.bf16.gmra.mrb[0].mxu0 %v1436
  %v1480 = vpop.f32.mrb[0].mxu0
  %v1481 = vadd.f32 0.0, %v1480
  %v1482 = vpop.f32.mrb[0].mxu0
  %v1483 = vpop.f32.mrb[0].mxu0
  %v1484 = vadd.f32 0.0, %v1483
  %v1485 = vpop.f32.mrb[0].mxu0
  %1486 = vdwg.mxu0
  %1487 = vset.pattern.permute.xlu0 7
  %1488 = vperm.xlu0 %1487, %v341
  %v1489 = vpop.permute.xlu0 %1488
  %1491 = vset.pattern.permute.xlu0 7
  %1492 = vperm.xlu0 %1491, %v344
  %v1493 = vpop.permute.xlu0 %1492
  %1495 = vset.pattern.permute.xlu0 7
  %1496 = vperm.xlu0 %1495, %v349
  %v1497 = vpop.permute.xlu0 %1496
  %1499 = vset.pattern.permute.xlu0 7
  %1500 = vperm.xlu0 %1499, %v352
  %v1501 = vpop.permute.xlu0 %1500
  %v1503 = vlaneseq
  %v1504 = vshrl.u32 %v1503, 7
  %v1505 = vsub.s32 7, %v1504
  %v1506 = vrot.slane %v237, %v1505
  %v1507 = vadd.f32 %v1489, %v1506
  %v1508 = vadd.f32 %v1493, %v1506
  %v1509 = vadd.f32 %v1497, %v1506
  %v1510 = vadd.f32 %v1501, %v1506
  %vm1511 = vcmp.gt.f32.partialorder %v1507, 0.0
  %vm1512 = vcmp.gt.f32.partialorder %v1508, 0.0
  %vm1513 = vcmp.gt.f32.partialorder %v1509, 0.0
  %vm1514 = vcmp.gt.f32.partialorder %v1510, 0.0
  %v1515 = vmul.f32 %v1507, 0.2
  %v1516 = vmul.f32 %v1508, 0.2
  %v1517 = vmul.f32 %v1509, 0.2
  %v1518 = vmul.f32 %v1510, 0.2
  %v1519 = vsel %vm1511, %v1507, %v1515
  %v1520 = vsel %vm1512, %v1508, %v1516
  %v1521 = vsel %vm1513, %v1509, %v1517
  %v1522 = vsel %vm1514, %v1510, %v1518
  %v1523 = vsel %vm359, %v1519, -1e+30
  %v1524 = vsel %vm360, %v1520, -1e+30
  %v1525 = vsel %vm361, %v1521, -1e+30
  %v1526 = vsel %vm362, %v1522, -1e+30
  %v1527 = vsel %vm407, %v1523, -inf
  %1528 = vmax.xlane.f32.xlu0 %v1527
  %v1529 = vpop.xlane.xlu0 %1528
  %v1530 = vsel %vm407, %v1524, -inf
  %1531 = vmax.xlane.f32.xlu0 %v1530
  %v1532 = vpop.xlane.xlu0 %1531
  %v1533 = vsel %vm407, %v1525, -inf
  %1534 = vmax.xlane.f32.xlu0 %v1533
  %v1535 = vpop.xlane.xlu0 %1534
  %v1536 = vsel %vm407, %v1526, -inf
  %1537 = vmax.xlane.f32.xlu0 %v1536
  %v1538 = vpop.xlane.xlu0 %1537
  %v1539 = vsub.f32 %v1523, %v1529
  %v1540 = vsub.f32 %v1524, %v1532
  %v1541 = vsub.f32 %v1525, %v1535
  %v1542 = vsub.f32 %v1526, %v1538
  %v1543 = vmul.f32 %v1539, 1.442695
  %v1544 = vpow.pop %v1543
  %v1545 = vmul.f32 %v1540, 1.442695
  %v1546 = vpow.pop %v1545
  %v1547 = vmul.f32 %v1541, 1.442695
  %v1548 = vpow.pop %v1547
  %v1549 = vmul.f32 %v1542, 1.442695
  %v1550 = vpow.pop %v1549
  %v1551 = vsel %vm359, %v1544, 0.0
  %v1552 = vsel %vm360, %v1546, 0.0
  %v1553 = vsel %vm361, %v1548, 0.0
  %v1554 = vsel %vm362, %v1550, 0.0
  %v1555 = vsel %vm407, %v1551, 0.0
  %1556 = vadd.xlane.f32.xlu0 %v1555
  %v1557 = vpop.xlane.xlu0 %1556
  %v1558 = vsel %vm407, %v1552, 0.0
  %1559 = vadd.xlane.f32.xlu0 %v1558
  %v1560 = vpop.xlane.xlu0 %1559
  %v1561 = vsel %vm407, %v1553, 0.0
  %1562 = vadd.xlane.f32.xlu0 %v1561
  %v1563 = vpop.xlane.xlu0 %1562
  %v1564 = vsel %vm407, %v1554, 0.0
  %1565 = vadd.xlane.f32.xlu0 %v1564
  %v1566 = vpop.xlane.xlu0 %1565
  %v1567 = vmax.f32 %v1557, 1e-30
  %v1568 = vmax.f32 %v1560, 1e-30
  %v1569 = vmax.f32 %v1563, 1e-30
  %v1570 = vmax.f32 %v1566, 1e-30
  %v1571 = vrcp.pop %v1567
  %v1572 = vrcp.pop %v1568
  %v1573 = vrcp.pop %v1569
  %v1574 = vrcp.pop %v1570
  %v1575 = vmul.f32 %v1551, %v1571
  %v1576 = vmul.f32 %v1552, %v1572
  %v1577 = vmul.f32 %v1553, %v1573
  %v1578 = vmul.f32 %v1554, %v1574
  %v1579 = vpack.c.bf16 %v1576, %v1575
  %v1580 = vpack.c.bf16 %v1578, %v1577
  %1581 = vrot.lane.b32.xlu0 %v195, 16
  %v1582 = vpop.permute.xlu0 %1581
  %1583 = vrot.lane.b32.xlu0 %v196, 16
  %v1584 = vpop.permute.xlu0 %1583
  %1585 = vrot.lane.b32.xlu0 %v197, 16
  %v1586 = vpop.permute.xlu0 %1585
  %1587 = vrot.lane.b32.xlu0 %v198, 16
  %v1588 = vpop.permute.xlu0 %1587
  %v1594 = vsel %vm407, %v1579, 0
  %v1597 = vsel %vm407, %v1580, 0
  %1599 = vmatprep.subr.bf16.mxu0 0
  %1600 = vmatpush1.bf16.msra.mxu0 %v1582
  %1601 = vmatprep.subr.bf16.mxu0 0
  %1602 = vmatpush1.bf16.msra.mxu0 %v1584
  %1603 = vmatprep.subr.bf16.mxu0 0
  %1604 = vmatpush1.bf16.msra.mxu0 %v1586
  %1605 = vmatprep.subr.bf16.mxu0 0
  %1606 = vmatpush1.bf16.msra.mxu0 %v1588
  %1607 = vmatprep.subr.bf16.mxu0 0
  %1608 = vmatpush1.bf16.msra.mxu0 0
  %1609 = vmatprep.subr.bf16.mxu0 0
  %1610 = vmatpush1.bf16.msra.mxu0 0
  %1611 = vmatprep.subr.bf16.mxu0 0
  %1612 = vmatpush1.bf16.msra.mxu0 0
  %1613 = vmatprep.subr.bf16.mxu0 0
  %1614 = vmatpush1.bf16.msra.mxu0 0
  %1615 = vmatprep.subr.bf16.mxu0 0
  %1616 = vmatpush1.bf16.msra.mxu0 0
  %1617 = vmatprep.subr.bf16.mxu0 0
  %1618 = vmatpush1.bf16.msra.mxu0 0
  %1619 = vmatprep.subr.bf16.mxu0 0
  %1620 = vmatpush1.bf16.msra.mxu0 0
  %1621 = vmatprep.subr.bf16.mxu0 0
  %1622 = vmatpush1.bf16.msra.mxu0 0
  %1623 = vmatprep.subr.bf16.mxu0 0
  %1624 = vmatpush1.bf16.msra.mxu0 0
  %1625 = vmatprep.subr.bf16.mxu0 0
  %1626 = vmatpush1.bf16.msra.mxu0 0
  %1627 = vmatprep.subr.bf16.mxu0 0
  %1628 = vmatpush1.bf16.msra.mxu0 0
  %1629 = vmatprep.subr.bf16.mxu0 0
  %1630 = vmatpush1.bf16.msra.mxu0 0
  %1631 = vmatprep.mubr.bf16.mxu0 0
  %1632 = vmatmul.mubr.bf16.gmra.mrb[0].mxu0 %v1594
  %v1633 = vpop.f32.mrb[0].mxu0
  %v1634 = vadd.f32 0.0, %v1633
  %v1635 = vpop.f32.mrb[0].mxu0
  %v1636 = vpop.f32.mrb[0].mxu0
  %v1637 = vadd.f32 0.0, %v1636
  %v1638 = vpop.f32.mrb[0].mxu0
  %1639 = vmatprep.mubr.bf16.mxu0 0
  %1640 = vmatmul.mubr.bf16.gmra.mrb[0].mxu0 %v1597
  %v1641 = vpop.f32.mrb[0].mxu0
  %v1642 = vadd.f32 0.0, %v1641
  %v1643 = vpop.f32.mrb[0].mxu0
  %v1644 = vpop.f32.mrb[0].mxu0
  %v1645 = vadd.f32 0.0, %v1644
  %v1646 = vpop.f32.mrb[0].mxu0
  %1647 = vdwg.mxu0
  %1652 = vrot.lane.b32.xlu0 %v668, 16
  %v1653 = vpop.permute.xlu0 %1652
  %1654 = vrot.lane.b32.xlu0 %v671, 16
  %v1655 = vpop.permute.xlu0 %1654
  %1656 = vrot.lane.b32.xlu0 %v676, 16
  %v1657 = vpop.permute.xlu0 %1656
  %1658 = vrot.lane.b32.xlu0 %v679, 16
  %v1659 = vpop.permute.xlu0 %1658
  %1668 = vrot.lane.b32.xlu0 %v829, 32
  %v1669 = vpop.permute.xlu0 %1668
  %1670 = vrot.lane.b32.xlu0 %v832, 32
  %v1671 = vpop.permute.xlu0 %1670
  %1672 = vrot.lane.b32.xlu0 %v837, 32
  %v1673 = vpop.permute.xlu0 %1672
  %1674 = vrot.lane.b32.xlu0 %v840, 32
  %v1675 = vpop.permute.xlu0 %1674
  %1684 = vrot.lane.b32.xlu0 %v990, 48
  %v1685 = vpop.permute.xlu0 %1684
  %1686 = vrot.lane.b32.xlu0 %v993, 48
  %v1687 = vpop.permute.xlu0 %1686
  %1688 = vrot.lane.b32.xlu0 %v998, 48
  %v1689 = vpop.permute.xlu0 %1688
  %1690 = vrot.lane.b32.xlu0 %v1001, 48
  %v1691 = vpop.permute.xlu0 %1690
  %1700 = vrot.lane.b32.xlu0 %v1151, 64
  %v1701 = vpop.permute.xlu0 %1700
  %1702 = vrot.lane.b32.xlu0 %v1154, 64
  %v1703 = vpop.permute.xlu0 %1702
  %1704 = vrot.lane.b32.xlu0 %v1159, 64
  %v1705 = vpop.permute.xlu0 %1704
  %1706 = vrot.lane.b32.xlu0 %v1162, 64
  %v1707 = vpop.permute.xlu0 %1706
  %1716 = vrot.lane.b32.xlu0 %v1312, 80
  %v1717 = vpop.permute.xlu0 %1716
  %1718 = vrot.lane.b32.xlu0 %v1315, 80
  %v1719 = vpop.permute.xlu0 %1718
  %1720 = vrot.lane.b32.xlu0 %v1320, 80
  %v1721 = vpop.permute.xlu0 %1720
  %1722 = vrot.lane.b32.xlu0 %v1323, 80
  %v1723 = vpop.permute.xlu0 %1722
  %1732 = vrot.lane.b32.xlu0 %v1473, 96
  %v1733 = vpop.permute.xlu0 %1732
  %1734 = vrot.lane.b32.xlu0 %v1476, 96
  %v1735 = vpop.permute.xlu0 %1734
  %1736 = vrot.lane.b32.xlu0 %v1481, 96
  %v1737 = vpop.permute.xlu0 %1736
  %1738 = vrot.lane.b32.xlu0 %v1484, 96
  %v1739 = vpop.permute.xlu0 %1738
  %1748 = vrot.lane.b32.xlu0 %v1634, 112
  %v1749 = vpop.permute.xlu0 %1748
  %1750 = vrot.lane.b32.xlu0 %v1637, 112
  %v1751 = vpop.permute.xlu0 %1750
  %1752 = vrot.lane.b32.xlu0 %v1642, 112
  %v1753 = vpop.permute.xlu0 %1752
  %1754 = vrot.lane.b32.xlu0 %v1645, 112
  %v1755 = vpop.permute.xlu0 %1754
  %vm1760 = vcmask 130048
  %v1761 = vsel %vm1760, %v503, %v1653
  %v1762 = vsel %vm1760, %v506, %v1655
  %v1763 = vsel %vm1760, %v511, %v1657
  %v1764 = vsel %vm1760, %v514, %v1659
  %v1765 = vsel %vm52, %v1761, %v1669
  %v1766 = vsel %vm52, %v1762, %v1671
  %v1767 = vsel %vm52, %v1763, %v1673
  %v1768 = vsel %vm52, %v1764, %v1675
  %vm1769 = vcmask 392192
  %v1770 = vsel %vm1769, %v1765, %v1685
  %v1771 = vsel %vm1769, %v1766, %v1687
  %v1772 = vsel %vm1769, %v1767, %v1689
  %v1773 = vsel %vm1769, %v1768, %v1691
  %v1774 = vsel %vm407, %v1770, %v1701
  %v1775 = vsel %vm407, %v1771, %v1703
  %v1776 = vsel %vm407, %v1772, %v1705
  %v1777 = vsel %vm407, %v1773, %v1707
  %vm1778 = vcmask 654336
  %v1779 = vsel %vm1778, %v1774, %v1717
  %v1780 = vsel %vm1778, %v1775, %v1719
  %v1781 = vsel %vm1778, %v1776, %v1721
  %v1782 = vsel %vm1778, %v1777, %v1723
  %vm1783 = vcmask 785408
  %v1784 = vsel %vm1783, %v1779, %v1733
  %v1785 = vsel %vm1783, %v1780, %v1735
  %v1786 = vsel %vm1783, %v1781, %v1737
  %v1787 = vsel %vm1783, %v1782, %v1739
  %vm1788 = vcmask 916480
  %v1789 = vsel %vm1788, %v1784, %v1749
  %v1790 = vsel %vm1788, %v1785, %v1751
  %v1791 = vsel %vm1788, %v1786, %v1753
  %v1792 = vsel %vm1788, %v1787, %v1755
  %v1793 = vmax.f32 %v1789, 0.0
  %v1794 = vmax.f32 %v1790, 0.0
  %v1795 = vmax.f32 %v1791, 0.0
  %v1796 = vmax.f32 %v1792, 0.0
  %1797 = vst [vmem:[%s6] sm:$0xff] %v1793
  %1798 = vst [vmem:[%s6 + $0x8] sm:$0xff] %v1794
  %1799 = vst [vmem:[%s6 + $0x10] sm:$0xff] %v1795
  %1800 = vst [vmem:[%s6 + $0x18] sm:$0xff] %v1796
  // Predicated region
  $region26: #{_lambda_.2} parent=0 // pred_check
    _
  $region27: #{_lambda_.2} parent=0 // pred_check_branch
    %1802 = sbr.rel (0) target = $region29
  $region28: #{_lambda_.2} parent=0 // pred_region
    _
  $region29: #{_lambda_.2} parent=0 // pred_fallthru
    _
  // Predicated region
  $region30: #{_lambda_.2} parent=0 // pred_check
    _
  $region31: #{_lambda_.2} parent=0 // pred_check_branch
    %1804 = sbr.rel (0) target = $region33
  $region32: #{_lambda_.2} parent=0 // pred_region
    _
  $region33: #{_lambda_.2} parent=0 // pred_fallthru
    _

// kernel: _lambda_.3
$region0: #{_lambda_.3}
  #allocation0 [shape = 'u32[]', space=smem, size = 0x4, offset = 0x4, fixed_abs, tag = 'smem constant byte address 0x4 - core index']
  #allocation1 [shape = 'u32[144,128]{1,0:T(1,128)}', space=vmem, size = 0x12000, scoped, tag = 'internal scratch']
  %s0 = inlined_call_operand.vmem [shape: f32[32,128], index: 0, kind: input, shape index: {}]
  %s1 = inlined_call_operand.vmem [shape: bf16[128,64], index: 1, kind: input, shape index: {}]
  %s2 = inlined_call_operand.vmem [shape: bf16[128,64], index: 2, kind: input, shape index: {}]
  %s3 = inlined_call_operand.vmem [shape: bf16[8,64], index: 3, kind: input, shape index: {}]
  %s4 = inlined_call_operand.vmem [shape: bf16[64,8], index: 4, kind: input, shape index: {}]
  %s5 = inlined_call_operand.vmem [shape: f32[16,32], index: 5, kind: input, shape index: {}]
  %s6 = inlined_call_operand.vmem [shape: f32[16,8], index: 6, kind: output, shape index: {}]
  %s7 = sld [smem:[#allocation0]]
  $region34: #{_lambda_.3} parent=0
    _
  %s9 = ssub.s32 1, %s7
  %s10 = scalar_select 0, %s9, %s7
  // Predicated region
  $region2: #{_lambda_.3} parent=0 // pred_check
    _
  $region3: #{_lambda_.3} parent=0 // pred_check_branch
    %12 = sbr.rel (0) target = $region5
  $region4: #{_lambda_.3} parent=0 // pred_region
    _
  $region5: #{_lambda_.3} parent=0 // pred_fallthru
    _
  // Predicated region
  $region6: #{_lambda_.3} parent=0 // pred_check
    _
  $region7: #{_lambda_.3} parent=0 // pred_check_branch
    %14 = sbr.rel (0) target = $region9
  $region8: #{_lambda_.3} parent=0 // pred_region
    _
  $region9: #{_lambda_.3} parent=0 // pred_fallthru
    _
  // Predicated region
  $region10: #{_lambda_.3} parent=0 // pred_check
    _
  $region11: #{_lambda_.3} parent=0 // pred_check_branch
    %16 = sbr.rel (0) target = $region13
  $region12: #{_lambda_.3} parent=0 // pred_region
    _
  $region13: #{_lambda_.3} parent=0 // pred_fallthru
    _
  // Predicated region
  $region14: #{_lambda_.3} parent=0 // pred_check
    _
  $region15: #{_lambda_.3} parent=0 // pred_check_branch
    %18 = sbr.rel (0) target = $region17
  $region16: #{_lambda_.3} parent=0 // pred_region
    _
  $region17: #{_lambda_.3} parent=0 // pred_fallthru
    _
  // Predicated region
  $region18: #{_lambda_.3} parent=0 // pred_check
    _
  $region19: #{_lambda_.3} parent=0 // pred_check_branch
    %20 = sbr.rel (0) target = $region21
  $region20: #{_lambda_.3} parent=0 // pred_region
    _
  $region21: #{_lambda_.3} parent=0 // pred_fallthru
    _
  // Predicated region
  $region22: #{_lambda_.3} parent=0 // pred_check
    _
  $region23: #{_lambda_.3} parent=0 // pred_check_branch
    %22 = sbr.rel (0) target = $region25
  $region24: #{_lambda_.3} parent=0 // pred_region
    _
  $region25: #{_lambda_.3} parent=0 // pred_fallthru
    _
  %v24 = vld [vmem:[%s0] sm:$0xff]
  %v25 = vld [vmem:[%s0 + $0x8] sm:$0xff]
  %v26 = vld [vmem:[%s0 + $0x10] sm:$0xff]
  %v27 = vld [vmem:[%s0 + $0x18] sm:$0xff]
  %v28 = vpack.c.bf16 %v25, %v24
  %v29 = vpack.c.bf16 %v27, %v26
  %v30 = vld [vmem:[%s1] sm:$0xf]
  %v31 = vld [vmem:[%s1 + $0x4] sm:$0xf]
  %v32 = vld [vmem:[%s1 + $0x8] sm:$0xf]
  %v33 = vld [vmem:[%s1 + $0xc] sm:$0xf]
  %v34 = vld [vmem:[%s1 + $0x10] sm:$0xf]
  %v35 = vld [vmem:[%s1 + $0x14] sm:$0xf]
  %v36 = vld [vmem:[%s1 + $0x18] sm:$0xf]
  %v37 = vld [vmem:[%s1 + $0x1c] sm:$0xf]
  %v38 = vld [vmem:[%s1 + $0x20] sm:$0xf]
  %v39 = vld [vmem:[%s1 + $0x24] sm:$0xf]
  %v40 = vld [vmem:[%s1 + $0x28] sm:$0xf]
  %v41 = vld [vmem:[%s1 + $0x2c] sm:$0xf]
  %v42 = vld [vmem:[%s1 + $0x30] sm:$0xf]
  %v43 = vld [vmem:[%s1 + $0x34] sm:$0xf]
  %v44 = vld [vmem:[%s1 + $0x38] sm:$0xf]
  %v45 = vld [vmem:[%s1 + $0x3c] sm:$0xf]
  %v62 = vunpack.c.l.b16 %v30
  %v63 = vunpack.c.l.b16 %v31
  %v64 = vunpack.c.l.b16 %v32
  %v65 = vunpack.c.l.b16 %v33
  %v66 = vunpack.c.l.b16 %v34
  %v67 = vunpack.c.l.b16 %v35
  %v68 = vunpack.c.l.b16 %v36
  %v69 = vunpack.c.l.b16 %v37
  %v70 = vunpack.c.l.b16 %v38
  %v71 = vunpack.c.l.b16 %v39
  %v72 = vunpack.c.l.b16 %v40
  %v73 = vunpack.c.l.b16 %v41
  %v74 = vunpack.c.l.b16 %v42
  %v75 = vunpack.c.l.b16 %v43
  %v76 = vunpack.c.l.b16 %v44
  %v77 = vunpack.c.l.b16 %v45
  %v78 = vpack.c.b16 %v63, %v62
  %v79 = vpack.c.b16 %v65, %v64
  %v80 = vpack.c.b16 %v67, %v66
  %v81 = vpack.c.b16 %v69, %v68
  %v82 = vpack.c.b16 %v71, %v70
  %v83 = vpack.c.b16 %v73, %v72
  %v84 = vpack.c.b16 %v75, %v74
  %v85 = vpack.c.b16 %v77, %v76
  %94 = vmatprep.subr.bf16.mxu0 0
  %95 = vmatpush1.bf16.msra.mxu0 %v78
  %96 = vmatprep.subr.bf16.mxu0 0
  %97 = vmatpush1.bf16.msra.mxu0 %v79
  %98 = vmatprep.subr.bf16.mxu0 0
  %99 = vmatpush1.bf16.msra.mxu0 %v80
  %100 = vmatprep.subr.bf16.mxu0 0
  %101 = vmatpush1.bf16.msra.mxu0 %v81
  %102 = vmatprep.subr.bf16.mxu0 0
  %103 = vmatpush1.bf16.msra.mxu0 %v82
  %104 = vmatprep.subr.bf16.mxu0 0
  %105 = vmatpush1.bf16.msra.mxu0 %v83
  %106 = vmatprep.subr.bf16.mxu0 0
  %107 = vmatpush1.bf16.msra.mxu0 %v84
  %108 = vmatprep.subr.bf16.mxu0 0
  %109 = vmatpush1.bf16.msra.mxu0 %v85
  %110 = vmatprep.subr.bf16.mxu0 0
  %111 = vmatpush1.bf16.msra.mxu0 0
  %112 = vmatprep.subr.bf16.mxu0 0
  %113 = vmatpush1.bf16.msra.mxu0 0
  %114 = vmatprep.subr.bf16.mxu0 0
  %115 = vmatpush1.bf16.msra.mxu0 0
  %116 = vmatprep.subr.bf16.mxu0 0
  %117 = vmatpush1.bf16.msra.mxu0 0
  %118 = vmatprep.subr.bf16.mxu0 0
  %119 = vmatpush1.bf16.msra.mxu0 0
  %120 = vmatprep.subr.bf16.mxu0 0
  %121 = vmatpush1.bf16.msra.mxu0 0
  %122 = vmatprep.subr.bf16.mxu0 0
  %123 = vmatpush1.bf16.msra.mxu0 0
  %124 = vmatprep.subr.bf16.mxu0 0
  %125 = vmatpush1.bf16.msra.mxu0 0
  %126 = vmatprep.mubr.bf16.mxu0 0
  %127 = vmatmul.mubr.bf16.gmra.mrb[0].mxu0 %v28
  %v128 = vpop.f32.mrb[0].mxu0
  %v129 = vadd.f32 0.0, %v128
  %v130 = vpop.f32.mrb[0].mxu0
  %v131 = vpop.f32.mrb[0].mxu0
  %v132 = vadd.f32 0.0, %v131
  %v133 = vpop.f32.mrb[0].mxu0
  %134 = vmatprep.mubr.bf16.mxu0 0
  %135 = vmatmul.mubr.bf16.gmra.mrb[0].mxu0 %v29
  %v136 = vpop.f32.mrb[0].mxu0
  %v137 = vadd.f32 0.0, %v136
  %v138 = vpop.f32.mrb[0].mxu0
  %v139 = vpop.f32.mrb[0].mxu0
  %v140 = vadd.f32 0.0, %v139
  %v141 = vpop.f32.mrb[0].mxu0
  %142 = vdwg.mxu0
  %v143 = vld [vmem:[%s2] sm:$0xf]
  %v144 = vld [vmem:[%s2 + $0x4] sm:$0xf]
  %v145 = vld [vmem:[%s2 + $0x8] sm:$0xf]
  %v146 = vld [vmem:[%s2 + $0xc] sm:$0xf]
  %v147 = vld [vmem:[%s2 + $0x10] sm:$0xf]
  %v148 = vld [vmem:[%s2 + $0x14] sm:$0xf]
  %v149 = vld [vmem:[%s2 + $0x18] sm:$0xf]
  %v150 = vld [vmem:[%s2 + $0x1c] sm:$0xf]
  %v151 = vld [vmem:[%s2 + $0x20] sm:$0xf]
  %v152 = vld [vmem:[%s2 + $0x24] sm:$0xf]
  %v153 = vld [vmem:[%s2 + $0x28] sm:$0xf]
  %v154 = vld [vmem:[%s2 + $0x2c] sm:$0xf]
  %v155 = vld [vmem:[%s2 + $0x30] sm:$0xf]
  %v156 = vld [vmem:[%s2 + $0x34] sm:$0xf]
  %v157 = vld [vmem:[%s2 + $0x38] sm:$0xf]
  %v158 = vld [vmem:[%s2 + $0x3c] sm:$0xf]
  %v175 = vunpack.c.l.b16 %v143
  %v176 = vunpack.c.l.b16 %v144
  %v177 = vunpack.c.l.b16 %v145
  %v178 = vunpack.c.l.b16 %v146
  %v179 = vunpack.c.l.b16 %v147
  %v180 = vunpack.c.l.b16 %v148
  %v181 = vunpack.c.l.b16 %v149
  %v182 = vunpack.c.l.b16 %v150
  %v183 = vunpack.c.l.b16 %v151
  %v184 = vunpack.c.l.b16 %v152
  %v185 = vunpack.c.l.b16 %v153
  %v186 = vunpack.c.l.b16 %v154
  %v187 = vunpack.c.l.b16 %v155
  %v188 = vunpack.c.l.b16 %v156
  %v189 = vunpack.c.l.b16 %v157
  %v190 = vunpack.c.l.b16 %v158
  %v191 = vpack.c.b16 %v176, %v175
  %v192 = vpack.c.b16 %v178, %v177
  %v193 = vpack.c.b16 %v180, %v179
  %v194 = vpack.c.b16 %v182, %v181
  %v195 = vpack.c.b16 %v184, %v183
  %v196 = vpack.c.b16 %v186, %v185
  %v197 = vpack.c.b16 %v188, %v187
  %v198 = vpack.c.b16 %v190, %v189
  %207 = vmatprep.subr.bf16.mxu0 0
  %208 = vmatpush1.bf16.msra.mxu0 %v191
  %209 = vmatprep.subr.bf16.mxu0 0
  %210 = vmatpush1.bf16.msra.mxu0 %v192
  %211 = vmatprep.subr.bf16.mxu0 0
  %212 = vmatpush1.bf16.msra.mxu0 %v193
  %213 = vmatprep.subr.bf16.mxu0 0
  %214 = vmatpush1.bf16.msra.mxu0 %v194
  %215 = vmatprep.subr.bf16.mxu0 0
  %216 = vmatpush1.bf16.msra.mxu0 %v195
  %217 = vmatprep.subr.bf16.mxu0 0
  %218 = vmatpush1.bf16.msra.mxu0 %v196
  %219 = vmatprep.subr.bf16.mxu0 0
  %220 = vmatpush1.bf16.msra.mxu0 %v197
  %221 = vmatprep.subr.bf16.mxu0 0
  %222 = vmatpush1.bf16.msra.mxu0 %v198
  %223 = vmatprep.subr.bf16.mxu0 0
  %224 = vmatpush1.bf16.msra.mxu0 0
  %225 = vmatprep.subr.bf16.mxu0 0
  %226 = vmatpush1.bf16.msra.mxu0 0
  %227 = vmatprep.subr.bf16.mxu0 0
  %228 = vmatpush1.bf16.msra.mxu0 0
  %229 = vmatprep.subr.bf16.mxu0 0
  %230 = vmatpush1.bf16.msra.mxu0 0
  %231 = vmatprep.subr.bf16.mxu0 0
  %232 = vmatpush1.bf16.msra.mxu0 0
  %233 = vmatprep.subr.bf16.mxu0 0
  %234 = vmatpush1.bf16.msra.mxu0 0
  %235 = vmatprep.subr.bf16.mxu0 0
  %236 = vmatpush1.bf16.msra.mxu0 0
  %237 = vmatprep.subr.bf16.mxu0 0
  %238 = vmatpush1.bf16.msra.mxu0 0
  %239 = vmatprep.mubr.bf16.mxu0 0
  %240 = vmatmul.mubr.bf16.gmra.mrb[0].mxu0 %v28
  %v241 = vpop.f32.mrb[0].mxu0
  %v242 = vadd.f32 0.0, %v241
  %v243 = vpop.f32.mrb[0].mxu0
  %v244 = vpop.f32.mrb[0].mxu0
  %v245 = vadd.f32 0.0, %v244
  %v246 = vpop.f32.mrb[0].mxu0
  %247 = vdwg.mxu0
  %v248 = vpack.c.bf16 %v132, %v129
  %v249 = vpack.c.bf16 %v140, %v137
  %v250 = vpack.c.bf16 %v245, %v242
  %v251 = vld [vmem:[%s3] sm:$0xf]
  %vm252 = vcmask 523264
  %v254 = vsel %vm252, %v251, 0
  %v257 = vsel %vm252, %v248, 0
  %v260 = vsel %vm252, %v249, 0
  %262 = vmatprep.subr.bf16.mxu0 0
  %263 = vmatpush1.bf16.xpose.msra.mxu0 %v257
  %264 = vmatprep.subr.bf16.mxu0 0
  %265 = vmatpush1.bf16.xpose.msra.mxu0 %v260
  %266 = vmatprep.subr.bf16.mxu0 0
  %267 = vmatpush1.bf16.xpose.msra.mxu0 0
  %268 = vmatprep.subr.bf16.mxu0 0
  %269 = vmatpush1.bf16.xpose.msra.mxu0 0
  %270 = vmatprep.subr.bf16.mxu0 0
  %271 = vmatpush1.bf16.xpose.msra.mxu0 0
  %272 = vmatprep.subr.bf16.mxu0 0
  %273 = vmatpush1.bf16.xpose.msra.mxu0 0
  %274 = vmatprep.subr.bf16.mxu0 0
  %275 = vmatpush1.bf16.xpose.msra.mxu0 0
  %276 = vmatprep.subr.bf16.mxu0 0
  %277 = vmatpush1.bf16.xpose.msra.mxu0 0
  %278 = vmatprep.subr.bf16.mxu0 0
  %279 = vmatpush1.bf16.xpose.msra.mxu0 0
  %280 = vmatprep.subr.bf16.mxu0 0
  %281 = vmatpush1.bf16.xpose.msra.mxu0 0
  %282 = vmatprep.subr.bf16.mxu0 0
  %283 = vmatpush1.bf16.xpose.msra.mxu0 0
  %284 = vmatprep.subr.bf16.mxu0 0
  %285 = vmatpush1.bf16.xpose.msra.mxu0 0
  %286 = vmatprep.subr.bf16.mxu0 0
  %287 = vmatpush1.bf16.xpose.msra.mxu0 0
  %288 = vmatprep.subr.bf16.mxu0 0
  %289 = vmatpush1.bf16.xpose.msra.mxu0 0
  %290 = vmatprep.subr.bf16.mxu0 0
  %291 = vmatpush1.bf16.xpose.msra.mxu0 0
  %292 = vmatprep.subr.bf16.mxu0 0
  %293 = vmatpush1.bf16.xpose.msra.mxu0 0
  %294 = vmatprep.mubr.bf16.mxu0 0
  %295 = vmatmul.mubr.bf16.gmra.mrb[0].mxu0 %v254
  %v296 = vpop.f32.mrb[0].mxu0
  %v297 = vadd.f32 0.0, %v296
  %v298 = vpop.f32.mrb[0].mxu0
  %v299 = vpop.f32.mrb[0].mxu0
  %v300 = vpop.f32.mrb[0].mxu0
  %301 = vdwg.mxu0
  %v302 = vld [vmem:[%s4] sm:$0xf]
  %v303 = vld [vmem:[%s4 + $0x4] sm:$0xf]
  %v304 = vld [vmem:[%s4 + $0x8] sm:$0xf]
  %v305 = vld [vmem:[%s4 + $0xc] sm:$0xf]
  %v306 = vld [vmem:[%s4 + $0x10] sm:$0xf]
  %v307 = vld [vmem:[%s4 + $0x14] sm:$0xf]
  %v308 = vld [vmem:[%s4 + $0x18] sm:$0xf]
  %v309 = vld [vmem:[%s4 + $0x1c] sm:$0xf]
  %v318 = vunpack.c.l.b16 %v302
  %v319 = vunpack.c.l.b16 %v303
  %v320 = vunpack.c.l.b16 %v304
  %v321 = vunpack.c.l.b16 %v305
  %v322 = vunpack.c.l.b16 %v306
  %v323 = vunpack.c.l.b16 %v307
  %v324 = vunpack.c.l.b16 %v308
  %v325 = vunpack.c.l.b16 %v309
  %v326 = vpack.c.b16 %v319, %v318
  %v327 = vpack.c.b16 %v321, %v320
  %v328 = vpack.c.b16 %v323, %v322
  %v329 = vpack.c.b16 %v325, %v324
  %v335 = vsel %vm252, %v250, 0
  %337 = vmatprep.subr.bf16.mxu0 0
  %338 = vmatpush1.bf16.msra.mxu0 %v326
  %339 = vmatprep.subr.bf16.mxu0 0
  %340 = vmatpush1.bf16.msra.mxu0 %v327
  %341 = vmatprep.subr.bf16.mxu0 0
  %342 = vmatpush1.bf16.msra.mxu0 %v328
  %343 = vmatprep.subr.bf16.mxu0 0
  %344 = vmatpush1.bf16.msra.mxu0 %v329
  %345 = vmatprep.subr.bf16.mxu0 0
  %346 = vmatpush1.bf16.msra.mxu0 0
  %347 = vmatprep.subr.bf16.mxu0 0
  %348 = vmatpush1.bf16.msra.mxu0 0
  %349 = vmatprep.subr.bf16.mxu0 0
  %350 = vmatpush1.bf16.msra.mxu0 0
  %351 = vmatprep.subr.bf16.mxu0 0
  %352 = vmatpush1.bf16.msra.mxu0 0
  %353 = vmatprep.subr.bf16.mxu0 0
  %354 = vmatpush1.bf16.msra.mxu0 0
  %355 = vmatprep.subr.bf16.mxu0 0
  %356 = vmatpush1.bf16.msra.mxu0 0
  %357 = vmatprep.subr.bf16.mxu0 0
  %358 = vmatpush1.bf16.msra.mxu0 0
  %359 = vmatprep.subr.bf16.mxu0 0
  %360 = vmatpush1.bf16.msra.mxu0 0
  %361 = vmatprep.subr.bf16.mxu0 0
  %362 = vmatpush1.bf16.msra.mxu0 0
  %363 = vmatprep.subr.bf16.mxu0 0
  %364 = vmatpush1.bf16.msra.mxu0 0
  %365 = vmatprep.subr.bf16.mxu0 0
  %366 = vmatpush1.bf16.msra.mxu0 0
  %367 = vmatprep.subr.bf16.mxu0 0
  %368 = vmatpush1.bf16.msra.mxu0 0
  %369 = vmatprep.mubr.bf16.mxu0 0
  %370 = vmatmul.mubr.bf16.gmra.mrb[0].mxu0 %v335
  %v371 = vpop.f32.mrb[0].mxu0
  %v372 = vadd.f32 0.0, %v371
  %v373 = vpop.f32.mrb[0].mxu0
  %v374 = vpop.f32.mrb[0].mxu0
  %v375 = vadd.f32 0.0, %v374
  %v376 = vpop.f32.mrb[0].mxu0
  %377 = vdwg.mxu0
  %v378 = vld [vmem:[%s5] sm:$0xff]
  %v379 = vld [vmem:[%s5 + $0x8] sm:$0xff]
  %vm380 = vcmp.gt.f32.partialorder %v378, 0.0
  %vm381 = vcmp.gt.f32.partialorder %v379, 0.0
  %383 = vset.pattern.permute.xlu0 0
  %384 = vperm.xlu0 %383, %v372
  %v385 = vpop.permute.xlu0 %384
  %388 = vset.pattern.permute.xlu0 0
  %389 = vperm.xlu0 %388, %v375
  %v390 = vpop.permute.xlu0 %389
  %v392 = vlaneseq
  %v393 = vshrl.u32 %v392, 7
  %v394 = vsub.s32 0, %v393
  %v395 = vrot.slane %v297, %v394
  %v396 = vadd.f32 %v385, %v395
  %v397 = vadd.f32 %v390, %v395
  %vm398 = vcmp.gt.f32.partialorder %v396, 0.0
  %vm399 = vcmp.gt.f32.partialorder %v397, 0.0
  %v400 = vmul.f32 %v396, 0.2
  %v401 = vmul.f32 %v397, 0.2
  %v402 = vsel %vm398, %v396, %v400
  %v403 = vsel %vm399, %v397, %v401
  %v404 = vsel %vm380, %v402, -1e+30
  %v405 = vsel %vm381, %v403, -1e+30
  %vm406 = vcmask 261120
  %v407 = vsel %vm406, %v404, -inf
  %408 = vmax.xlane.f32.xlu0 %v407
  %v409 = vpop.xlane.xlu0 %408
  %v410 = vsel %vm406, %v405, -inf
  %411 = vmax.xlane.f32.xlu0 %v410
  %v412 = vpop.xlane.xlu0 %411
  %v413 = vsub.f32 %v404, %v409
  %v414 = vsub.f32 %v405, %v412
  %v415 = vmul.f32 %v413, 1.442695
  %v416 = vpow.pop %v415
  %v417 = vmul.f32 %v414, 1.442695
  %v418 = vpow.pop %v417
  %v419 = vsel %vm380, %v416, 0.0
  %v420 = vsel %vm381, %v418, 0.0
  %v421 = vsel %vm406, %v419, 0.0
  %422 = vadd.xlane.f32.xlu0 %v421
  %v423 = vpop.xlane.xlu0 %422
  %v424 = vsel %vm406, %v420, 0.0
  %425 = vadd.xlane.f32.xlu0 %v424
  %v426 = vpop.xlane.xlu0 %425
  %v427 = vmax.f32 %v423, 1e-30
  %v428 = vmax.f32 %v426, 1e-30
  %v429 = vrcp.pop %v427
  %v430 = vrcp.pop %v428
  %v431 = vmul.f32 %v419, %v429
  %v432 = vmul.f32 %v420, %v430
  %v433 = vpack.c.bf16 %v432, %v431
  %434 = vset.pattern.permute.xlu0 1
  %435 = vperm.xlu0 %434, %v372
  %v436 = vpop.permute.xlu0 %435
  %438 = vset.pattern.permute.xlu0 1
  %439 = vperm.xlu0 %438, %v375
  %v440 = vpop.permute.xlu0 %439
  %v442 = vlaneseq
  %v443 = vshrl.u32 %v442, 7
  %v444 = vsub.s32 1, %v443
  %v445 = vrot.slane %v297, %v444
  %v446 = vadd.f32 %v436, %v445
  %v447 = vadd.f32 %v440, %v445
  %vm448 = vcmp.gt.f32.partialorder %v446, 0.0
  %vm449 = vcmp.gt.f32.partialorder %v447, 0.0
  %v450 = vmul.f32 %v446, 0.2
  %v451 = vmul.f32 %v447, 0.2
  %v452 = vsel %vm448, %v446, %v450
  %v453 = vsel %vm449, %v447, %v451
  %v454 = vsel %vm380, %v452, -1e+30
  %v455 = vsel %vm381, %v453, -1e+30
  %v456 = vsel %vm406, %v454, -inf
  %457 = vmax.xlane.f32.xlu0 %v456
  %v458 = vpop.xlane.xlu0 %457
  %v459 = vsel %vm406, %v455, -inf
  %460 = vmax.xlane.f32.xlu0 %v459
  %v461 = vpop.xlane.xlu0 %460
  %v462 = vsub.f32 %v454, %v458
  %v463 = vsub.f32 %v455, %v461
  %v464 = vmul.f32 %v462, 1.442695
  %v465 = vpow.pop %v464
  %v466 = vmul.f32 %v463, 1.442695
  %v467 = vpow.pop %v466
  %v468 = vsel %vm380, %v465, 0.0
  %v469 = vsel %vm381, %v467, 0.0
  %v470 = vsel %vm406, %v468, 0.0
  %471 = vadd.xlane.f32.xlu0 %v470
  %v472 = vpop.xlane.xlu0 %471
  %v473 = vsel %vm406, %v469, 0.0
  %474 = vadd.xlane.f32.xlu0 %v473
  %v475 = vpop.xlane.xlu0 %474
  %v476 = vmax.f32 %v472, 1e-30
  %v477 = vmax.f32 %v475, 1e-30
  %v478 = vrcp.pop %v476
  %v479 = vrcp.pop %v477
  %v480 = vmul.f32 %v468, %v478
  %v481 = vmul.f32 %v469, %v479
  %v482 = vpack.c.bf16 %v481, %v480
  %485 = vrot.lane.b32.xlu0 %v248, 120
  %v486 = vpop.permute.xlu0 %485
  %487 = vrot.lane.b32.xlu0 %v249, 120
  %v488 = vpop.permute.xlu0 %487
  %v492 = vsel %vm406, %v482, 0
  %494 = vmatprep.subr.bf16.mxu0 0
  %495 = vmatpush1.bf16.msra.mxu0 %v486
  %496 = vmatprep.subr.bf16.mxu0 0
  %497 = vmatpush1.bf16.msra.mxu0 %v488
  %498 = vmatprep.subr.bf16.mxu0 0
  %499 = vmatpush1.bf16.msra.mxu0 0
  %500 = vmatprep.subr.bf16.mxu0 0
  %501 = vmatpush1.bf16.msra.mxu0 0
  %502 = vmatprep.subr.bf16.mxu0 0
  %503 = vmatpush1.bf16.msra.mxu0 0
  %504 = vmatprep.subr.bf16.mxu0 0
  %505 = vmatpush1.bf16.msra.mxu0 0
  %506 = vmatprep.subr.bf16.mxu0 0
  %507 = vmatpush1.bf16.msra.mxu0 0
  %508 = vmatprep.subr.bf16.mxu0 0
  %509 = vmatpush1.bf16.msra.mxu0 0
  %510 = vmatprep.subr.bf16.mxu0 0
  %511 = vmatpush1.bf16.msra.mxu0 0
  %512 = vmatprep.subr.bf16.mxu0 0
  %513 = vmatpush1.bf16.msra.mxu0 0
  %514 = vmatprep.subr.bf16.mxu0 0
  %515 = vmatpush1.bf16.msra.mxu0 0
  %516 = vmatprep.subr.bf16.mxu0 0
  %517 = vmatpush1.bf16.msra.mxu0 0
  %518 = vmatprep.subr.bf16.mxu0 0
  %519 = vmatpush1.bf16.msra.mxu0 0
  %520 = vmatprep.subr.bf16.mxu0 0
  %521 = vmatpush1.bf16.msra.mxu0 0
  %522 = vmatprep.subr.bf16.mxu0 0
  %523 = vmatpush1.bf16.msra.mxu0 0
  %524 = vmatprep.subr.bf16.mxu0 0
  %525 = vmatpush1.bf16.msra.mxu0 0
  %526 = vmatprep.mubr.bf16.mxu0 0
  %527 = vmatmul.mubr.bf16.gmra.mrb[0].mxu0 %v492
  %v528 = vpop.f32.mrb[0].mxu0
  %v529 = vadd.f32 0.0, %v528
  %v530 = vpop.f32.mrb[0].mxu0
  %v531 = vpop.f32.mrb[0].mxu0
  %v532 = vadd.f32 0.0, %v531
  %v533 = vpop.f32.mrb[0].mxu0
  %534 = vdwg.mxu0
  %v536 = vsel %vm406, %v433, 0
  %538 = vmatprep.subr.bf16.mxu0 0
  %539 = vmatpush1.bf16.msra.mxu0 %v248
  %540 = vmatprep.subr.bf16.mxu0 0
  %541 = vmatpush1.bf16.msra.mxu0 %v249
  %542 = vmatprep.subr.bf16.mxu0 0
  %543 = vmatpush1.bf16.msra.mxu0 0
  %544 = vmatprep.subr.bf16.mxu0 0
  %545 = vmatpush1.bf16.msra.mxu0 0
  %546 = vmatprep.subr.bf16.mxu0 0
  %547 = vmatpush1.bf16.msra.mxu0 0
  %548 = vmatprep.subr.bf16.mxu0 0
  %549 = vmatpush1.bf16.msra.mxu0 0
  %550 = vmatprep.subr.bf16.mxu0 0
  %551 = vmatpush1.bf16.msra.mxu0 0
  %552 = vmatprep.subr.bf16.mxu0 0
  %553 = vmatpush1.bf16.msra.mxu0 0
  %554 = vmatprep.subr.bf16.mxu0 0
  %555 = vmatpush1.bf16.msra.mxu0 0
  %556 = vmatprep.subr.bf16.mxu0 0
  %557 = vmatpush1.bf16.msra.mxu0 0
  %558 = vmatprep.subr.bf16.mxu0 0
  %559 = vmatpush1.bf16.msra.mxu0 0
  %560 = vmatprep.subr.bf16.mxu0 0
  %561 = vmatpush1.bf16.msra.mxu0 0
  %562 = vmatprep.subr.bf16.mxu0 0
  %563 = vmatpush1.bf16.msra.mxu0 0
  %564 = vmatprep.subr.bf16.mxu0 0
  %565 = vmatpush1.bf16.msra.mxu0 0
  %566 = vmatprep.subr.bf16.mxu0 0
  %567 = vmatpush1.bf16.msra.mxu0 0
  %568 = vmatprep.subr.bf16.mxu0 0
  %569 = vmatpush1.bf16.msra.mxu0 0
  %570 = vmatprep.mubr.bf16.mxu0 0
  %571 = vmatmul.mubr.bf16.gmra.mrb[0].mxu0 %v536
  %v572 = vpop.f32.mrb[0].mxu0
  %v573 = vadd.f32 %v529, %v572
  %v574 = vpop.f32.mrb[0].mxu0
  %v575 = vpop.f32.mrb[0].mxu0
  %v576 = vadd.f32 %v532, %v575
  %v577 = vpop.f32.mrb[0].mxu0
  %578 = vdwg.mxu0
  %579 = vset.pattern.permute.xlu0 2
  %580 = vperm.xlu0 %579, %v372
  %v581 = vpop.permute.xlu0 %580
  %583 = vset.pattern.permute.xlu0 2
  %584 = vperm.xlu0 %583, %v375
  %v585 = vpop.permute.xlu0 %584
  %v587 = vlaneseq
  %v588 = vshrl.u32 %v587, 7
  %v589 = vsub.s32 2, %v588
  %v590 = vrot.slane %v297, %v589
  %v591 = vadd.f32 %v581, %v590
  %v592 = vadd.f32 %v585, %v590
  %vm593 = vcmp.gt.f32.partialorder %v591, 0.0
  %vm594 = vcmp.gt.f32.partialorder %v592, 0.0
  %v595 = vmul.f32 %v591, 0.2
  %v596 = vmul.f32 %v592, 0.2
  %v597 = vsel %vm593, %v591, %v595
  %v598 = vsel %vm594, %v592, %v596
  %v599 = vsel %vm380, %v597, -1e+30
  %v600 = vsel %vm381, %v598, -1e+30
  %v601 = vsel %vm406, %v599, -inf
  %602 = vmax.xlane.f32.xlu0 %v601
  %v603 = vpop.xlane.xlu0 %602
  %v604 = vsel %vm406, %v600, -inf
  %605 = vmax.xlane.f32.xlu0 %v604
  %v606 = vpop.xlane.xlu0 %605
  %v607 = vsub.f32 %v599, %v603
  %v608 = vsub.f32 %v600, %v606
  %v609 = vmul.f32 %v607, 1.442695
  %v610 = vpow.pop %v609
  %v611 = vmul.f32 %v608, 1.442695
  %v612 = vpow.pop %v611
  %v613 = vsel %vm380, %v610, 0.0
  %v614 = vsel %vm381, %v612, 0.0
  %v615 = vsel %vm406, %v613, 0.0
  %616 = vadd.xlane.f32.xlu0 %v615
  %v617 = vpop.xlane.xlu0 %616
  %v618 = vsel %vm406, %v614, 0.0
  %619 = vadd.xlane.f32.xlu0 %v618
  %v620 = vpop.xlane.xlu0 %619
  %v621 = vmax.f32 %v617, 1e-30
  %v622 = vmax.f32 %v620, 1e-30
  %v623 = vrcp.pop %v621
  %v624 = vrcp.pop %v622
  %v625 = vmul.f32 %v613, %v623
  %v626 = vmul.f32 %v614, %v624
  %v627 = vpack.c.bf16 %v626, %v625
  %628 = vrot.lane.b32.xlu0 %v248, 112
  %v629 = vpop.permute.xlu0 %628
  %630 = vrot.lane.b32.xlu0 %v249, 112
  %v631 = vpop.permute.xlu0 %630
  %v635 = vsel %vm406, %v627, 0
  %637 = vmatprep.subr.bf16.mxu0 0
  %638 = vmatpush1.bf16.msra.mxu0 %v629
  %639 = vmatprep.subr.bf16.mxu0 0
  %640 = vmatpush1.bf16.msra.mxu0 %v631
  %641 = vmatprep.subr.bf16.mxu0 0
  %642 = vmatpush1.bf16.msra.mxu0 0
  %643 = vmatprep.subr.bf16.mxu0 0
  %644 = vmatpush1.bf16.msra.mxu0 0
  %645 = vmatprep.subr.bf16.mxu0 0
  %646 = vmatpush1.bf16.msra.mxu0 0
  %647 = vmatprep.subr.bf16.mxu0 0
  %648 = vmatpush1.bf16.msra.mxu0 0
  %649 = vmatprep.subr.bf16.mxu0 0
  %650 = vmatpush1.bf16.msra.mxu0 0
  %651 = vmatprep.subr.bf16.mxu0 0
  %652 = vmatpush1.bf16.msra.mxu0 0
  %653 = vmatprep.subr.bf16.mxu0 0
  %654 = vmatpush1.bf16.msra.mxu0 0
  %655 = vmatprep.subr.bf16.mxu0 0
  %656 = vmatpush1.bf16.msra.mxu0 0
  %657 = vmatprep.subr.bf16.mxu0 0
  %658 = vmatpush1.bf16.msra.mxu0 0
  %659 = vmatprep.subr.bf16.mxu0 0
  %660 = vmatpush1.bf16.msra.mxu0 0
  %661 = vmatprep.subr.bf16.mxu0 0
  %662 = vmatpush1.bf16.msra.mxu0 0
  %663 = vmatprep.subr.bf16.mxu0 0
  %664 = vmatpush1.bf16.msra.mxu0 0
  %665 = vmatprep.subr.bf16.mxu0 0
  %666 = vmatpush1.bf16.msra.mxu0 0
  %667 = vmatprep.subr.bf16.mxu0 0
  %668 = vmatpush1.bf16.msra.mxu0 0
  %669 = vmatprep.mubr.bf16.mxu0 0
  %670 = vmatmul.mubr.bf16.gmra.mrb[0].mxu0 %v635
  %v671 = vpop.f32.mrb[0].mxu0
  %v672 = vadd.f32 0.0, %v671
  %v673 = vpop.f32.mrb[0].mxu0
  %v674 = vpop.f32.mrb[0].mxu0
  %v675 = vadd.f32 0.0, %v674
  %v676 = vpop.f32.mrb[0].mxu0
  %677 = vdwg.mxu0
  %v678 = vadd.f32 %v573, %v672
  %v679 = vadd.f32 %v576, %v675
  %680 = vset.pattern.permute.xlu0 3
  %681 = vperm.xlu0 %680, %v372
  %v682 = vpop.permute.xlu0 %681
  %684 = vset.pattern.permute.xlu0 3
  %685 = vperm.xlu0 %684, %v375
  %v686 = vpop.permute.xlu0 %685
  %v688 = vlaneseq
  %v689 = vshrl.u32 %v688, 7
  %v690 = vsub.s32 3, %v689
  %v691 = vrot.slane %v297, %v690
  %v692 = vadd.f32 %v682, %v691
  %v693 = vadd.f32 %v686, %v691
  %vm694 = vcmp.gt.f32.partialorder %v692, 0.0
  %vm695 = vcmp.gt.f32.partialorder %v693, 0.0
  %v696 = vmul.f32 %v692, 0.2
  %v697 = vmul.f32 %v693, 0.2
  %v698 = vsel %vm694, %v692, %v696
  %v699 = vsel %vm695, %v693, %v697
  %v700 = vsel %vm380, %v698, -1e+30
  %v701 = vsel %vm381, %v699, -1e+30
  %v702 = vsel %vm406, %v700, -inf
  %703 = vmax.xlane.f32.xlu0 %v702
  %v704 = vpop.xlane.xlu0 %703
  %v705 = vsel %vm406, %v701, -inf
  %706 = vmax.xlane.f32.xlu0 %v705
  %v707 = vpop.xlane.xlu0 %706
  %v708 = vsub.f32 %v700, %v704
  %v709 = vsub.f32 %v701, %v707
  %v710 = vmul.f32 %v708, 1.442695
  %v711 = vpow.pop %v710
  %v712 = vmul.f32 %v709, 1.442695
  %v713 = vpow.pop %v712
  %v714 = vsel %vm380, %v711, 0.0
  %v715 = vsel %vm381, %v713, 0.0
  %v716 = vsel %vm406, %v714, 0.0
  %717 = vadd.xlane.f32.xlu0 %v716
  %v718 = vpop.xlane.xlu0 %717
  %v719 = vsel %vm406, %v715, 0.0
  %720 = vadd.xlane.f32.xlu0 %v719
  %v721 = vpop.xlane.xlu0 %720
  %v722 = vmax.f32 %v718, 1e-30
  %v723 = vmax.f32 %v721, 1e-30
  %v724 = vrcp.pop %v722
  %v725 = vrcp.pop %v723
  %v726 = vmul.f32 %v714, %v724
  %v727 = vmul.f32 %v715, %v725
  %v728 = vpack.c.bf16 %v727, %v726
  %729 = vrot.lane.b32.xlu0 %v248, 104
  %v730 = vpop.permute.xlu0 %729
  %731 = vrot.lane.b32.xlu0 %v249, 104
  %v732 = vpop.permute.xlu0 %731
  %v736 = vsel %vm406, %v728, 0
  %738 = vmatprep.subr.bf16.mxu0 0
  %739 = vmatpush1.bf16.msra.mxu0 %v730
  %740 = vmatprep.subr.bf16.mxu0 0
  %741 = vmatpush1.bf16.msra.mxu0 %v732
  %742 = vmatprep.subr.bf16.mxu0 0
  %743 = vmatpush1.bf16.msra.mxu0 0
  %744 = vmatprep.subr.bf16.mxu0 0
  %745 = vmatpush1.bf16.msra.mxu0 0
  %746 = vmatprep.subr.bf16.mxu0 0
  %747 = vmatpush1.bf16.msra.mxu0 0
  %748 = vmatprep.subr.bf16.mxu0 0
  %749 = vmatpush1.bf16.msra.mxu0 0
  %750 = vmatprep.subr.bf16.mxu0 0
  %751 = vmatpush1.bf16.msra.mxu0 0
  %752 = vmatprep.subr.bf16.mxu0 0
  %753 = vmatpush1.bf16.msra.mxu0 0
  %754 = vmatprep.subr.bf16.mxu0 0
  %755 = vmatpush1.bf16.msra.mxu0 0
  %756 = vmatprep.subr.bf16.mxu0 0
  %757 = vmatpush1.bf16.msra.mxu0 0
  %758 = vmatprep.subr.bf16.mxu0 0
  %759 = vmatpush1.bf16.msra.mxu0 0
  %760 = vmatprep.subr.bf16.mxu0 0
  %761 = vmatpush1.bf16.msra.mxu0 0
  %762 = vmatprep.subr.bf16.mxu0 0
  %763 = vmatpush1.bf16.msra.mxu0 0
  %764 = vmatprep.subr.bf16.mxu0 0
  %765 = vmatpush1.bf16.msra.mxu0 0
  %766 = vmatprep.subr.bf16.mxu0 0
  %767 = vmatpush1.bf16.msra.mxu0 0
  %768 = vmatprep.subr.bf16.mxu0 0
  %769 = vmatpush1.bf16.msra.mxu0 0
  %770 = vmatprep.mubr.bf16.mxu0 0
  %771 = vmatmul.mubr.bf16.gmra.mrb[0].mxu0 %v736
  %v772 = vpop.f32.mrb[0].mxu0
  %v773 = vadd.f32 0.0, %v772
  %v774 = vpop.f32.mrb[0].mxu0
  %v775 = vpop.f32.mrb[0].mxu0
  %v776 = vadd.f32 0.0, %v775
  %v777 = vpop.f32.mrb[0].mxu0
  %778 = vdwg.mxu0
  %v779 = vadd.f32 %v678, %v773
  %v780 = vadd.f32 %v679, %v776
  %781 = vset.pattern.permute.xlu0 4
  %782 = vperm.xlu0 %781, %v372
  %v783 = vpop.permute.xlu0 %782
  %785 = vset.pattern.permute.xlu0 4
  %786 = vperm.xlu0 %785, %v375
  %v787 = vpop.permute.xlu0 %786
  %v789 = vlaneseq
  %v790 = vshrl.u32 %v789, 7
  %v791 = vsub.s32 4, %v790
  %v792 = vrot.slane %v297, %v791
  %v793 = vadd.f32 %v783, %v792
  %v794 = vadd.f32 %v787, %v792
  %vm795 = vcmp.gt.f32.partialorder %v793, 0.0
  %vm796 = vcmp.gt.f32.partialorder %v794, 0.0
  %v797 = vmul.f32 %v793, 0.2
  %v798 = vmul.f32 %v794, 0.2
  %v799 = vsel %vm795, %v793, %v797
  %v800 = vsel %vm796, %v794, %v798
  %v801 = vsel %vm380, %v799, -1e+30
  %v802 = vsel %vm381, %v800, -1e+30
  %v803 = vsel %vm406, %v801, -inf
  %804 = vmax.xlane.f32.xlu0 %v803
  %v805 = vpop.xlane.xlu0 %804
  %v806 = vsel %vm406, %v802, -inf
  %807 = vmax.xlane.f32.xlu0 %v806
  %v808 = vpop.xlane.xlu0 %807
  %v809 = vsub.f32 %v801, %v805
  %v810 = vsub.f32 %v802, %v808
  %v811 = vmul.f32 %v809, 1.442695
  %v812 = vpow.pop %v811
  %v813 = vmul.f32 %v810, 1.442695
  %v814 = vpow.pop %v813
  %v815 = vsel %vm380, %v812, 0.0
  %v816 = vsel %vm381, %v814, 0.0
  %v817 = vsel %vm406, %v815, 0.0
  %818 = vadd.xlane.f32.xlu0 %v817
  %v819 = vpop.xlane.xlu0 %818
  %v820 = vsel %vm406, %v816, 0.0
  %821 = vadd.xlane.f32.xlu0 %v820
  %v822 = vpop.xlane.xlu0 %821
  %v823 = vmax.f32 %v819, 1e-30
  %v824 = vmax.f32 %v822, 1e-30
  %v825 = vrcp.pop %v823
  %v826 = vrcp.pop %v824
  %v827 = vmul.f32 %v815, %v825
  %v828 = vmul.f32 %v816, %v826
  %v829 = vpack.c.bf16 %v828, %v827
  %830 = vrot.lane.b32.xlu0 %v248, 96
  %v831 = vpop.permute.xlu0 %830
  %832 = vrot.lane.b32.xlu0 %v249, 96
  %v833 = vpop.permute.xlu0 %832
  %v837 = vsel %vm406, %v829, 0
  %839 = vmatprep.subr.bf16.mxu0 0
  %840 = vmatpush1.bf16.msra.mxu0 %v831
  %841 = vmatprep.subr.bf16.mxu0 0
  %842 = vmatpush1.bf16.msra.mxu0 %v833
  %843 = vmatprep.subr.bf16.mxu0 0
  %844 = vmatpush1.bf16.msra.mxu0 0
  %845 = vmatprep.subr.bf16.mxu0 0
  %846 = vmatpush1.bf16.msra.mxu0 0
  %847 = vmatprep.subr.bf16.mxu0 0
  %848 = vmatpush1.bf16.msra.mxu0 0
  %849 = vmatprep.subr.bf16.mxu0 0
  %850 = vmatpush1.bf16.msra.mxu0 0
  %851 = vmatprep.subr.bf16.mxu0 0
  %852 = vmatpush1.bf16.msra.mxu0 0
  %853 = vmatprep.subr.bf16.mxu0 0
  %854 = vmatpush1.bf16.msra.mxu0 0
  %855 = vmatprep.subr.bf16.mxu0 0
  %856 = vmatpush1.bf16.msra.mxu0 0
  %857 = vmatprep.subr.bf16.mxu0 0
  %858 = vmatpush1.bf16.msra.mxu0 0
  %859 = vmatprep.subr.bf16.mxu0 0
  %860 = vmatpush1.bf16.msra.mxu0 0
  %861 = vmatprep.subr.bf16.mxu0 0
  %862 = vmatpush1.bf16.msra.mxu0 0
  %863 = vmatprep.subr.bf16.mxu0 0
  %864 = vmatpush1.bf16.msra.mxu0 0
  %865 = vmatprep.subr.bf16.mxu0 0
  %866 = vmatpush1.bf16.msra.mxu0 0
  %867 = vmatprep.subr.bf16.mxu0 0
  %868 = vmatpush1.bf16.msra.mxu0 0
  %869 = vmatprep.subr.bf16.mxu0 0
  %870 = vmatpush1.bf16.msra.mxu0 0
  %871 = vmatprep.mubr.bf16.mxu0 0
  %872 = vmatmul.mubr.bf16.gmra.mrb[0].mxu0 %v837
  %v873 = vpop.f32.mrb[0].mxu0
  %v874 = vadd.f32 0.0, %v873
  %v875 = vpop.f32.mrb[0].mxu0
  %v876 = vpop.f32.mrb[0].mxu0
  %v877 = vadd.f32 0.0, %v876
  %v878 = vpop.f32.mrb[0].mxu0
  %879 = vdwg.mxu0
  %v880 = vadd.f32 %v779, %v874
  %v881 = vadd.f32 %v780, %v877
  %882 = vset.pattern.permute.xlu0 5
  %883 = vperm.xlu0 %882, %v372
  %v884 = vpop.permute.xlu0 %883
  %886 = vset.pattern.permute.xlu0 5
  %887 = vperm.xlu0 %886, %v375
  %v888 = vpop.permute.xlu0 %887
  %v890 = vlaneseq
  %v891 = vshrl.u32 %v890, 7
  %v892 = vsub.s32 5, %v891
  %v893 = vrot.slane %v297, %v892
  %v894 = vadd.f32 %v884, %v893
  %v895 = vadd.f32 %v888, %v893
  %vm896 = vcmp.gt.f32.partialorder %v894, 0.0
  %vm897 = vcmp.gt.f32.partialorder %v895, 0.0
  %v898 = vmul.f32 %v894, 0.2
  %v899 = vmul.f32 %v895, 0.2
  %v900 = vsel %vm896, %v894, %v898
  %v901 = vsel %vm897, %v895, %v899
  %v902 = vsel %vm380, %v900, -1e+30
  %v903 = vsel %vm381, %v901, -1e+30
  %v904 = vsel %vm406, %v902, -inf
  %905 = vmax.xlane.f32.xlu0 %v904
  %v906 = vpop.xlane.xlu0 %905
  %v907 = vsel %vm406, %v903, -inf
  %908 = vmax.xlane.f32.xlu0 %v907
  %v909 = vpop.xlane.xlu0 %908
  %v910 = vsub.f32 %v902, %v906
  %v911 = vsub.f32 %v903, %v909
  %v912 = vmul.f32 %v910, 1.442695
  %v913 = vpow.pop %v912
  %v914 = vmul.f32 %v911, 1.442695
  %v915 = vpow.pop %v914
  %v916 = vsel %vm380, %v913, 0.0
  %v917 = vsel %vm381, %v915, 0.0
  %v918 = vsel %vm406, %v916, 0.0
  %919 = vadd.xlane.f32.xlu0 %v918
  %v920 = vpop.xlane.xlu0 %919
  %v921 = vsel %vm406, %v917, 0.0
  %922 = vadd.xlane.f32.xlu0 %v921
  %v923 = vpop.xlane.xlu0 %922
  %v924 = vmax.f32 %v920, 1e-30
  %v925 = vmax.f32 %v923, 1e-30
  %v926 = vrcp.pop %v924
  %v927 = vrcp.pop %v925
  %v928 = vmul.f32 %v916, %v926
  %v929 = vmul.f32 %v917, %v927
  %v930 = vpack.c.bf16 %v929, %v928
  %931 = vrot.lane.b32.xlu0 %v248, 88
  %v932 = vpop.permute.xlu0 %931
  %933 = vrot.lane.b32.xlu0 %v249, 88
  %v934 = vpop.permute.xlu0 %933
  %v938 = vsel %vm406, %v930, 0
  %940 = vmatprep.subr.bf16.mxu0 0
  %941 = vmatpush1.bf16.msra.mxu0 %v932
  %942 = vmatprep.subr.bf16.mxu0 0
  %943 = vmatpush1.bf16.msra.mxu0 %v934
  %944 = vmatprep.subr.bf16.mxu0 0
  %945 = vmatpush1.bf16.msra.mxu0 0
  %946 = vmatprep.subr.bf16.mxu0 0
  %947 = vmatpush1.bf16.msra.mxu0 0
  %948 = vmatprep.subr.bf16.mxu0 0
  %949 = vmatpush1.bf16.msra.mxu0 0
  %950 = vmatprep.subr.bf16.mxu0 0
  %951 = vmatpush1.bf16.msra.mxu0 0
  %952 = vmatprep.subr.bf16.mxu0 0
  %953 = vmatpush1.bf16.msra.mxu0 0
  %954 = vmatprep.subr.bf16.mxu0 0
  %955 = vmatpush1.bf16.msra.mxu0 0
  %956 = vmatprep.subr.bf16.mxu0 0
  %957 = vmatpush1.bf16.msra.mxu0 0
  %958 = vmatprep.subr.bf16.mxu0 0
  %959 = vmatpush1.bf16.msra.mxu0 0
  %960 = vmatprep.subr.bf16.mxu0 0
  %961 = vmatpush1.bf16.msra.mxu0 0
  %962 = vmatprep.subr.bf16.mxu0 0
  %963 = vmatpush1.bf16.msra.mxu0 0
  %964 = vmatprep.subr.bf16.mxu0 0
  %965 = vmatpush1.bf16.msra.mxu0 0
  %966 = vmatprep.subr.bf16.mxu0 0
  %967 = vmatpush1.bf16.msra.mxu0 0
  %968 = vmatprep.subr.bf16.mxu0 0
  %969 = vmatpush1.bf16.msra.mxu0 0
  %970 = vmatprep.subr.bf16.mxu0 0
  %971 = vmatpush1.bf16.msra.mxu0 0
  %972 = vmatprep.mubr.bf16.mxu0 0
  %973 = vmatmul.mubr.bf16.gmra.mrb[0].mxu0 %v938
  %v974 = vpop.f32.mrb[0].mxu0
  %v975 = vadd.f32 0.0, %v974
  %v976 = vpop.f32.mrb[0].mxu0
  %v977 = vpop.f32.mrb[0].mxu0
  %v978 = vadd.f32 0.0, %v977
  %v979 = vpop.f32.mrb[0].mxu0
  %980 = vdwg.mxu0
  %v981 = vadd.f32 %v880, %v975
  %v982 = vadd.f32 %v881, %v978
  %983 = vset.pattern.permute.xlu0 6
  %984 = vperm.xlu0 %983, %v372
  %v985 = vpop.permute.xlu0 %984
  %987 = vset.pattern.permute.xlu0 6
  %988 = vperm.xlu0 %987, %v375
  %v989 = vpop.permute.xlu0 %988
  %v991 = vlaneseq
  %v992 = vshrl.u32 %v991, 7
  %v993 = vsub.s32 6, %v992
  %v994 = vrot.slane %v297, %v993
  %v995 = vadd.f32 %v985, %v994
  %v996 = vadd.f32 %v989, %v994
  %vm997 = vcmp.gt.f32.partialorder %v995, 0.0
  %vm998 = vcmp.gt.f32.partialorder %v996, 0.0
  %v999 = vmul.f32 %v995, 0.2
  %v1000 = vmul.f32 %v996, 0.2
  %v1001 = vsel %vm997, %v995, %v999
  %v1002 = vsel %vm998, %v996, %v1000
  %v1003 = vsel %vm380, %v1001, -1e+30
  %v1004 = vsel %vm381, %v1002, -1e+30
  %v1005 = vsel %vm406, %v1003, -inf
  %1006 = vmax.xlane.f32.xlu0 %v1005
  %v1007 = vpop.xlane.xlu0 %1006
  %v1008 = vsel %vm406, %v1004, -inf
  %1009 = vmax.xlane.f32.xlu0 %v1008
  %v1010 = vpop.xlane.xlu0 %1009
  %v1011 = vsub.f32 %v1003, %v1007
  %v1012 = vsub.f32 %v1004, %v1010
  %v1013 = vmul.f32 %v1011, 1.442695
  %v1014 = vpow.pop %v1013
  %v1015 = vmul.f32 %v1012, 1.442695
  %v1016 = vpow.pop %v1015
  %v1017 = vsel %vm380, %v1014, 0.0
  %v1018 = vsel %vm381, %v1016, 0.0
  %v1019 = vsel %vm406, %v1017, 0.0
  %1020 = vadd.xlane.f32.xlu0 %v1019
  %v1021 = vpop.xlane.xlu0 %1020
  %v1022 = vsel %vm406, %v1018, 0.0
  %1023 = vadd.xlane.f32.xlu0 %v1022
  %v1024 = vpop.xlane.xlu0 %1023
  %v1025 = vmax.f32 %v1021, 1e-30
  %v1026 = vmax.f32 %v1024, 1e-30
  %v1027 = vrcp.pop %v1025
  %v1028 = vrcp.pop %v1026
  %v1029 = vmul.f32 %v1017, %v1027
  %v1030 = vmul.f32 %v1018, %v1028
  %v1031 = vpack.c.bf16 %v1030, %v1029
  %1032 = vrot.lane.b32.xlu0 %v248, 80
  %v1033 = vpop.permute.xlu0 %1032
  %1034 = vrot.lane.b32.xlu0 %v249, 80
  %v1035 = vpop.permute.xlu0 %1034
  %v1039 = vsel %vm406, %v1031, 0
  %1041 = vmatprep.subr.bf16.mxu0 0
  %1042 = vmatpush1.bf16.msra.mxu0 %v1033
  %1043 = vmatprep.subr.bf16.mxu0 0
  %1044 = vmatpush1.bf16.msra.mxu0 %v1035
  %1045 = vmatprep.subr.bf16.mxu0 0
  %1046 = vmatpush1.bf16.msra.mxu0 0
  %1047 = vmatprep.subr.bf16.mxu0 0
  %1048 = vmatpush1.bf16.msra.mxu0 0
  %1049 = vmatprep.subr.bf16.mxu0 0
  %1050 = vmatpush1.bf16.msra.mxu0 0
  %1051 = vmatprep.subr.bf16.mxu0 0
  %1052 = vmatpush1.bf16.msra.mxu0 0
  %1053 = vmatprep.subr.bf16.mxu0 0
  %1054 = vmatpush1.bf16.msra.mxu0 0
  %1055 = vmatprep.subr.bf16.mxu0 0
  %1056 = vmatpush1.bf16.msra.mxu0 0
  %1057 = vmatprep.subr.bf16.mxu0 0
  %1058 = vmatpush1.bf16.msra.mxu0 0
  %1059 = vmatprep.subr.bf16.mxu0 0
  %1060 = vmatpush1.bf16.msra.mxu0 0
  %1061 = vmatprep.subr.bf16.mxu0 0
  %1062 = vmatpush1.bf16.msra.mxu0 0
  %1063 = vmatprep.subr.bf16.mxu0 0
  %1064 = vmatpush1.bf16.msra.mxu0 0
  %1065 = vmatprep.subr.bf16.mxu0 0
  %1066 = vmatpush1.bf16.msra.mxu0 0
  %1067 = vmatprep.subr.bf16.mxu0 0
  %1068 = vmatpush1.bf16.msra.mxu0 0
  %1069 = vmatprep.subr.bf16.mxu0 0
  %1070 = vmatpush1.bf16.msra.mxu0 0
  %1071 = vmatprep.subr.bf16.mxu0 0
  %1072 = vmatpush1.bf16.msra.mxu0 0
  %1073 = vmatprep.mubr.bf16.mxu0 0
  %1074 = vmatmul.mubr.bf16.gmra.mrb[0].mxu0 %v1039
  %v1075 = vpop.f32.mrb[0].mxu0
  %v1076 = vadd.f32 0.0, %v1075
  %v1077 = vpop.f32.mrb[0].mxu0
  %v1078 = vpop.f32.mrb[0].mxu0
  %v1079 = vadd.f32 0.0, %v1078
  %v1080 = vpop.f32.mrb[0].mxu0
  %1081 = vdwg.mxu0
  %v1082 = vadd.f32 %v981, %v1076
  %v1083 = vadd.f32 %v982, %v1079
  %1084 = vset.pattern.permute.xlu0 7
  %1085 = vperm.xlu0 %1084, %v372
  %v1086 = vpop.permute.xlu0 %1085
  %1088 = vset.pattern.permute.xlu0 7
  %1089 = vperm.xlu0 %1088, %v375
  %v1090 = vpop.permute.xlu0 %1089
  %v1092 = vlaneseq
  %v1093 = vshrl.u32 %v1092, 7
  %v1094 = vsub.s32 7, %v1093
  %v1095 = vrot.slane %v297, %v1094
  %v1096 = vadd.f32 %v1086, %v1095
  %v1097 = vadd.f32 %v1090, %v1095
  %vm1098 = vcmp.gt.f32.partialorder %v1096, 0.0
  %vm1099 = vcmp.gt.f32.partialorder %v1097, 0.0
  %v1100 = vmul.f32 %v1096, 0.2
  %v1101 = vmul.f32 %v1097, 0.2
  %v1102 = vsel %vm1098, %v1096, %v1100
  %v1103 = vsel %vm1099, %v1097, %v1101
  %v1104 = vsel %vm380, %v1102, -1e+30
  %v1105 = vsel %vm381, %v1103, -1e+30
  %v1106 = vsel %vm406, %v1104, -inf
  %1107 = vmax.xlane.f32.xlu0 %v1106
  %v1108 = vpop.xlane.xlu0 %1107
  %v1109 = vsel %vm406, %v1105, -inf
  %1110 = vmax.xlane.f32.xlu0 %v1109
  %v1111 = vpop.xlane.xlu0 %1110
  %v1112 = vsub.f32 %v1104, %v1108
  %v1113 = vsub.f32 %v1105, %v1111
  %v1114 = vmul.f32 %v1112, 1.442695
  %v1115 = vpow.pop %v1114
  %v1116 = vmul.f32 %v1113, 1.442695
  %v1117 = vpow.pop %v1116
  %v1118 = vsel %vm380, %v1115, 0.0
  %v1119 = vsel %vm381, %v1117, 0.0
  %v1120 = vsel %vm406, %v1118, 0.0
  %1121 = vadd.xlane.f32.xlu0 %v1120
  %v1122 = vpop.xlane.xlu0 %1121
  %v1123 = vsel %vm406, %v1119, 0.0
  %1124 = vadd.xlane.f32.xlu0 %v1123
  %v1125 = vpop.xlane.xlu0 %1124
  %v1126 = vmax.f32 %v1122, 1e-30
  %v1127 = vmax.f32 %v1125, 1e-30
  %v1128 = vrcp.pop %v1126
  %v1129 = vrcp.pop %v1127
  %v1130 = vmul.f32 %v1118, %v1128
  %v1131 = vmul.f32 %v1119, %v1129
  %v1132 = vpack.c.bf16 %v1131, %v1130
  %1133 = vrot.lane.b32.xlu0 %v248, 72
  %v1134 = vpop.permute.xlu0 %1133
  %1135 = vrot.lane.b32.xlu0 %v249, 72
  %v1136 = vpop.permute.xlu0 %1135
  %v1140 = vsel %vm406, %v1132, 0
  %1142 = vmatprep.subr.bf16.mxu0 0
  %1143 = vmatpush1.bf16.msra.mxu0 %v1134
  %1144 = vmatprep.subr.bf16.mxu0 0
  %1145 = vmatpush1.bf16.msra.mxu0 %v1136
  %1146 = vmatprep.subr.bf16.mxu0 0
  %1147 = vmatpush1.bf16.msra.mxu0 0
  %1148 = vmatprep.subr.bf16.mxu0 0
  %1149 = vmatpush1.bf16.msra.mxu0 0
  %1150 = vmatprep.subr.bf16.mxu0 0
  %1151 = vmatpush1.bf16.msra.mxu0 0
  %1152 = vmatprep.subr.bf16.mxu0 0
  %1153 = vmatpush1.bf16.msra.mxu0 0
  %1154 = vmatprep.subr.bf16.mxu0 0
  %1155 = vmatpush1.bf16.msra.mxu0 0
  %1156 = vmatprep.subr.bf16.mxu0 0
  %1157 = vmatpush1.bf16.msra.mxu0 0
  %1158 = vmatprep.subr.bf16.mxu0 0
  %1159 = vmatpush1.bf16.msra.mxu0 0
  %1160 = vmatprep.subr.bf16.mxu0 0
  %1161 = vmatpush1.bf16.msra.mxu0 0
  %1162 = vmatprep.subr.bf16.mxu0 0
  %1163 = vmatpush1.bf16.msra.mxu0 0
  %1164 = vmatprep.subr.bf16.mxu0 0
  %1165 = vmatpush1.bf16.msra.mxu0 0
  %1166 = vmatprep.subr.bf16.mxu0 0
  %1167 = vmatpush1.bf16.msra.mxu0 0
  %1168 = vmatprep.subr.bf16.mxu0 0
  %1169 = vmatpush1.bf16.msra.mxu0 0
  %1170 = vmatprep.subr.bf16.mxu0 0
  %1171 = vmatpush1.bf16.msra.mxu0 0
  %1172 = vmatprep.subr.bf16.mxu0 0
  %1173 = vmatpush1.bf16.msra.mxu0 0
  %1174 = vmatprep.mubr.bf16.mxu0 0
  %1175 = vmatmul.mubr.bf16.gmra.mrb[0].mxu0 %v1140
  %v1176 = vpop.f32.mrb[0].mxu0
  %v1177 = vadd.f32 0.0, %v1176
  %v1178 = vpop.f32.mrb[0].mxu0
  %v1179 = vpop.f32.mrb[0].mxu0
  %v1180 = vadd.f32 0.0, %v1179
  %v1181 = vpop.f32.mrb[0].mxu0
  %1182 = vdwg.mxu0
  %v1183 = vadd.f32 %v1082, %v1177
  %v1184 = vadd.f32 %v1083, %v1180
  %v1185 = vmul.f32 %v1183, 0.125
  %v1186 = vmul.f32 %v1184, 0.125
  %vm1187 = vcmask 64512
  %v1188 = vsel %vm1187, %v1185, -inf
  %1189 = vmax.xlane.f32.xlu0 %v1188
  %v1190 = vpop.xlane.xlu0 %1189
  %v1191 = vsel %vm1187, %v1186, -inf
  %1192 = vmax.xlane.f32.xlu0 %v1191
  %v1193 = vpop.xlane.xlu0 %1192
  %v1194 = vsub.f32 %v1185, %v1190
  %v1195 = vsub.f32 %v1186, %v1193
  %v1196 = vmul.f32 %v1194, 1.442695
  %v1197 = vpow.pop %v1196
  %v1198 = vmul.f32 %v1195, 1.442695
  %v1199 = vpow.pop %v1198
  %v1200 = vsel %vm1187, %v1197, 0.0
  %1201 = vadd.xlane.f32.xlu0 %v1200
  %v1202 = vpop.xlane.xlu0 %1201
  %v1203 = vsel %vm1187, %v1199, 0.0
  %1204 = vadd.xlane.f32.xlu0 %v1203
  %v1205 = vpop.xlane.xlu0 %1204
  %v1206 = vlog2.pop %v1202
  %v1207 = vmul.f32 %v1206, 0.6931472
  %v1208 = vlog2.pop %v1205
  %v1209 = vmul.f32 %v1208, 0.6931472
  %v1210 = vadd.f32 %v1207, %v1190
  %v1211 = vadd.f32 %v1209, %v1193
  %v1212 = vsub.f32 %v1185, %v1210
  %v1213 = vsub.f32 %v1186, %v1211
  %1214 = vst.msk [vmem:[%s6] sm:$0xff] %vm1187, %v1212
  %1215 = vst.msk [vmem:[%s6 + $0x8] sm:$0xff] %vm1187, %v1213
  // Predicated region
  $region26: #{_lambda_.3} parent=0 // pred_check
    _
  $region27: #{_lambda_.3} parent=0 // pred_check_branch
    %1217 = sbr.rel (0) target = $region29
  $region28: #{_lambda_.3} parent=0 // pred_region
    _
  $region29: #{_lambda_.3} parent=0 // pred_fallthru
    _
  // Predicated region
  $region30: #{_lambda_.3} parent=0 // pred_check
    _
  $region31: #{_lambda_.3} parent=0 // pred_check_branch
    %1219 = sbr.rel (0) target = $region33
  $region32: #{_lambda_.3} parent=0 // pred_region
    _
  $region33: #{_lambda_.3} parent=0 // pred_fallthru
    _

</llo_original>
